<compile_context>
chip_gen: v6e
topology: v6e:2x2x1
jax: 0.10.0
libtpu: 0.0.40
codegen_flags: <defaults>
</compile_context>

<pallas_src>
import math
import functools

import jax
import jax.numpy as jnp
from jax import lax
from jax.experimental import pallas as pl
from jax.experimental.pallas import tpu as pltpu


# ------------------------------- helpers -----------------------------------

def _choose_tm(m, target=512):
    """Pick an M-tile: full M when small, else a multiple of 8 dividing M."""
    if m <= target:
        return m
    t = (target // 8) * 8
    while t >= 8:
        if m % t == 0:
            return t
        t -= 8
    # TODO(synk): pad M / use pl.cdiv grid + masking instead of full-M fallback.
    return m


def _cparams(dims, est_bytes=0):
    """dimension_semantics + an explicit VMEM limit when the estimate is big."""
    kw = dict(dimension_semantics=dims)
    if est_bytes > (16 << 20):
        kw["vmem_limit_bytes"] = int(min(2 * est_bytes, 48 << 20))
    return pltpu.CompilerParams(**kw)


def _sigmoid(x):
    return 1.0 / (1.0 + jnp.exp(-x))


# ----------------------------- Pallas kernels -------------------------------

def _linear_kernel(x_ref, w_ref, b_ref, o_ref, *, relu):
    y = jnp.dot(x_ref[...].astype(jnp.bfloat16), w_ref[...],
                preferred_element_type=jnp.float32) + b_ref[...]
    if relu:
        y = jnp.maximum(y, 0.0)
    o_ref[...] = y


def linear(x, lin, relu=False):
    """x: (M, K) f32. lin: dict(w=(K, N) bf16, b=(1, N) f32)."""
    M, K = x.shape
    N = lin['w'].shape[1]
    TM = _choose_tm(M)
    est = 2 * (TM * K * 4 + K * N * 2 + N * 4 + TM * N * 4)
    return pl.pallas_call(
        functools.partial(_linear_kernel, relu=relu),
        out_shape=jax.ShapeDtypeStruct((M, N), jnp.float32),
        grid=(M // TM,),
        in_specs=[pl.BlockSpec((TM, K), lambda i: (i, 0)),
                  pl.BlockSpec((K, N), lambda i: (0, 0)),
                  pl.BlockSpec((1, N), lambda i: (0, 0))],
        out_specs=pl.BlockSpec((TM, N), lambda i: (i, 0)),
        compiler_params=_cparams(("parallel",), est),
    )(x, lin['w'], lin['b'])


def _proj_res_ln_kernel(a_ref, res_ref, w_ref, b_ref, g_ref, bb_ref, o_ref):
    """out-projection + residual add + LayerNorm (fused epilogue)."""
    y = jnp.dot(a_ref[...].astype(jnp.bfloat16), w_ref[...],
                preferred_element_type=jnp.float32) + b_ref[...]
    y = y + res_ref[...]
    mean = jnp.mean(y, axis=-1, keepdims=True)
    var = jnp.mean(jnp.square(y - mean), axis=-1, keepdims=True)
    o_ref[...] = (y - mean) * lax.rsqrt(var + 1e-5) * g_ref[...] + bb_ref[...]


def proj_res_ln(a, res, w, b, g, beta):
    M, K = a.shape
    E = w.shape[1]
    TM = _choose_tm(M)
    est = 2 * (TM * K * 4 + 2 * TM * E * 4 + K * E * 2 + 3 * E * 4)
    return pl.pallas_call(
        _proj_res_ln_kernel,
        out_shape=jax.ShapeDtypeStruct((M, E), jnp.float32),
        grid=(M // TM,),
        in_specs=[pl.BlockSpec((TM, K), lambda i: (i, 0)),
                  pl.BlockSpec((TM, E), lambda i: (i, 0)),
                  pl.BlockSpec((K, E), lambda i: (0, 0)),
                  pl.BlockSpec((1, E), lambda i: (0, 0)),
                  pl.BlockSpec((1, E), lambda i: (0, 0)),
                  pl.BlockSpec((1, E), lambda i: (0, 0))],
        out_specs=pl.BlockSpec((TM, E), lambda i: (i, 0)),
        compiler_params=_cparams(("parallel",), est),
    )(a, res, w, b, g, beta)


def _ffn_res_ln_kernel(x_ref, w1_ref, b1_ref, w2_ref, b2_ref, g_ref, bb_ref,
                       o_ref):
    """FF1(relu) + FF2 + residual add + LayerNorm (fused)."""
    x = x_ref[...]
    h = jnp.dot(x.astype(jnp.bfloat16), w1_ref[...],
                preferred_element_type=jnp.float32) + b1_ref[...]
    h = jnp.maximum(h, 0.0)
    y = jnp.dot(h.astype(jnp.bfloat16), w2_ref[...],
                preferred_element_type=jnp.float32) + b2_ref[...]
    y = y + x
    mean = jnp.mean(y, axis=-1, keepdims=True)
    var = jnp.mean(jnp.square(y - mean), axis=-1, keepdims=True)
    o_ref[...] = (y - mean) * lax.rsqrt(var + 1e-5) * g_ref[...] + bb_ref[...]


def ffn_res_ln(x, w1, b1, w2, b2, g, beta):
    M, E = x.shape
    F = w1.shape[1]
    TM = _choose_tm(M, target=256)   # smaller tile: x, h(F-wide) + weights resident
    est = 2 * (2 * TM * E * 4 + 2 * E * F * 2 + (F + 3 * E) * 4) + TM * F * 4
    # TODO(synk): for very large nhid, block F with a VMEM f32 accumulator
    # instead of keeping the full (E,F)/(F,E) weights + (TM,F) intermediate.
    return pl.pallas_call(
        _ffn_res_ln_kernel,
        out_shape=jax.ShapeDtypeStruct((M, E), jnp.float32),
        grid=(M // TM,),
        in_specs=[pl.BlockSpec((TM, E), lambda i: (i, 0)),
                  pl.BlockSpec((E, F), lambda i: (0, 0)),
                  pl.BlockSpec((1, F), lambda i: (0, 0)),
                  pl.BlockSpec((F, E), lambda i: (0, 0)),
                  pl.BlockSpec((1, E), lambda i: (0, 0)),
                  pl.BlockSpec((1, E), lambda i: (0, 0)),
                  pl.BlockSpec((1, E), lambda i: (0, 0))],
        out_specs=pl.BlockSpec((TM, E), lambda i: (i, 0)),
        compiler_params=_cparams(("parallel",), est),
    )(x, w1, b1, w2, b2, g, beta)


def _attention_kernel(len_ref, qkv_ref, o_ref, *, nhead, scale, emb):
    """One batch row; all heads looped in-kernel; causal+padding mask rebuilt."""
    b = pl.program_id(0)
    L = len_ref[b]
    S = qkv_ref.shape[1]
    hd = emb // nhead
    qkv = qkv_ref[0]                                       # (S, 3E) f32
    qi = lax.broadcasted_iota(jnp.int32, (S, S), 0)
    ki = lax.broadcasted_iota(jnp.int32, (S, S), 1)
    allowed = (ki <= qi) & (ki < L)                        # causal & key padding
    neg = jnp.float32(-1e30)
    # TODO(synk): for S >~ 512, block KV with an online-softmax accumulator
    # instead of the full (S, S) score matrix per head.
    outs = []
    for h in range(nhead):                                 # static unroll
        q = (qkv[:, h * hd:(h + 1) * hd] * scale).astype(jnp.bfloat16)
        k = qkv[:, emb + h * hd:emb + (h + 1) * hd].astype(jnp.bfloat16)
        v = qkv[:, 2 * emb + h * hd:2 * emb + (h + 1) * hd].astype(jnp.bfloat16)
        s = lax.dot_general(q, k, (((1,), (1,)), ((), ())),
                            preferred_element_type=jnp.float32)     # (S, S)
        s = jnp.where(allowed, s, neg)
        mx = jnp.max(s, axis=-1, keepdims=True)
        p = jnp.exp(s - mx)
        denom = jnp.maximum(jnp.sum(p, axis=-1, keepdims=True), 1e-30)
        p = p * pl.reciprocal(denom, approx=True)
        outs.append(jnp.dot(p.astype(jnp.bfloat16), v,
                            preferred_element_type=jnp.float32))    # (S, hd)
    o_ref[0] = jnp.concatenate(outs, axis=-1)              # (S, E) lane-dense


def attention(qkv, text_len, *, nhead, scale):
    """qkv: (B, S, 3E) f32 (q|k|v concatenated); text_len: (B,) int32."""
    B, S, E3 = qkv.shape
    E = E3 // 3
    est = 2 * (S * E3 * 4 + S * E * 4) + nhead * S * S * 4
    return pl.pallas_call(
        functools.partial(_attention_kernel, nhead=nhead, scale=scale, emb=E),
        out_shape=jax.ShapeDtypeStruct((B, S, E), jnp.float32),
        grid_spec=pltpu.PrefetchScalarGridSpec(
            num_scalar_prefetch=1,
            grid=(B,),
            in_specs=[pl.BlockSpec((1, S, E3), lambda b, lens: (b, 0, 0))],
            out_specs=pl.BlockSpec((1, S, E), lambda b, lens: (b, 0, 0))),
        compiler_params=_cparams(("parallel",), est),
    )(text_len, qkv)


def _bilstm_kernel(xpf_ref, xpb_ref, whf_ref, whb_ref, of_ref, ob_ref,
                   h_scr, c_scr):
    """Full T recurrence, both directions, inside one kernel invocation."""
    T = xpf_ref.shape[0]
    H = h_scr.shape[-1]
    h_scr[...] = jnp.zeros_like(h_scr)
    c_scr[...] = jnp.zeros_like(c_scr)
    whf = whf_ref[...]
    whb = whb_ref[...]

    def cell(xp, wh, h, c):
        gates = xp + jnp.dot(h.astype(jnp.bfloat16), wh,
                             preferred_element_type=jnp.float32)
        i = _sigmoid(gates[:, 0:H])
        f = _sigmoid(gates[:, H:2 * H])
        g = jnp.tanh(gates[:, 2 * H:3 * H])
        o = _sigmoid(gates[:, 3 * H:4 * H])
        c_new = f * c + i * g
        h_new = o * jnp.tanh(c_new)
        return h_new, c_new

    def body(t, carry):
        hf, cf = cell(xpf_ref[t], whf, h_scr[0], c_scr[0])
        h_scr[0] = hf
        c_scr[0] = cf
        of_ref[t] = hf
        tb = T - 1 - t
        hb, cb = cell(xpb_ref[tb], whb, h_scr[1], c_scr[1])
        h_scr[1] = hb
        c_scr[1] = cb
        ob_ref[tb] = hb
        return carry

    lax.fori_loop(0, T, body, 0, unroll=True)


def bilstm(x, p):
    """x: (T, B, E) f32. Returns (T, B, 2H) f32 (PyTorch bidirectional LSTM)."""
    T, B, E = x.shape
    H = p['w_hh_f'].shape[0]
    xf = x.reshape(T * B, E)
    xp_f = linear(xf, p['ih_f']).reshape(T, B, 4 * H)   # x@W_ih^T + b_ih + b_hh
    xp_b = linear(xf, p['ih_b']).reshape(T, B, 4 * H)

    est = 2 * (2 * T * B * 4 * H * 4 + 2 * H * 4 * H * 2 + 2 * T * B * H * 4)
    out_f, out_b = pl.pallas_call(
        _bilstm_kernel,
        out_shape=(jax.ShapeDtypeStruct((T, B, H), jnp.float32),
                   jax.ShapeDtypeStruct((T, B, H), jnp.float32)),
        grid=(1,),
        in_specs=[pl.BlockSpec((T, B, 4 * H), lambda i: (0, 0, 0)),
                  pl.BlockSpec((T, B, 4 * H), lambda i: (0, 0, 0)),
                  pl.BlockSpec((H, 4 * H), lambda i: (0, 0)),
                  pl.BlockSpec((H, 4 * H), lambda i: (0, 0))],
        out_specs=[pl.BlockSpec((T, B, H), lambda i: (0, 0, 0)),
                   pl.BlockSpec((T, B, H), lambda i: (0, 0, 0))],
        scratch_shapes=[pltpu.VMEM((2, B, H), jnp.float32),
                        pltpu.VMEM((2, B, H), jnp.float32)],
        compiler_params=_cparams(("arbitrary",), est),
    )(xp_f, xp_b, p['w_hh_f'], p['w_hh_b'])
    return jnp.concatenate([out_f, out_b], axis=-1)


# ------------------------------ model pieces --------------------------------

def encoder_layer(x, p, text_len, nhead):
    """PyTorch TransformerEncoderLayer (post-norm, relu, eval mode).
    x: (B, S, E) batch-first residual stream."""
    B, S, E = x.shape
    hd = E // nhead
    xf = x.reshape(B * S, E)

    qkv = linear(xf, p['qkv']).reshape(B, S, 3 * E)
    attn = attention(qkv, text_len, nhead=nhead, scale=1.0 / math.sqrt(hd))
    attn = attn.reshape(B * S, E)

    x1 = proj_res_ln(attn, xf, p['out_w'], p['out_b'], p['ln1_g'], p['ln1_b'])
    x2 = ffn_res_ln(x1, p['ff1_w'], p['ff1_b'], p['ff2_w'], p['ff2_b'],
                    p['ln2_g'], p['ln2_b'])
    return x2.reshape(B, S, E)


def crf_viterbi_decode(emissions, mask, start_t, end_t, trans):
    """torchcrf-style Viterbi decode. emissions: (T,B,N), mask: (T,B) bool.
    Returns (tags (T,B) int32 padded past seq end, lengths (B,))."""
    T, B, N = emissions.shape
    score0 = start_t[None, :] + emissions[0]

    def fwd(score, inp):
        emit_t, mask_t = inp
        nxt = score[:, :, None] + trans[None] + emit_t[:, None, :]   # (B,N,N)
        best_prev = jnp.argmax(nxt, axis=1)
        nxt = jnp.max(nxt, axis=1)
        score = jnp.where(mask_t[:, None], nxt, score)
        return score, best_prev

    score, history = lax.scan(fwd, score0, (emissions[1:], mask[1:]))
    score = score + end_t[None, :]
    seq_end = jnp.sum(mask.astype(jnp.int32), axis=0) - 1
    last_tag = jnp.argmax(score, axis=-1).astype(jnp.int32)

    def bwd(cur, inp):
        hist_t, t = inp
        prev = hist_t[jnp.arange(B), cur].astype(jnp.int32)
        cur = jnp.where(t < seq_end, prev, cur)
        return cur, cur

    ts = jnp.arange(T - 1)
    _, tags_rev = lax.scan(bwd, last_tag, (history[::-1], ts[::-1]))
    tags = jnp.concatenate([tags_rev[::-1], last_tag[None]], axis=0)
    return tags, seq_end + 1


# ------------------------------- full forward -------------------------------

def forward(prep, src, text_len, *, nhead):
    """src: (S, B) int32 token ids (pad id = 1); text_len: (B,) int32."""
    S, B = src.shape
    E = prep['embedding'].shape[1]

    mask_crf = (src != 1)                                       # (S, B)

    # ---- transformer_forward (batch-first residual stream) ----
    x = prep['embedding'][src.T] * math.sqrt(E)                 # (B, S, E)
    # TODO(synk): self.convs / self.sizes are never defined in the reference
    # __init__, so the CNN branch of transformer_forward cannot be reproduced;
    # the embedding output feeds pos_encoder directly.
    x = x + prep['pe'][:S][None, :, :]                          # dropout = id
    for lp in prep['layers']:
        x = encoder_layer(x, lp, text_len, nhead)
    transformer_out = jnp.transpose(x, (1, 0, 2))               # (S, B, E)

    # ---- BiLSTM ----
    lstm_out = bilstm(transformer_out, prep['lstm'])            # (S, B, 2H)

    # ---- emissions ----
    T, Bb, D = lstm_out.shape
    emissions = linear(lstm_out.reshape(T * Bb, D), prep['linner'])
    emissions = emissions.reshape(T, Bb, -1)                    # (S, B, ntag)

    # ---- CRF decode (torchcrf semantics, Viterbi), plain-JAX glue ----
    tags, lengths = crf_viterbi_decode(emissions, mask_crf, prep['crf_start'],
                                       prep['crf_end'], prep['crf_trans'])
    return tags, lengths, emissions


# ---------------------------- parameter handling -----------------------------

def init_params(key, *, ntoken, ntag, emb, nhead, nhid, nlayers,
                bi_lstm_hidden):
    """Raw parameters in PyTorch layout."""
    H = bi_lstm_hidden // 2
    ks = iter(jax.random.split(key, 64))
    u = lambda shape, s=0.1: jax.random.uniform(next(ks), shape, jnp.float32, -s, s)

    layers = []
    for _ in range(nlayers):
        layers.append(dict(
            in_w=u((3 * emb, emb)), in_b=u((3 * emb,)),
            out_w=u((emb, emb)), out_b=u((emb,)),
            ff1_w=u((nhid, emb)), ff1_b=u((nhid,)),
            ff2_w=u((emb, nhid)), ff2_b=u((emb,)),
            ln1_g=jnp.ones((emb,)), ln1_b=jnp.zeros((emb,)),
            ln2_g=jnp.ones((emb,)), ln2_b=jnp.zeros((emb,)),
        ))

    lstm = dict(
        w_ih_f=u((4 * H, emb)), w_hh_f=u((4 * H, H)),
        b_ih_f=u((4 * H,)), b_hh_f=u((4 * H,)),
        w_ih_b=u((4 * H, emb)), w_hh_b=u((4 * H, H)),
        b_ih_b=u((4 * H,)), b_hh_b=u((4 * H,)),
    )

    return dict(
        embedding=jax.random.normal(next(ks), (ntoken, emb), jnp.float32),
        layers=layers,
        lstm=lstm,
        linner_w=u((ntag, bi_lstm_hidden)),      # init_weights(): uniform(-0.1,0.1)
        linner_b=jnp.zeros((ntag,)),             # init_weights(): bias zero
        crf_start=u((ntag,)), crf_end=u((ntag,)), crf_trans=u((ntag, ntag)),
    )


def prepare_params(params, *, max_len=5000):
    """One-time conversion to the layouts the kernels consume:
    transposed (K, N), bf16 weights, (1, N) f32 biases.  No Python scalars
    are stored (everything is a jit-safe array leaf)."""

    def prep_lin(w, b):
        # w: (N, K) PyTorch (out, in) layout  ->  (K, N) bf16 ; b -> (1, N) f32
        return dict(w=jnp.asarray(w).T.astype(jnp.bfloat16),
                    b=jnp.asarray(b).reshape(1, -1).astype(jnp.float32))

    E = params['embedding'].shape[1]

    layers = []
    for p in params['layers']:
        layers.append(dict(
            qkv=prep_lin(p['in_w'], p['in_b']),
            out_w=p['out_w'].T.astype(jnp.bfloat16),       # (E, E)
            out_b=p['out_b'].reshape(1, -1),
            ff1_w=p['ff1_w'].T.astype(jnp.bfloat16),       # (E, F)
            ff1_b=p['ff1_b'].reshape(1, -1),
            ff2_w=p['ff2_w'].T.astype(jnp.bfloat16),       # (F, E)
            ff2_b=p['ff2_b'].reshape(1, -1),
            ln1_g=p['ln1_g'].reshape(1, -1), ln1_b=p['ln1_b'].reshape(1, -1),
            ln2_g=p['ln2_g'].reshape(1, -1), ln2_b=p['ln2_b'].reshape(1, -1),
        ))

    lp = params['lstm']
    lstm = dict(
        ih_f=prep_lin(lp['w_ih_f'], lp['b_ih_f'] + lp['b_hh_f']),
        ih_b=prep_lin(lp['w_ih_b'], lp['b_ih_b'] + lp['b_hh_b']),
        w_hh_f=lp['w_hh_f'].T.astype(jnp.bfloat16),        # (H, 4H)
        w_hh_b=lp['w_hh_b'].T.astype(jnp.bfloat16),
    )

    # positional-encoding table precomputed once
    pos = jnp.arange(max_len, dtype=jnp.float32)[:, None]
    div = jnp.exp(jnp.arange(0, E, 2, dtype=jnp.float32) *
                  (-math.log(10000.0) / E))
    pe = jnp.zeros((max_len, E), jnp.float32)
    pe = pe.at[:, 0::2].set(jnp.sin(pos * div))
    pe = pe.at[:, 1::2].set(jnp.cos(pos * div))

    return dict(
        embedding=params['embedding'],
        pe=pe,
        layers=layers,
        lstm=lstm,
        linner=prep_lin(params['linner_w'], params['linner_b']),
        crf_start=params['crf_start'], crf_end=params['crf_end'],
        crf_trans=params['crf_trans'],
    )


# ----------------------------------- main ------------------------------------

if __name__ == "__main__":
    # small config consistent with the module
    S, B = 8, 2
    ntoken, ntag = 50, 5
    emb, nhead, nhid, nlayers, bi_lstm_hidden = 32, 4, 64, 2, 32

    key = jax.random.PRNGKey(0)
    kp, kt = jax.random.split(key)
    raw = init_params(kp, ntoken=ntoken, ntag=ntag, emb=emb, nhead=nhead,
                      nhid=nhid, nlayers=nlayers,
                      bi_lstm_hidden=bi_lstm_hidden)
    prep = prepare_params(raw)

    text_len = jnp.array([8, 5], dtype=jnp.int32)
    tokens = jax.random.randint(kt, (S, B), 2, ntoken, dtype=jnp.int32)
    pad = jnp.arange(S)[:, None] >= text_len[None, :]
    src = jnp.where(pad, 1, tokens).astype(jnp.int32)           # pad id = 1

    fwd = jax.jit(functools.partial(forward, nhead=nhead))
    tags, lengths, emissions = fwd(prep, src, text_len)
    jax.block_until_ready((tags, lengths, emissions))

    assert tags.shape == (S, B)
    assert emissions.shape == (S, B, ntag)
    print("KERNEL_OK")
</pallas_src>

<mosaic_0001>
module attributes {stable_mosaic.version = 11 : i64} {
  func.func @_linear_kernel(%arg0: i32, %arg1: memref<16x32xf32, #tpu.memory_space<vmem>>, %arg2: memref<32x96xbf16, #tpu.memory_space<vmem>>, %arg3: memref<1x96xf32, #tpu.memory_space<vmem>>, %arg4: memref<16x96xf32, #tpu.memory_space<vmem>>) attributes {dimension_semantics = [#tpu.dimension_semantics<parallel>], iteration_bounds = array<i64: 1>, scalar_prefetch = 0 : i64, scratch_operands = 0 : i64, tpu.core_type = #tpu.core_type<tc>, window_params = [{transform_indices = @transform_0, window_bounds = array<i64: 16, 32>}, {pipeline_mode = #tpu.pipeline_mode<synchronous>, transform_indices = @transform_1, window_bounds = array<i64: 32, 96>}, {pipeline_mode = #tpu.pipeline_mode<synchronous>, transform_indices = @transform_2, window_bounds = array<i64: 1, 96>}, {transform_indices = @transform_3, window_bounds = array<i64: 16, 96>}]} {
    %c0 = arith.constant 0 : index
    %c0_0 = arith.constant 0 : index
    %0 = vector.load %arg1[%c0, %c0_0] : memref<16x32xf32, #tpu.memory_space<vmem>>, vector<16x32xf32>
    %1 = arith.truncf %0 : vector<16x32xf32> to vector<16x32xbf16>
    %c0_1 = arith.constant 0 : index
    %c0_2 = arith.constant 0 : index
    %2 = vector.load %arg2[%c0_1, %c0_2] : memref<32x96xbf16, #tpu.memory_space<vmem>>, vector<32x96xbf16>
    %cst = arith.constant dense<0.000000e+00> : vector<16x96xf32>
    %3 = tpu.matmul %1, %2, %cst {dimension_numbers = #tpu.dot_dimension_numbers<[1], [0], [0], [1], [0, 0, 1, 1], [], []>} : vector<16x32xbf16>, vector<32x96xbf16>, vector<16x96xf32> -> vector<16x96xf32>
    %c0_3 = arith.constant 0 : index
    %c0_4 = arith.constant 0 : index
    %4 = vector.load %arg3[%c0_3, %c0_4] : memref<1x96xf32, #tpu.memory_space<vmem>>, vector<1x96xf32>
    %5 = vector.broadcast %4 : vector<1x96xf32> to vector<16x96xf32>
    %6 = arith.addf %3, %5 : vector<16x96xf32>
    %c0_5 = arith.constant 0 : index
    %c0_6 = arith.constant 0 : index
    %7 = vector.load %arg4[%c0_5, %c0_6] : memref<16x96xf32, #tpu.memory_space<vmem>>, vector<16x96xf32>
    tpu.vector_store %arg4[%c0_5, %c0_6], %6 {strides = array<i32>} : memref<16x96xf32, #tpu.memory_space<vmem>>, vector<16x96xf32>,
    return
  }
  func.func @transform_0(%arg0: i32) -> (i32, i32) {
    %c0_i32 = arith.constant 0 : i32
    %c0_i32_0 = arith.constant 0 : i32
    return %arg0, %c0_i32 : i32, i32
  }
  func.func @transform_1(%arg0: i32) -> (i32, i32) {
    %c0_i32 = arith.constant 0 : i32
    %c0_i32_0 = arith.constant 0 : i32
    %c0_i32_1 = arith.constant 0 : i32
    return %c0_i32, %c0_i32_0 : i32, i32
  }
  func.func @transform_2(%arg0: i32) -> (i32, i32) {
    %c0_i32 = arith.constant 0 : i32
    %c0_i32_0 = arith.constant 0 : i32
    %c0_i32_1 = arith.constant 0 : i32
    return %c0_i32, %c0_i32_0 : i32, i32
  }
  func.func @transform_3(%arg0: i32) -> (i32, i32) {
    %c0_i32 = arith.constant 0 : i32
    %c0_i32_0 = arith.constant 0 : i32
    return %arg0, %c0_i32 : i32, i32
  }
}

module attributes {stable_mosaic.version = 11 : i64} {
  func.func @_proj_res_ln_kernel(%arg0: i32, %arg1: memref<16x32xf32, #tpu.memory_space<vmem>>, %arg2: memref<16x32xf32, #tpu.memory_space<vmem>>, %arg3: memref<32x32xbf16, #tpu.memory_space<vmem>>, %arg4: memref<1x32xf32, #tpu.memory_space<vmem>>, %arg5: memref<1x32xf32, #tpu.memory_space<vmem>>, %arg6: memref<1x32xf32, #tpu.memory_space<vmem>>, %arg7: memref<16x32xf32, #tpu.memory_space<vmem>>) attributes {dimension_semantics = [#tpu.dimension_semantics<parallel>], iteration_bounds = array<i64: 1>, scalar_prefetch = 0 : i64, scratch_operands = 0 : i64, tpu.core_type = #tpu.core_type<tc>, window_params = [{transform_indices = @transform_0, window_bounds = array<i64: 16, 32>}, {transform_indices = @transform_1, window_bounds = array<i64: 16, 32>}, {pipeline_mode = #tpu.pipeline_mode<synchronous>, transform_indices = @transform_2, window_bounds = array<i64: 32, 32>}, {pipeline_mode = #tpu.pipeline_mode<synchronous>, transform_indices = @transform_3, window_bounds = array<i64: 1, 32>}, {pipeline_mode = #tpu.pipeline_mode<synchronous>, transform_indices = @transform_4, window_bounds = array<i64: 1, 32>}, {pipeline_mode = #tpu.pipeline_mode<synchronous>, transform_indices = @transform_5, window_bounds = array<i64: 1, 32>}, {transform_indices = @transform_6, window_bounds = array<i64: 16, 32>}]} {
    %c0 = arith.constant 0 : index
    %c0_0 = arith.constant 0 : index
    %0 = vector.load %arg1[%c0, %c0_0] : memref<16x32xf32, #tpu.memory_space<vmem>>, vector<16x32xf32>
    %1 = arith.truncf %0 : vector<16x32xf32> to vector<16x32xbf16>
    %c0_1 = arith.constant 0 : index
    %c0_2 = arith.constant 0 : index
    %2 = vector.load %arg3[%c0_1, %c0_2] : memref<32x32xbf16, #tpu.memory_space<vmem>>, vector<32x32xbf16>
    %cst = arith.constant dense<0.000000e+00> : vector<16x32xf32>
    %3 = tpu.matmul %1, %2, %cst {dimension_numbers = #tpu.dot_dimension_numbers<[1], [0], [0], [1], [0, 0, 1, 1], [], []>} : vector<16x32xbf16>, vector<32x32xbf16>, vector<16x32xf32> -> vector<16x32xf32>
    %c0_3 = arith.constant 0 : index
    %c0_4 = arith.constant 0 : index
    %4 = vector.load %arg4[%c0_3, %c0_4] : memref<1x32xf32, #tpu.memory_space<vmem>>, vector<1x32xf32>
    %5 = vector.broadcast %4 : vector<1x32xf32> to vector<16x32xf32>
    %6 = arith.addf %3, %5 : vector<16x32xf32>
    %c0_5 = arith.constant 0 : index
    %c0_6 = arith.constant 0 : index
    %7 = vector.load %arg2[%c0_5, %c0_6] : memref<16x32xf32, #tpu.memory_space<vmem>>, vector<16x32xf32>
    %8 = arith.addf %6, %7 : vector<16x32xf32>
    %cst_7 = arith.constant dense<0.000000e+00> : vector<16xf32>
    %9 = vector.multi_reduction <add>, %8, %cst_7 [1] : vector<16x32xf32> to vector<16xf32>
    %10 = vector.shape_cast %9 : vector<16xf32> to vector<16x1xf32>
    %cst_8 = arith.constant 3.200000e+01 : f32
    %11 = vector.broadcast %cst_8 : f32 to vector<16x1xf32>
    %12 = arith.divf %10, %11 : vector<16x1xf32>
    %13 = vector.broadcast %12 : vector<16x1xf32> to vector<16x32xf32>
    %14 = arith.subf %8, %13 : vector<16x32xf32>
    %15 = arith.mulf %14, %14 : vector<16x32xf32>
    %cst_9 = arith.constant dense<0.000000e+00> : vector<16xf32>
    %16 = vector.multi_reduction <add>, %15, %cst_9 [1] : vector<16x32xf32> to vector<16xf32>
    %17 = vector.shape_cast %16 : vector<16xf32> to vector<16x1xf32>
    %cst_10 = arith.constant 3.200000e+01 : f32
    %18 = vector.broadcast %cst_10 : f32 to vector<16x1xf32>
    %19 = arith.divf %17, %18 : vector<16x1xf32>
    %20 = vector.broadcast %12 : vector<16x1xf32> to vector<16x32xf32>
    %21 = arith.subf %8, %20 : vector<16x32xf32>
    %cst_11 = arith.constant 9.99999974E-6 : f32
    %22 = vector.broadcast %cst_11 : f32 to vector<16x1xf32>
    %23 = arith.addf %19, %22 : vector<16x1xf32>
    %24 = math.rsqrt %23 : vector<16x1xf32>
    %25 = vector.broadcast %24 : vector<16x1xf32> to vector<16x32xf32>
    %26 = arith.mulf %21, %25 : vector<16x32xf32>
    %c0_12 = arith.constant 0 : index
    %c0_13 = arith.constant 0 : index
    %27 = vector.load %arg5[%c0_12, %c0_13] : memref<1x32xf32, #tpu.memory_space<vmem>>, vector<1x32xf32>
    %28 = vector.broadcast %27 : vector<1x32xf32> to vector<16x32xf32>
    %29 = arith.mulf %26, %28 : vector<16x32xf32>
    %c0_14 = arith.constant 0 : index
    %c0_15 = arith.constant 0 : index
    %30 = vector.load %arg6[%c0_14, %c0_15] : memref<1x32xf32, #tpu.memory_space<vmem>>, vector<1x32xf32>
    %31 = vector.broadcast %30 : vector<1x32xf32> to vector<16x32xf32>
    %32 = arith.addf %29, %31 : vector<16x32xf32>
    %c0_16 = arith.constant 0 : index
    %c0_17 = arith.constant 0 : index
    %33 = vector.load %arg7[%c0_16, %c0_17] : memref<16x32xf32, #tpu.memory_space<vmem>>, vector<16x32xf32>
    tpu.vector_store %arg7[%c0_16, %c0_17], %32 {strides = array<i32>} : memref<16x32xf32, #tpu.memory_space<vmem>>, vector<16x32xf32>,
    return
  }
  func.func @transform_0(%arg0: i32) -> (i32, i32) {
    %c0_i32 = arith.constant 0 : i32
    %c0_i32_0 = arith.constant 0 : i32
    return %arg0, %c0_i32 : i32, i32
  }
  func.func @transform_1(%arg0: i32) -> (i32, i32) {
    %c0_i32 = arith.constant 0 : i32
    %c0_i32_0 = arith.constant 0 : i32
    return %arg0, %c0_i32 : i32, i32
  }
  func.func @transform_2(%arg0: i32) -> (i32, i32) {
    %c0_i32 = arith.constant 0 : i32
    %c0_i32_0 = arith.constant 0 : i32
    %c0_i32_1 = arith.constant 0 : i32
    return %c0_i32, %c0_i32_0 : i32, i32
  }
  func.func @transform_3(%arg0: i32) -> (i32, i32) {
    %c0_i32 = arith.constant 0 : i32
    %c0_i32_0 = arith.constant 0 : i32
    %c0_i32_1 = arith.constant 0 : i32
    return %c0_i32, %c0_i32_0 : i32, i32
  }
  func.func @transform_4(%arg0: i32) -> (i32, i32) {
    %c0_i32 = arith.constant 0 : i32
    %c0_i32_0 = arith.constant 0 : i32
    %c0_i32_1 = arith.constant 0 : i32
    return %c0_i32, %c0_i32_0 : i32, i32
  }
  func.func @transform_5(%arg0: i32) -> (i32, i32) {
    %c0_i32 = arith.constant 0 : i32
    %c0_i32_0 = arith.constant 0 : i32
    %c0_i32_1 = arith.constant 0 : i32
    return %c0_i32, %c0_i32_0 : i32, i32
  }
  func.func @transform_6(%arg0: i32) -> (i32, i32) {
    %c0_i32 = arith.constant 0 : i32
    %c0_i32_0 = arith.constant 0 : i32
    return %arg0, %c0_i32 : i32, i32
  }
}

module attributes {stable_mosaic.version = 11 : i64} {
  func.func @_attention_kernel(%arg0: i32, %arg1: memref<2xi32, #tpu.memory_space<smem>>, %arg2: memref<1x8x96xf32, #tpu.memory_space<vmem>>, %arg3: memref<1x8x32xf32, #tpu.memory_space<vmem>>) attributes {dimension_semantics = [#tpu.dimension_semantics<parallel>], iteration_bounds = array<i64: 2>, scalar_prefetch = 1 : i64, scratch_operands = 0 : i64, tpu.core_type = #tpu.core_type<tc>, window_params = [{transform_indices = @transform_0, window_bounds = array<i64: 1, 8, 96>}, {transform_indices = @transform_1, window_bounds = array<i64: 1, 8, 32>}]} {
    %0 = arith.index_cast %arg0 : i32 to index
    %1 = memref.load %arg1[%0] : memref<2xi32, #tpu.memory_space<smem>>
    %c0 = arith.constant 0 : index
    %c0_0 = arith.constant 0 : index
    %c0_1 = arith.constant 0 : index
    %2 = vector.load %arg2[%c0, %c0_0, %c0_1] : memref<1x8x96xf32, #tpu.memory_space<vmem>>, vector<1x8x96xf32>
    %3 = vector.shape_cast %2 : vector<1x8x96xf32> to vector<8x96xf32>
    %4 = tpu.iota {dimensions = array<i32: 0>} : vector<8x8xi32>
    %5 = tpu.iota {dimensions = array<i32: 1>} : vector<8x8xi32>
    %6 = arith.cmpi sle, %5, %4 : vector<8x8xi32>
    %7 = vector.broadcast %1 : i32 to vector<8x8xi32>
    %8 = arith.cmpi slt, %5, %7 : vector<8x8xi32>
    %9 = arith.andi %6, %8 : vector<8x8xi1>
    %10 = vector.extract_strided_slice %3 {offsets = [0, 0], sizes = [8, 8], strides = [1, 1]} : vector<8x96xf32> to vector<8x8xf32>
    %cst = arith.constant 0.353553385 : f32
    %11 = vector.broadcast %cst : f32 to vector<8x8xf32>
    %12 = arith.mulf %10, %11 : vector<8x8xf32>
    %13 = arith.truncf %12 : vector<8x8xf32> to vector<8x8xbf16>
    %14 = vector.extract_strided_slice %3 {offsets = [0, 32], sizes = [8, 8], strides = [1, 1]} : vector<8x96xf32> to vector<8x8xf32>
    %15 = arith.truncf %14 : vector<8x8xf32> to vector<8x8xbf16>
    %16 = vector.extract_strided_slice %3 {offsets = [0, 64], sizes = [8, 8], strides = [1, 1]} : vector<8x96xf32> to vector<8x8xf32>
    %17 = arith.truncf %16 : vector<8x8xf32> to vector<8x8xbf16>
    %cst_2 = arith.constant dense<0.000000e+00> : vector<8x8xf32>
    %18 = tpu.matmul %13, %15, %cst_2 {dimension_numbers = #tpu.dot_dimension_numbers<[1], [1], [0], [0], [0, 0, 1, 0], [], []>} : vector<8x8xbf16>, vector<8x8xbf16>, vector<8x8xf32> -> vector<8x8xf32>
    %cst_3 = arith.constant -1.000000e+30 : f32
    %19 = vector.broadcast %cst_3 : f32 to vector<8x8xf32>
    %20 = arith.select %9, %18, %19 : vector<8x8xi1>, vector<8x8xf32>
    %cst_4 = arith.constant dense<0xFF800000> : vector<8xf32>
    %21 = vector.multi_reduction <maximumf>, %20, %cst_4 [1] : vector<8x8xf32> to vector<8xf32>
    %22 = vector.shape_cast %21 : vector<8xf32> to vector<8x1xf32>
    %23 = vector.broadcast %22 : vector<8x1xf32> to vector<8x8xf32>
    %24 = arith.subf %20, %23 : vector<8x8xf32>
    %25 = math.exp %24 : vector<8x8xf32>
    %cst_5 = arith.constant dense<0.000000e+00> : vector<8xf32>
    %26 = vector.multi_reduction <add>, %25, %cst_5 [1] : vector<8x8xf32> to vector<8xf32>
    %27 = vector.shape_cast %26 : vector<8xf32> to vector<8x1xf32>
    %cst_6 = arith.constant 1.000000e-30 : f32
    %28 = vector.broadcast %cst_6 : f32 to vector<8x1xf32>
    %29 = arith.maximumf %27, %28 : vector<8x1xf32>
    %30 = tpu.reciprocal %29 {approx = true} : vector<8x1xf32> -> vector<8x1xf32>
    %31 = vector.broadcast %30 : vector<8x1xf32> to vector<8x8xf32>
    %32 = arith.mulf %25, %31 : vector<8x8xf32>
    %33 = arith.truncf %32 : vector<8x8xf32> to vector<8x8xbf16>
    %cst_7 = arith.constant dense<0.000000e+00> : vector<8x8xf32>
    %34 = tpu.matmul %33, %17, %cst_7 {dimension_numbers = #tpu.dot_dimension_numbers<[1], [0], [0], [1], [0, 0, 1, 1], [], []>} : vector<8x8xbf16>, vector<8x8xbf16>, vector<8x8xf32> -> vector<8x8xf32>
    %35 = vector.extract_strided_slice %3 {offsets = [0, 8], sizes = [8, 8], strides = [1, 1]} : vector<8x96xf32> to vector<8x8xf32>
    %cst_8 = arith.constant 0.353553385 : f32
    %36 = vector.broadcast %cst_8 : f32 to vector<8x8xf32>
    %37 = arith.mulf %35, %36 : vector<8x8xf32>
    %38 = arith.truncf %37 : vector<8x8xf32> to vector<8x8xbf16>
    %39 = vector.extract_strided_slice %3 {offsets = [0, 40], sizes = [8, 8], strides = [1, 1]} : vector<8x96xf32> to vector<8x8xf32>
    %40 = arith.truncf %39 : vector<8x8xf32> to vector<8x8xbf16>
    %41 = vector.extract_strided_slice %3 {offsets = [0, 72], sizes = [8, 8], strides = [1, 1]} : vector<8x96xf32> to vector<8x8xf32>
    %42 = arith.truncf %41 : vector<8x8xf32> to vector<8x8xbf16>
    %cst_9 = arith.constant dense<0.000000e+00> : vector<8x8xf32>
    %43 = tpu.matmul %38, %40, %cst_9 {dimension_numbers = #tpu.dot_dimension_numbers<[1], [1], [0], [0], [0, 0, 1, 0], [], []>} : vector<8x8xbf16>, vector<8x8xbf16>, vector<8x8xf32> -> vector<8x8xf32>
    %cst_10 = arith.constant -1.000000e+30 : f32
    %44 = vector.broadcast %cst_10 : f32 to vector<8x8xf32>
    %45 = arith.select %9, %43, %44 : vector<8x8xi1>, vector<8x8xf32>
    %cst_11 = arith.constant dense<0xFF800000> : vector<8xf32>
    %46 = vector.multi_reduction <maximumf>, %45, %cst_11 [1] : vector<8x8xf32> to vector<8xf32>
    %47 = vector.shape_cast %46 : vector<8xf32> to vector<8x1xf32>
    %48 = vector.broadcast %47 : vector<8x1xf32> to vector<8x8xf32>
    %49 = arith.subf %45, %48 : vector<8x8xf32>
    %50 = math.exp %49 : vector<8x8xf32>
    %cst_12 = arith.constant dense<0.000000e+00> : vector<8xf32>
    %51 = vector.multi_reduction <add>, %50, %cst_12 [1] : vector<8x8xf32> to vector<8xf32>
    %52 = vector.shape_cast %51 : vector<8xf32> to vector<8x1xf32>
    %cst_13 = arith.constant 1.000000e-30 : f32
    %53 = vector.broadcast %cst_13 : f32 to vector<8x1xf32>
    %54 = arith.maximumf %52, %53 : vector<8x1xf32>
    %55 = tpu.reciprocal %54 {approx = true} : vector<8x1xf32> -> vector<8x1xf32>
    %56 = vector.broadcast %55 : vector<8x1xf32> to vector<8x8xf32>
    %57 = arith.mulf %50, %56 : vector<8x8xf32>
    %58 = arith.truncf %57 : vector<8x8xf32> to vector<8x8xbf16>
    %cst_14 = arith.constant dense<0.000000e+00> : vector<8x8xf32>
    %59 = tpu.matmul %58, %42, %cst_14 {dimension_numbers = #tpu.dot_dimension_numbers<[1], [0], [0], [1], [0, 0, 1, 1], [], []>} : vector<8x8xbf16>, vector<8x8xbf16>, vector<8x8xf32> -> vector<8x8xf32>
    %60 = vector.extract_strided_slice %3 {offsets = [0, 16], sizes = [8, 8], strides = [1, 1]} : vector<8x96xf32> to vector<8x8xf32>
    %cst_15 = arith.constant 0.353553385 : f32
    %61 = vector.broadcast %cst_15 : f32 to vector<8x8xf32>
    %62 = arith.mulf %60, %61 : vector<8x8xf32>
    %63 = arith.truncf %62 : vector<8x8xf32> to vector<8x8xbf16>
    %64 = vector.extract_strided_slice %3 {offsets = [0, 48], sizes = [8, 8], strides = [1, 1]} : vector<8x96xf32> to vector<8x8xf32>
    %65 = arith.truncf %64 : vector<8x8xf32> to vector<8x8xbf16>
    %66 = vector.extract_strided_slice %3 {offsets = [0, 80], sizes = [8, 8], strides = [1, 1]} : vector<8x96xf32> to vector<8x8xf32>
    %67 = arith.truncf %66 : vector<8x8xf32> to vector<8x8xbf16>
    %cst_16 = arith.constant dense<0.000000e+00> : vector<8x8xf32>
    %68 = tpu.matmul %63, %65, %cst_16 {dimension_numbers = #tpu.dot_dimension_numbers<[1], [1], [0], [0], [0, 0, 1, 0], [], []>} : vector<8x8xbf16>, vector<8x8xbf16>, vector<8x8xf32> -> vector<8x8xf32>
    %cst_17 = arith.constant -1.000000e+30 : f32
    %69 = vector.broadcast %cst_17 : f32 to vector<8x8xf32>
    %70 = arith.select %9, %68, %69 : vector<8x8xi1>, vector<8x8xf32>
    %cst_18 = arith.constant dense<0xFF800000> : vector<8xf32>
    %71 = vector.multi_reduction <maximumf>, %70, %cst_18 [1] : vector<8x8xf32> to vector<8xf32>
    %72 = vector.shape_cast %71 : vector<8xf32> to vector<8x1xf32>
    %73 = vector.broadcast %72 : vector<8x1xf32> to vector<8x8xf32>
    %74 = arith.subf %70, %73 : vector<8x8xf32>
    %75 = math.exp %74 : vector<8x8xf32>
    %cst_19 = arith.constant dense<0.000000e+00> : vector<8xf32>
    %76 = vector.multi_reduction <add>, %75, %cst_19 [1] : vector<8x8xf32> to vector<8xf32>
    %77 = vector.shape_cast %76 : vector<8xf32> to vector<8x1xf32>
    %cst_20 = arith.constant 1.000000e-30 : f32
    %78 = vector.broadcast %cst_20 : f32 to vector<8x1xf32>
    %79 = arith.maximumf %77, %78 : vector<8x1xf32>
    %80 = tpu.reciprocal %79 {approx = true} : vector<8x1xf32> -> vector<8x1xf32>
    %81 = vector.broadcast %80 : vector<8x1xf32> to vector<8x8xf32>
    %82 = arith.mulf %75, %81 : vector<8x8xf32>
    %83 = arith.truncf %82 : vector<8x8xf32> to vector<8x8xbf16>
    %cst_21 = arith.constant dense<0.000000e+00> : vector<8x8xf32>
    %84 = tpu.matmul %83, %67, %cst_21 {dimension_numbers = #tpu.dot_dimension_numbers<[1], [0], [0], [1], [0, 0, 1, 1], [], []>} : vector<8x8xbf16>, vector<8x8xbf16>, vector<8x8xf32> -> vector<8x8xf32>
    %85 = vector.extract_strided_slice %3 {offsets = [0, 24], sizes = [8, 8], strides = [1, 1]} : vector<8x96xf32> to vector<8x8xf32>
    %cst_22 = arith.constant 0.353553385 : f32
    %86 = vector.broadcast %cst_22 : f32 to vector<8x8xf32>
    %87 = arith.mulf %85, %86 : vector<8x8xf32>
    %88 = arith.truncf %87 : vector<8x8xf32> to vector<8x8xbf16>
    %89 = vector.extract_strided_slice %3 {offsets = [0, 56], sizes = [8, 8], strides = [1, 1]} : vector<8x96xf32> to vector<8x8xf32>
    %90 = arith.truncf %89 : vector<8x8xf32> to vector<8x8xbf16>
    %91 = vector.extract_strided_slice %3 {offsets = [0, 88], sizes = [8, 8], strides = [1, 1]} : vector<8x96xf32> to vector<8x8xf32>
    %92 = arith.truncf %91 : vector<8x8xf32> to vector<8x8xbf16>
    %cst_23 = arith.constant dense<0.000000e+00> : vector<8x8xf32>
    %93 = tpu.matmul %88, %90, %cst_23 {dimension_numbers = #tpu.dot_dimension_numbers<[1], [1], [0], [0], [0, 0, 1, 0], [], []>} : vector<8x8xbf16>, vector<8x8xbf16>, vector<8x8xf32> -> vector<8x8xf32>
    %cst_24 = arith.constant -1.000000e+30 : f32
    %94 = vector.broadcast %cst_24 : f32 to vector<8x8xf32>
    %95 = arith.select %9, %93, %94 : vector<8x8xi1>, vector<8x8xf32>
    %cst_25 = arith.constant dense<0xFF800000> : vector<8xf32>
    %96 = vector.multi_reduction <maximumf>, %95, %cst_25 [1] : vector<8x8xf32> to vector<8xf32>
    %97 = vector.shape_cast %96 : vector<8xf32> to vector<8x1xf32>
    %98 = vector.broadcast %97 : vector<8x1xf32> to vector<8x8xf32>
    %99 = arith.subf %95, %98 : vector<8x8xf32>
    %100 = math.exp %99 : vector<8x8xf32>
    %cst_26 = arith.constant dense<0.000000e+00> : vector<8xf32>
    %101 = vector.multi_reduction <add>, %100, %cst_26 [1] : vector<8x8xf32> to vector<8xf32>
    %102 = vector.shape_cast %101 : vector<8xf32> to vector<8x1xf32>
    %cst_27 = arith.constant 1.000000e-30 : f32
    %103 = vector.broadcast %cst_27 : f32 to vector<8x1xf32>
    %104 = arith.maximumf %102, %103 : vector<8x1xf32>
    %105 = tpu.reciprocal %104 {approx = true} : vector<8x1xf32> -> vector<8x1xf32>
    %106 = vector.broadcast %105 : vector<8x1xf32> to vector<8x8xf32>
    %107 = arith.mulf %100, %106 : vector<8x8xf32>
    %108 = arith.truncf %107 : vector<8x8xf32> to vector<8x8xbf16>
    %cst_28 = arith.constant dense<0.000000e+00> : vector<8x8xf32>
    %109 = tpu.matmul %108, %92, %cst_28 {dimension_numbers = #tpu.dot_dimension_numbers<[1], [0], [0], [1], [0, 0, 1, 1], [], []>} : vector<8x8xbf16>, vector<8x8xbf16>, vector<8x8xf32> -> vector<8x8xf32>
    %110 = tpu.concatenate %34, %59, %84, %109 in 1 : vector<8x8xf32>, vector<8x8xf32>, vector<8x8xf32>, vector<8x8xf32> -> vector<8x32xf32>
    %c0_29 = arith.constant 0 : index
    %c0_30 = arith.constant 0 : index
    %c0_31 = arith.constant 0 : index
    %111 = vector.load %arg3[%c0_29, %c0_30, %c0_31] : memref<1x8x32xf32, #tpu.memory_space<vmem>>, vector<1x8x32xf32>
    %112 = vector.shape_cast %111 : vector<1x8x32xf32> to vector<8x32xf32>
    %113 = vector.shape_cast %110 : vector<8x32xf32> to vector<1x8x32xf32>
    tpu.vector_store %arg3[%c0_29, %c0_30, %c0_31], %113 {strides = array<i32>} : memref<1x8x32xf32, #tpu.memory_space<vmem>>, vector<1x8x32xf32>,
    return
  }
  func.func @transform_0(%arg0: i32, %arg1: memref<2xi32, #tpu.memory_space<smem>>) -> (i32, i32, i32) {
    %c0_i32 = arith.constant 0 : i32
    %c0_i32_0 = arith.constant 0 : i32
    %c0_i32_1 = arith.constant 0 : i32
    return %arg0, %c0_i32, %c0_i32_0 : i32, i32, i32
  }
  func.func @transform_1(%arg0: i32, %arg1: memref<2xi32, #tpu.memory_space<smem>>) -> (i32, i32, i32) {
    %c0_i32 = arith.constant 0 : i32
    %c0_i32_0 = arith.constant 0 : i32
    %c0_i32_1 = arith.constant 0 : i32
    return %arg0, %c0_i32, %c0_i32_0 : i32, i32, i32
  }
}

module attributes {stable_mosaic.version = 11 : i64} {
  func.func @_ffn_res_ln_kernel(%arg0: i32, %arg1: memref<16x32xf32, #tpu.memory_space<vmem>>, %arg2: memref<32x64xbf16, #tpu.memory_space<vmem>>, %arg3: memref<1x64xf32, #tpu.memory_space<vmem>>, %arg4: memref<64x32xbf16, #tpu.memory_space<vmem>>, %arg5: memref<1x32xf32, #tpu.memory_space<vmem>>, %arg6: memref<1x32xf32, #tpu.memory_space<vmem>>, %arg7: memref<1x32xf32, #tpu.memory_space<vmem>>, %arg8: memref<16x32xf32, #tpu.memory_space<vmem>>) attributes {dimension_semantics = [#tpu.dimension_semantics<parallel>], iteration_bounds = array<i64: 1>, scalar_prefetch = 0 : i64, scratch_operands = 0 : i64, tpu.core_type = #tpu.core_type<tc>, window_params = [{transform_indices = @transform_0, window_bounds = array<i64: 16, 32>}, {pipeline_mode = #tpu.pipeline_mode<synchronous>, transform_indices = @transform_1, window_bounds = array<i64: 32, 64>}, {pipeline_mode = #tpu.pipeline_mode<synchronous>, transform_indices = @transform_2, window_bounds = array<i64: 1, 64>}, {pipeline_mode = #tpu.pipeline_mode<synchronous>, transform_indices = @transform_3, window_bounds = array<i64: 64, 32>}, {pipeline_mode = #tpu.pipeline_mode<synchronous>, transform_indices = @transform_4, window_bounds = array<i64: 1, 32>}, {pipeline_mode = #tpu.pipeline_mode<synchronous>, transform_indices = @transform_5, window_bounds = array<i64: 1, 32>}, {pipeline_mode = #tpu.pipeline_mode<synchronous>, transform_indices = @transform_6, window_bounds = array<i64: 1, 32>}, {transform_indices = @transform_7, window_bounds = array<i64: 16, 32>}]} {
    %c0 = arith.constant 0 : index
    %c0_0 = arith.constant 0 : index
    %0 = vector.load %arg1[%c0, %c0_0] : memref<16x32xf32, #tpu.memory_space<vmem>>, vector<16x32xf32>
    %1 = arith.truncf %0 : vector<16x32xf32> to vector<16x32xbf16>
    %c0_1 = arith.constant 0 : index
    %c0_2 = arith.constant 0 : index
    %2 = vector.load %arg2[%c0_1, %c0_2] : memref<32x64xbf16, #tpu.memory_space<vmem>>, vector<32x64xbf16>
    %cst = arith.constant dense<0.000000e+00> : vector<16x64xf32>
    %3 = tpu.matmul %1, %2, %cst {dimension_numbers = #tpu.dot_dimension_numbers<[1], [0], [0], [1], [0, 0, 1, 1], [], []>} : vector<16x32xbf16>, vector<32x64xbf16>, vector<16x64xf32> -> vector<16x64xf32>
    %c0_3 = arith.constant 0 : index
    %c0_4 = arith.constant 0 : index
    %4 = vector.load %arg3[%c0_3, %c0_4] : memref<1x64xf32, #tpu.memory_space<vmem>>, vector<1x64xf32>
    %5 = vector.broadcast %4 : vector<1x64xf32> to vector<16x64xf32>
    %6 = arith.addf %3, %5 : vector<16x64xf32>
    %cst_5 = arith.constant 0.000000e+00 : f32
    %7 = vector.broadcast %cst_5 : f32 to vector<16x64xf32>
    %8 = arith.maximumf %6, %7 : vector<16x64xf32>
    %9 = arith.truncf %8 : vector<16x64xf32> to vector<16x64xbf16>
    %c0_6 = arith.constant 0 : index
    %c0_7 = arith.constant 0 : index
    %10 = vector.load %arg4[%c0_6, %c0_7] : memref<64x32xbf16, #tpu.memory_space<vmem>>, vector<64x32xbf16>
    %cst_8 = arith.constant dense<0.000000e+00> : vector<16x32xf32>
    %11 = tpu.matmul %9, %10, %cst_8 {dimension_numbers = #tpu.dot_dimension_numbers<[1], [0], [0], [1], [0, 0, 1, 1], [], []>} : vector<16x64xbf16>, vector<64x32xbf16>, vector<16x32xf32> -> vector<16x32xf32>
    %c0_9 = arith.constant 0 : index
    %c0_10 = arith.constant 0 : index
    %12 = vector.load %arg5[%c0_9, %c0_10] : memref<1x32xf32, #tpu.memory_space<vmem>>, vector<1x32xf32>
    %13 = vector.broadcast %12 : vector<1x32xf32> to vector<16x32xf32>
    %14 = arith.addf %11, %13 : vector<16x32xf32>
    %15 = arith.addf %14, %0 : vector<16x32xf32>
    %cst_11 = arith.constant dense<0.000000e+00> : vector<16xf32>
    %16 = vector.multi_reduction <add>, %15, %cst_11 [1] : vector<16x32xf32> to vector<16xf32>
    %17 = vector.shape_cast %16 : vector<16xf32> to vector<16x1xf32>
    %cst_12 = arith.constant 3.200000e+01 : f32
    %18 = vector.broadcast %cst_12 : f32 to vector<16x1xf32>
    %19 = arith.divf %17, %18 : vector<16x1xf32>
    %20 = vector.broadcast %19 : vector<16x1xf32> to vector<16x32xf32>
    %21 = arith.subf %15, %20 : vector<16x32xf32>
    %22 = arith.mulf %21, %21 : vector<16x32xf32>
    %cst_13 = arith.constant dense<0.000000e+00> : vector<16xf32>
    %23 = vector.multi_reduction <add>, %22, %cst_13 [1] : vector<16x32xf32> to vector<16xf32>
    %24 = vector.shape_cast %23 : vector<16xf32> to vector<16x1xf32>
    %cst_14 = arith.constant 3.200000e+01 : f32
    %25 = vector.broadcast %cst_14 : f32 to vector<16x1xf32>
    %26 = arith.divf %24, %25 : vector<16x1xf32>
    %27 = vector.broadcast %19 : vector<16x1xf32> to vector<16x32xf32>
    %28 = arith.subf %15, %27 : vector<16x32xf32>
    %cst_15 = arith.constant 9.99999974E-6 : f32
    %29 = vector.broadcast %cst_15 : f32 to vector<16x1xf32>
    %30 = arith.addf %26, %29 : vector<16x1xf32>
    %31 = math.rsqrt %30 : vector<16x1xf32>
    %32 = vector.broadcast %31 : vector<16x1xf32> to vector<16x32xf32>
    %33 = arith.mulf %28, %32 : vector<16x32xf32>
    %c0_16 = arith.constant 0 : index
    %c0_17 = arith.constant 0 : index
    %34 = vector.load %arg6[%c0_16, %c0_17] : memref<1x32xf32, #tpu.memory_space<vmem>>, vector<1x32xf32>
    %35 = vector.broadcast %34 : vector<1x32xf32> to vector<16x32xf32>
    %36 = arith.mulf %33, %35 : vector<16x32xf32>
    %c0_18 = arith.constant 0 : index
    %c0_19 = arith.constant 0 : index
    %37 = vector.load %arg7[%c0_18, %c0_19] : memref<1x32xf32, #tpu.memory_space<vmem>>, vector<1x32xf32>
    %38 = vector.broadcast %37 : vector<1x32xf32> to vector<16x32xf32>
    %39 = arith.addf %36, %38 : vector<16x32xf32>
    %c0_20 = arith.constant 0 : index
    %c0_21 = arith.constant 0 : index
    %40 = vector.load %arg8[%c0_20, %c0_21] : memref<16x32xf32, #tpu.memory_space<vmem>>, vector<16x32xf32>
    tpu.vector_store %arg8[%c0_20, %c0_21], %39 {strides = array<i32>} : memref<16x32xf32, #tpu.memory_space<vmem>>, vector<16x32xf32>,
    return
  }
  func.func @transform_0(%arg0: i32) -> (i32, i32) {
    %c0_i32 = arith.constant 0 : i32
    %c0_i32_0 = arith.constant 0 : i32
    return %arg0, %c0_i32 : i32, i32
  }
  func.func @transform_1(%arg0: i32) -> (i32, i32) {
    %c0_i32 = arith.constant 0 : i32
    %c0_i32_0 = arith.constant 0 : i32
    %c0_i32_1 = arith.constant 0 : i32
    return %c0_i32, %c0_i32_0 : i32, i32
  }
  func.func @transform_2(%arg0: i32) -> (i32, i32) {
    %c0_i32 = arith.constant 0 : i32
    %c0_i32_0 = arith.constant 0 : i32
    %c0_i32_1 = arith.constant 0 : i32
    return %c0_i32, %c0_i32_0 : i32, i32
  }
  func.func @transform_3(%arg0: i32) -> (i32, i32) {
    %c0_i32 = arith.constant 0 : i32
    %c0_i32_0 = arith.constant 0 : i32
    %c0_i32_1 = arith.constant 0 : i32
    return %c0_i32, %c0_i32_0 : i32, i32
  }
  func.func @transform_4(%arg0: i32) -> (i32, i32) {
    %c0_i32 = arith.constant 0 : i32
    %c0_i32_0 = arith.constant 0 : i32
    %c0_i32_1 = arith.constant 0 : i32
    return %c0_i32, %c0_i32_0 : i32, i32
  }
  func.func @transform_5(%arg0: i32) -> (i32, i32) {
    %c0_i32 = arith.constant 0 : i32
    %c0_i32_0 = arith.constant 0 : i32
    %c0_i32_1 = arith.constant 0 : i32
    return %c0_i32, %c0_i32_0 : i32, i32
  }
  func.func @transform_6(%arg0: i32) -> (i32, i32) {
    %c0_i32 = arith.constant 0 : i32
    %c0_i32_0 = arith.constant 0 : i32
    %c0_i32_1 = arith.constant 0 : i32
    return %c0_i32, %c0_i32_0 : i32, i32
  }
  func.func @transform_7(%arg0: i32) -> (i32, i32) {
    %c0_i32 = arith.constant 0 : i32
    %c0_i32_0 = arith.constant 0 : i32
    return %arg0, %c0_i32 : i32, i32
  }
}

module attributes {stable_mosaic.version = 11 : i64} {
  func.func @_linear_kernel(%arg0: i32, %arg1: memref<16x32xf32, #tpu.memory_space<vmem>>, %arg2: memref<32x64xbf16, #tpu.memory_space<vmem>>, %arg3: memref<1x64xf32, #tpu.memory_space<vmem>>, %arg4: memref<16x64xf32, #tpu.memory_space<vmem>>) attributes {dimension_semantics = [#tpu.dimension_semantics<parallel>], iteration_bounds = array<i64: 1>, scalar_prefetch = 0 : i64, scratch_operands = 0 : i64, tpu.core_type = #tpu.core_type<tc>, window_params = [{transform_indices = @transform_0, window_bounds = array<i64: 16, 32>}, {pipeline_mode = #tpu.pipeline_mode<synchronous>, transform_indices = @transform_1, window_bounds = array<i64: 32, 64>}, {pipeline_mode = #tpu.pipeline_mode<synchronous>, transform_indices = @transform_2, window_bounds = array<i64: 1, 64>}, {transform_indices = @transform_3, window_bounds = array<i64: 16, 64>}]} {
    %c0 = arith.constant 0 : index
    %c0_0 = arith.constant 0 : index
    %0 = vector.load %arg1[%c0, %c0_0] : memref<16x32xf32, #tpu.memory_space<vmem>>, vector<16x32xf32>
    %1 = arith.truncf %0 : vector<16x32xf32> to vector<16x32xbf16>
    %c0_1 = arith.constant 0 : index
    %c0_2 = arith.constant 0 : index
    %2 = vector.load %arg2[%c0_1, %c0_2] : memref<32x64xbf16, #tpu.memory_space<vmem>>, vector<32x64xbf16>
    %cst = arith.constant dense<0.000000e+00> : vector<16x64xf32>
    %3 = tpu.matmul %1, %2, %cst {dimension_numbers = #tpu.dot_dimension_numbers<[1], [0], [0], [1], [0, 0, 1, 1], [], []>} : vector<16x32xbf16>, vector<32x64xbf16>, vector<16x64xf32> -> vector<16x64xf32>
    %c0_3 = arith.constant 0 : index
    %c0_4 = arith.constant 0 : index
    %4 = vector.load %arg3[%c0_3, %c0_4] : memref<1x64xf32, #tpu.memory_space<vmem>>, vector<1x64xf32>
    %5 = vector.broadcast %4 : vector<1x64xf32> to vector<16x64xf32>
    %6 = arith.addf %3, %5 : vector<16x64xf32>
    %c0_5 = arith.constant 0 : index
    %c0_6 = arith.constant 0 : index
    %7 = vector.load %arg4[%c0_5, %c0_6] : memref<16x64xf32, #tpu.memory_space<vmem>>, vector<16x64xf32>
    tpu.vector_store %arg4[%c0_5, %c0_6], %6 {strides = array<i32>} : memref<16x64xf32, #tpu.memory_space<vmem>>, vector<16x64xf32>,
    return
  }
  func.func @transform_0(%arg0: i32) -> (i32, i32) {
    %c0_i32 = arith.constant 0 : i32
    %c0_i32_0 = arith.constant 0 : i32
    return %arg0, %c0_i32 : i32, i32
  }
  func.func @transform_1(%arg0: i32) -> (i32, i32) {
    %c0_i32 = arith.constant 0 : i32
    %c0_i32_0 = arith.constant 0 : i32
    %c0_i32_1 = arith.constant 0 : i32
    return %c0_i32, %c0_i32_0 : i32, i32
  }
  func.func @transform_2(%arg0: i32) -> (i32, i32) {
    %c0_i32 = arith.constant 0 : i32
    %c0_i32_0 = arith.constant 0 : i32
    %c0_i32_1 = arith.constant 0 : i32
    return %c0_i32, %c0_i32_0 : i32, i32
  }
  func.func @transform_3(%arg0: i32) -> (i32, i32) {
    %c0_i32 = arith.constant 0 : i32
    %c0_i32_0 = arith.constant 0 : i32
    return %arg0, %c0_i32 : i32, i32
  }
}

module attributes {stable_mosaic.version = 11 : i64} {
  func.func @_linear_kernel(%arg0: i32, %arg1: memref<16x32xf32, #tpu.memory_space<vmem>>, %arg2: memref<32x5xbf16, #tpu.memory_space<vmem>>, %arg3: memref<1x5xf32, #tpu.memory_space<vmem>>, %arg4: memref<16x5xf32, #tpu.memory_space<vmem>>) attributes {dimension_semantics = [#tpu.dimension_semantics<parallel>], iteration_bounds = array<i64: 1>, scalar_prefetch = 0 : i64, scratch_operands = 0 : i64, tpu.core_type = #tpu.core_type<tc>, window_params = [{transform_indices = @transform_0, window_bounds = array<i64: 16, 32>}, {pipeline_mode = #tpu.pipeline_mode<synchronous>, transform_indices = @transform_1, window_bounds = array<i64: 32, 5>}, {pipeline_mode = #tpu.pipeline_mode<synchronous>, transform_indices = @transform_2, window_bounds = array<i64: 1, 5>}, {transform_indices = @transform_3, window_bounds = array<i64: 16, 5>}]} {
    %c0 = arith.constant 0 : index
    %c0_0 = arith.constant 0 : index
    %0 = vector.load %arg1[%c0, %c0_0] : memref<16x32xf32, #tpu.memory_space<vmem>>, vector<16x32xf32>
    %1 = arith.truncf %0 : vector<16x32xf32> to vector<16x32xbf16>
    %c0_1 = arith.constant 0 : index
    %c0_2 = arith.constant 0 : index
    %2 = vector.load %arg2[%c0_1, %c0_2] : memref<32x5xbf16, #tpu.memory_space<vmem>>, vector<32x5xbf16>
    %cst = arith.constant dense<0.000000e+00> : vector<16x5xf32>
    %3 = tpu.matmul %1, %2, %cst {dimension_numbers = #tpu.dot_dimension_numbers<[1], [0], [0], [1], [0, 0, 1, 1], [], []>} : vector<16x32xbf16>, vector<32x5xbf16>, vector<16x5xf32> -> vector<16x5xf32>
    %c0_3 = arith.constant 0 : index
    %c0_4 = arith.constant 0 : index
    %4 = vector.load %arg3[%c0_3, %c0_4] : memref<1x5xf32, #tpu.memory_space<vmem>>, vector<1x5xf32>
    %5 = vector.broadcast %4 : vector<1x5xf32> to vector<16x5xf32>
    %6 = arith.addf %3, %5 : vector<16x5xf32>
    %c0_5 = arith.constant 0 : index
    %c0_6 = arith.constant 0 : index
    %7 = vector.load %arg4[%c0_5, %c0_6] : memref<16x5xf32, #tpu.memory_space<vmem>>, vector<16x5xf32>
    tpu.vector_store %arg4[%c0_5, %c0_6], %6 {strides = array<i32>} : memref<16x5xf32, #tpu.memory_space<vmem>>, vector<16x5xf32>,
    return
  }
  func.func @transform_0(%arg0: i32) -> (i32, i32) {
    %c0_i32 = arith.constant 0 : i32
    %c0_i32_0 = arith.constant 0 : i32
    return %arg0, %c0_i32 : i32, i32
  }
  func.func @transform_1(%arg0: i32) -> (i32, i32) {
    %c0_i32 = arith.constant 0 : i32
    %c0_i32_0 = arith.constant 0 : i32
    %c0_i32_1 = arith.constant 0 : i32
    return %c0_i32, %c0_i32_0 : i32, i32
  }
  func.func @transform_2(%arg0: i32) -> (i32, i32) {
    %c0_i32 = arith.constant 0 : i32
    %c0_i32_0 = arith.constant 0 : i32
    %c0_i32_1 = arith.constant 0 : i32
    return %c0_i32, %c0_i32_0 : i32, i32
  }
  func.func @transform_3(%arg0: i32) -> (i32, i32) {
    %c0_i32 = arith.constant 0 : i32
    %c0_i32_0 = arith.constant 0 : i32
    return %arg0, %c0_i32 : i32, i32
  }
}

module attributes {stable_mosaic.version = 11 : i64} {
  func.func @_bilstm_kernel(%arg0: i32, %arg1: memref<8x2x64xf32, #tpu.memory_space<vmem>>, %arg2: memref<8x2x64xf32, #tpu.memory_space<vmem>>, %arg3: memref<16x64xbf16, #tpu.memory_space<vmem>>, %arg4: memref<16x64xbf16, #tpu.memory_space<vmem>>, %arg5: memref<8x2x16xf32, #tpu.memory_space<vmem>>, %arg6: memref<8x2x16xf32, #tpu.memory_space<vmem>>, %arg7: memref<2x2x16xf32, #tpu.memory_space<vmem>>, %arg8: memref<2x2x16xf32, #tpu.memory_space<vmem>>) attributes {dimension_semantics = [#tpu.dimension_semantics<arbitrary>], iteration_bounds = array<i64: 1>, scalar_prefetch = 0 : i64, scratch_operands = 2 : i64, tpu.core_type = #tpu.core_type<tc>, window_params = [{pipeline_mode = #tpu.pipeline_mode<synchronous>, transform_indices = @transform_0, window_bounds = array<i64: 8, 2, 64>}, {pipeline_mode = #tpu.pipeline_mode<synchronous>, transform_indices = @transform_1, window_bounds = array<i64: 8, 2, 64>}, {pipeline_mode = #tpu.pipeline_mode<synchronous>, transform_indices = @transform_2, window_bounds = array<i64: 16, 64>}, {pipeline_mode = #tpu.pipeline_mode<synchronous>, transform_indices = @transform_3, window_bounds = array<i64: 16, 64>}, {pipeline_mode = #tpu.pipeline_mode<synchronous>, transform_indices = @transform_4, window_bounds = array<i64: 8, 2, 16>}, {pipeline_mode = #tpu.pipeline_mode<synchronous>, transform_indices = @transform_5, window_bounds = array<i64: 8, 2, 16>}]} {
    %cst = arith.constant 0.000000e+00 : f32
    %0 = vector.broadcast %cst : f32 to vector<2x2x16xf32>
    %c0 = arith.constant 0 : index
    %c0_0 = arith.constant 0 : index
    %c0_1 = arith.constant 0 : index
    %1 = vector.load %arg7[%c0, %c0_0, %c0_1] : memref<2x2x16xf32, #tpu.memory_space<vmem>>, vector<2x2x16xf32>
    tpu.vector_store %arg7[%c0, %c0_0, %c0_1], %0 {strides = array<i32>} : memref<2x2x16xf32, #tpu.memory_space<vmem>>, vector<2x2x16xf32>,
    %cst_2 = arith.constant 0.000000e+00 : f32
    %2 = vector.broadcast %cst_2 : f32 to vector<2x2x16xf32>
    %c0_3 = arith.constant 0 : index
    %c0_4 = arith.constant 0 : index
    %c0_5 = arith.constant 0 : index
    %3 = vector.load %arg8[%c0_3, %c0_4, %c0_5] : memref<2x2x16xf32, #tpu.memory_space<vmem>>, vector<2x2x16xf32>
    tpu.vector_store %arg8[%c0_3, %c0_4, %c0_5], %2 {strides = array<i32>} : memref<2x2x16xf32, #tpu.memory_space<vmem>>, vector<2x2x16xf32>,
    %c0_6 = arith.constant 0 : index
    %c0_7 = arith.constant 0 : index
    %4 = vector.load %arg3[%c0_6, %c0_7] : memref<16x64xbf16, #tpu.memory_space<vmem>>, vector<16x64xbf16>
    %c0_8 = arith.constant 0 : index
    %c0_9 = arith.constant 0 : index
    %5 = vector.load %arg4[%c0_8, %c0_9] : memref<16x64xbf16, #tpu.memory_space<vmem>>, vector<16x64xbf16>
    %c0_i32 = arith.constant 0 : i32
    %6 = arith.index_cast %c0_i32 : i32 to index
    %c0_10 = arith.constant 0 : index
    %c0_11 = arith.constant 0 : index
    %7 = vector.load %arg1[%6, %c0_10, %c0_11] : memref<8x2x64xf32, #tpu.memory_space<vmem>>, vector<1x2x64xf32>
    %8 = vector.shape_cast %7 : vector<1x2x64xf32> to vector<2x64xf32>
    %c0_12 = arith.constant 0 : index
    %c0_13 = arith.constant 0 : index
    %c0_14 = arith.constant 0 : index
    %9 = vector.load %arg7[%c0_12, %c0_13, %c0_14] : memref<2x2x16xf32, #tpu.memory_space<vmem>>, vector<1x2x16xf32>
    %10 = vector.shape_cast %9 : vector<1x2x16xf32> to vector<2x16xf32>
    %c0_15 = arith.constant 0 : index
    %c0_16 = arith.constant 0 : index
    %c0_17 = arith.constant 0 : index
    %11 = vector.load %arg8[%c0_15, %c0_16, %c0_17] : memref<2x2x16xf32, #tpu.memory_space<vmem>>, vector<1x2x16xf32>
    %12 = vector.shape_cast %11 : vector<1x2x16xf32> to vector<2x16xf32>
    %13 = arith.truncf %10 : vector<2x16xf32> to vector<2x16xbf16>
    %cst_18 = arith.constant dense<0.000000e+00> : vector<2x64xf32>
    %14 = tpu.matmul %13, %4, %cst_18 {dimension_numbers = #tpu.dot_dimension_numbers<[1], [0], [0], [1], [0, 0, 1, 1], [], []>} : vector<2x16xbf16>, vector<16x64xbf16>, vector<2x64xf32> -> vector<2x64xf32>
    %15 = arith.addf %8, %14 : vector<2x64xf32>
    %16 = vector.extract_strided_slice %15 {offsets = [0, 0], sizes = [2, 16], strides = [1, 1]} : vector<2x64xf32> to vector<2x16xf32>
    %cst_19 = arith.constant 0.000000e+00 : f32
    %17 = vector.broadcast %cst_19 : f32 to vector<2x16xf32>
    %18 = arith.subf %17, %16 : vector<2x16xf32>
    %19 = math.exp %18 : vector<2x16xf32>
    %cst_20 = arith.constant 1.000000e+00 : f32
    %20 = vector.broadcast %cst_20 : f32 to vector<2x16xf32>
    %21 = arith.addf %20, %19 : vector<2x16xf32>
    %cst_21 = arith.constant 1.000000e+00 : f32
    %22 = vector.broadcast %cst_21 : f32 to vector<2x16xf32>
    %23 = arith.divf %22, %21 : vector<2x16xf32>
    %24 = vector.extract_strided_slice %15 {offsets = [0, 16], sizes = [2, 16], strides = [1, 1]} : vector<2x64xf32> to vector<2x16xf32>
    %cst_22 = arith.constant 0.000000e+00 : f32
    %25 = vector.broadcast %cst_22 : f32 to vector<2x16xf32>
    %26 = arith.subf %25, %24 : vector<2x16xf32>
    %27 = math.exp %26 : vector<2x16xf32>
    %cst_23 = arith.constant 1.000000e+00 : f32
    %28 = vector.broadcast %cst_23 : f32 to vector<2x16xf32>
    %29 = arith.addf %28, %27 : vector<2x16xf32>
    %cst_24 = arith.constant 1.000000e+00 : f32
    %30 = vector.broadcast %cst_24 : f32 to vector<2x16xf32>
    %31 = arith.divf %30, %29 : vector<2x16xf32>
    %32 = vector.extract_strided_slice %15 {offsets = [0, 32], sizes = [2, 16], strides = [1, 1]} : vector<2x64xf32> to vector<2x16xf32>
    %33 = math.tanh %32 : vector<2x16xf32>
    %34 = vector.extract_strided_slice %15 {offsets = [0, 48], sizes = [2, 16], strides = [1, 1]} : vector<2x64xf32> to vector<2x16xf32>
    %cst_25 = arith.constant 0.000000e+00 : f32
    %35 = vector.broadcast %cst_25 : f32 to vector<2x16xf32>
    %36 = arith.subf %35, %34 : vector<2x16xf32>
    %37 = math.exp %36 : vector<2x16xf32>
    %cst_26 = arith.constant 1.000000e+00 : f32
    %38 = vector.broadcast %cst_26 : f32 to vector<2x16xf32>
    %39 = arith.addf %38, %37 : vector<2x16xf32>
    %cst_27 = arith.constant 1.000000e+00 : f32
    %40 = vector.broadcast %cst_27 : f32 to vector<2x16xf32>
    %41 = arith.divf %40, %39 : vector<2x16xf32>
    %42 = arith.mulf %31, %12 : vector<2x16xf32>
    %43 = arith.mulf %23, %33 : vector<2x16xf32>
    %44 = arith.addf %42, %43 : vector<2x16xf32>
    %45 = math.tanh %44 : vector<2x16xf32>
    %46 = arith.mulf %41, %45 : vector<2x16xf32>
    %c0_28 = arith.constant 0 : index
    %c0_29 = arith.constant 0 : index
    %c0_30 = arith.constant 0 : index
    %47 = vector.load %arg7[%c0_28, %c0_29, %c0_30] : memref<2x2x16xf32, #tpu.memory_space<vmem>>, vector<1x2x16xf32>
    %48 = vector.shape_cast %47 : vector<1x2x16xf32> to vector<2x16xf32>
    %49 = vector.shape_cast %46 : vector<2x16xf32> to vector<1x2x16xf32>
    tpu.vector_store %arg7[%c0_28, %c0_29, %c0_30], %49 {strides = array<i32>} : memref<2x2x16xf32, #tpu.memory_space<vmem>>, vector<1x2x16xf32>,
    %c0_31 = arith.constant 0 : index
    %c0_32 = arith.constant 0 : index
    %c0_33 = arith.constant 0 : index
    %50 = vector.load %arg8[%c0_31, %c0_32, %c0_33] : memref<2x2x16xf32, #tpu.memory_space<vmem>>, vector<1x2x16xf32>
    %51 = vector.shape_cast %50 : vector<1x2x16xf32> to vector<2x16xf32>
    %52 = vector.shape_cast %44 : vector<2x16xf32> to vector<1x2x16xf32>
    tpu.vector_store %arg8[%c0_31, %c0_32, %c0_33], %52 {strides = array<i32>} : memref<2x2x16xf32, #tpu.memory_space<vmem>>, vector<1x2x16xf32>,
    %53 = arith.index_cast %c0_i32 : i32 to index
    %c0_34 = arith.constant 0 : index
    %c0_35 = arith.constant 0 : index
    %54 = vector.load %arg5[%53, %c0_34, %c0_35] : memref<8x2x16xf32, #tpu.memory_space<vmem>>, vector<1x2x16xf32>
    %55 = vector.shape_cast %54 : vector<1x2x16xf32> to vector<2x16xf32>
    %56 = vector.shape_cast %46 : vector<2x16xf32> to vector<1x2x16xf32>
    tpu.vector_store %arg5[%53, %c0_34, %c0_35], %56 {strides = array<i32>} : memref<8x2x16xf32, #tpu.memory_space<vmem>>, vector<1x2x16xf32>,
    %c7_i32 = arith.constant 7 : i32
    %57 = arith.subi %c7_i32, %c0_i32 : i32
    %58 = arith.index_cast %57 : i32 to index
    %c0_36 = arith.constant 0 : index
    %c0_37 = arith.constant 0 : index
    %59 = vector.load %arg2[%58, %c0_36, %c0_37] : memref<8x2x64xf32, #tpu.memory_space<vmem>>, vector<1x2x64xf32>
    %60 = vector.shape_cast %59 : vector<1x2x64xf32> to vector<2x64xf32>
    %c1 = arith.constant 1 : index
    %c0_38 = arith.constant 0 : index
    %c0_39 = arith.constant 0 : index
    %61 = vector.load %arg7[%c1, %c0_38, %c0_39] : memref<2x2x16xf32, #tpu.memory_space<vmem>>, vector<1x2x16xf32>
    %62 = vector.shape_cast %61 : vector<1x2x16xf32> to vector<2x16xf32>
    %c1_40 = arith.constant 1 : index
    %c0_41 = arith.constant 0 : index
    %c0_42 = arith.constant 0 : index
    %63 = vector.load %arg8[%c1_40, %c0_41, %c0_42] : memref<2x2x16xf32, #tpu.memory_space<vmem>>, vector<1x2x16xf32>
    %64 = vector.shape_cast %63 : vector<1x2x16xf32> to vector<2x16xf32>
    %65 = arith.truncf %62 : vector<2x16xf32> to vector<2x16xbf16>
    %cst_43 = arith.constant dense<0.000000e+00> : vector<2x64xf32>
    %66 = tpu.matmul %65, %5, %cst_43 {dimension_numbers = #tpu.dot_dimension_numbers<[1], [0], [0], [1], [0, 0, 1, 1], [], []>} : vector<2x16xbf16>, vector<16x64xbf16>, vector<2x64xf32> -> vector<2x64xf32>
    %67 = arith.addf %60, %66 : vector<2x64xf32>
    %68 = vector.extract_strided_slice %67 {offsets = [0, 0], sizes = [2, 16], strides = [1, 1]} : vector<2x64xf32> to vector<2x16xf32>
    %cst_44 = arith.constant 0.000000e+00 : f32
    %69 = vector.broadcast %cst_44 : f32 to vector<2x16xf32>
    %70 = arith.subf %69, %68 : vector<2x16xf32>
    %71 = math.exp %70 : vector<2x16xf32>
    %cst_45 = arith.constant 1.000000e+00 : f32
    %72 = vector.broadcast %cst_45 : f32 to vector<2x16xf32>
    %73 = arith.addf %72, %71 : vector<2x16xf32>
    %cst_46 = arith.constant 1.000000e+00 : f32
    %74 = vector.broadcast %cst_46 : f32 to vector<2x16xf32>
    %75 = arith.divf %74, %73 : vector<2x16xf32>
    %76 = vector.extract_strided_slice %67 {offsets = [0, 16], sizes = [2, 16], strides = [1, 1]} : vector<2x64xf32> to vector<2x16xf32>
    %cst_47 = arith.constant 0.000000e+00 : f32
    %77 = vector.broadcast %cst_47 : f32 to vector<2x16xf32>
    %78 = arith.subf %77, %76 : vector<2x16xf32>
    %79 = math.exp %78 : vector<2x16xf32>
    %cst_48 = arith.constant 1.000000e+00 : f32
    %80 = vector.broadcast %cst_48 : f32 to vector<2x16xf32>
    %81 = arith.addf %80, %79 : vector<2x16xf32>
    %cst_49 = arith.constant 1.000000e+00 : f32
    %82 = vector.broadcast %cst_49 : f32 to vector<2x16xf32>
    %83 = arith.divf %82, %81 : vector<2x16xf32>
    %84 = vector.extract_strided_slice %67 {offsets = [0, 32], sizes = [2, 16], strides = [1, 1]} : vector<2x64xf32> to vector<2x16xf32>
    %85 = math.tanh %84 : vector<2x16xf32>
    %86 = vector.extract_strided_slice %67 {offsets = [0, 48], sizes = [2, 16], strides = [1, 1]} : vector<2x64xf32> to vector<2x16xf32>
    %cst_50 = arith.constant 0.000000e+00 : f32
    %87 = vector.broadcast %cst_50 : f32 to vector<2x16xf32>
    %88 = arith.subf %87, %86 : vector<2x16xf32>
    %89 = math.exp %88 : vector<2x16xf32>
    %cst_51 = arith.constant 1.000000e+00 : f32
    %90 = vector.broadcast %cst_51 : f32 to vector<2x16xf32>
    %91 = arith.addf %90, %89 : vector<2x16xf32>
    %cst_52 = arith.constant 1.000000e+00 : f32
    %92 = vector.broadcast %cst_52 : f32 to vector<2x16xf32>
    %93 = arith.divf %92, %91 : vector<2x16xf32>
    %94 = arith.mulf %83, %64 : vector<2x16xf32>
    %95 = arith.mulf %75, %85 : vector<2x16xf32>
    %96 = arith.addf %94, %95 : vector<2x16xf32>
    %97 = math.tanh %96 : vector<2x16xf32>
    %98 = arith.mulf %93, %97 : vector<2x16xf32>
    %c1_53 = arith.constant 1 : index
    %c0_54 = arith.constant 0 : index
    %c0_55 = arith.constant 0 : index
    %99 = vector.load %arg7[%c1_53, %c0_54, %c0_55] : memref<2x2x16xf32, #tpu.memory_space<vmem>>, vector<1x2x16xf32>
    %100 = vector.shape_cast %99 : vector<1x2x16xf32> to vector<2x16xf32>
    %101 = vector.shape_cast %98 : vector<2x16xf32> to vector<1x2x16xf32>
    tpu.vector_store %arg7[%c1_53, %c0_54, %c0_55], %101 {strides = array<i32>} : memref<2x2x16xf32, #tpu.memory_space<vmem>>, vector<1x2x16xf32>,
    %c1_56 = arith.constant 1 : index
    %c0_57 = arith.constant 0 : index
    %c0_58 = arith.constant 0 : index
    %102 = vector.load %arg8[%c1_56, %c0_57, %c0_58] : memref<2x2x16xf32, #tpu.memory_space<vmem>>, vector<1x2x16xf32>
    %103 = vector.shape_cast %102 : vector<1x2x16xf32> to vector<2x16xf32>
    %104 = vector.shape_cast %96 : vector<2x16xf32> to vector<1x2x16xf32>
    tpu.vector_store %arg8[%c1_56, %c0_57, %c0_58], %104 {strides = array<i32>} : memref<2x2x16xf32, #tpu.memory_space<vmem>>, vector<1x2x16xf32>,
    %105 = arith.index_cast %57 : i32 to index
    %c0_59 = arith.constant 0 : index
    %c0_60 = arith.constant 0 : index
    %106 = vector.load %arg6[%105, %c0_59, %c0_60] : memref<8x2x16xf32, #tpu.memory_space<vmem>>, vector<1x2x16xf32>
    %107 = vector.shape_cast %106 : vector<1x2x16xf32> to vector<2x16xf32>
    %108 = vector.shape_cast %98 : vector<2x16xf32> to vector<1x2x16xf32>
    tpu.vector_store %arg6[%105, %c0_59, %c0_60], %108 {strides = array<i32>} : memref<8x2x16xf32, #tpu.memory_space<vmem>>, vector<1x2x16xf32>,
    %c1_i32 = arith.constant 1 : i32
    %109 = arith.index_cast %c1_i32 : i32 to index
    %c0_61 = arith.constant 0 : index
    %c0_62 = arith.constant 0 : index
    %110 = vector.load %arg1[%109, %c0_61, %c0_62] : memref<8x2x64xf32, #tpu.memory_space<vmem>>, vector<1x2x64xf32>
    %111 = vector.shape_cast %110 : vector<1x2x64xf32> to vector<2x64xf32>
    %c0_63 = arith.constant 0 : index
    %c0_64 = arith.constant 0 : index
    %c0_65 = arith.constant 0 : index
    %112 = vector.load %arg7[%c0_63, %c0_64, %c0_65] : memref<2x2x16xf32, #tpu.memory_space<vmem>>, vector<1x2x16xf32>
    %113 = vector.shape_cast %112 : vector<1x2x16xf32> to vector<2x16xf32>
    %c0_66 = arith.constant 0 : index
    %c0_67 = arith.constant 0 : index
    %c0_68 = arith.constant 0 : index
    %114 = vector.load %arg8[%c0_66, %c0_67, %c0_68] : memref<2x2x16xf32, #tpu.memory_space<vmem>>, vector<1x2x16xf32>
    %115 = vector.shape_cast %114 : vector<1x2x16xf32> to vector<2x16xf32>
    %116 = arith.truncf %113 : vector<2x16xf32> to vector<2x16xbf16>
    %cst_69 = arith.constant dense<0.000000e+00> : vector<2x64xf32>
    %117 = tpu.matmul %116, %4, %cst_69 {dimension_numbers = #tpu.dot_dimension_numbers<[1], [0], [0], [1], [0, 0, 1, 1], [], []>} : vector<2x16xbf16>, vector<16x64xbf16>, vector<2x64xf32> -> vector<2x64xf32>
    %118 = arith.addf %111, %117 : vector<2x64xf32>
    %119 = vector.extract_strided_slice %118 {offsets = [0, 0], sizes = [2, 16], strides = [1, 1]} : vector<2x64xf32> to vector<2x16xf32>
    %cst_70 = arith.constant 0.000000e+00 : f32
    %120 = vector.broadcast %cst_70 : f32 to vector<2x16xf32>
    %121 = arith.subf %120, %119 : vector<2x16xf32>
    %122 = math.exp %121 : vector<2x16xf32>
    %cst_71 = arith.constant 1.000000e+00 : f32
    %123 = vector.broadcast %cst_71 : f32 to vector<2x16xf32>
    %124 = arith.addf %123, %122 : vector<2x16xf32>
    %cst_72 = arith.constant 1.000000e+00 : f32
    %125 = vector.broadcast %cst_72 : f32 to vector<2x16xf32>
    %126 = arith.divf %125, %124 : vector<2x16xf32>
    %127 = vector.extract_strided_slice %118 {offsets = [0, 16], sizes = [2, 16], strides = [1, 1]} : vector<2x64xf32> to vector<2x16xf32>
    %cst_73 = arith.constant 0.000000e+00 : f32
    %128 = vector.broadcast %cst_73 : f32 to vector<2x16xf32>
    %129 = arith.subf %128, %127 : vector<2x16xf32>
    %130 = math.exp %129 : vector<2x16xf32>
    %cst_74 = arith.constant 1.000000e+00 : f32
    %131 = vector.broadcast %cst_74 : f32 to vector<2x16xf32>
    %132 = arith.addf %131, %130 : vector<2x16xf32>
    %cst_75 = arith.constant 1.000000e+00 : f32
    %133 = vector.broadcast %cst_75 : f32 to vector<2x16xf32>
    %134 = arith.divf %133, %132 : vector<2x16xf32>
    %135 = vector.extract_strided_slice %118 {offsets = [0, 32], sizes = [2, 16], strides = [1, 1]} : vector<2x64xf32> to vector<2x16xf32>
    %136 = math.tanh %135 : vector<2x16xf32>
    %137 = vector.extract_strided_slice %118 {offsets = [0, 48], sizes = [2, 16], strides = [1, 1]} : vector<2x64xf32> to vector<2x16xf32>
    %cst_76 = arith.constant 0.000000e+00 : f32
    %138 = vector.broadcast %cst_76 : f32 to vector<2x16xf32>
    %139 = arith.subf %138, %137 : vector<2x16xf32>
    %140 = math.exp %139 : vector<2x16xf32>
    %cst_77 = arith.constant 1.000000e+00 : f32
    %141 = vector.broadcast %cst_77 : f32 to vector<2x16xf32>
    %142 = arith.addf %141, %140 : vector<2x16xf32>
    %cst_78 = arith.constant 1.000000e+00 : f32
    %143 = vector.broadcast %cst_78 : f32 to vector<2x16xf32>
    %144 = arith.divf %143, %142 : vector<2x16xf32>
    %145 = arith.mulf %134, %115 : vector<2x16xf32>
    %146 = arith.mulf %126, %136 : vector<2x16xf32>
    %147 = arith.addf %145, %146 : vector<2x16xf32>
    %148 = math.tanh %147 : vector<2x16xf32>
    %149 = arith.mulf %144, %148 : vector<2x16xf32>
    %c0_79 = arith.constant 0 : index
    %c0_80 = arith.constant 0 : index
    %c0_81 = arith.constant 0 : index
    %150 = vector.load %arg7[%c0_79, %c0_80, %c0_81] : memref<2x2x16xf32, #tpu.memory_space<vmem>>, vector<1x2x16xf32>
    %151 = vector.shape_cast %150 : vector<1x2x16xf32> to vector<2x16xf32>
    %152 = vector.shape_cast %149 : vector<2x16xf32> to vector<1x2x16xf32>
    tpu.vector_store %arg7[%c0_79, %c0_80, %c0_81], %152 {strides = array<i32>} : memref<2x2x16xf32, #tpu.memory_space<vmem>>, vector<1x2x16xf32>,
    %c0_82 = arith.constant 0 : index
    %c0_83 = arith.constant 0 : index
    %c0_84 = arith.constant 0 : index
    %153 = vector.load %arg8[%c0_82, %c0_83, %c0_84] : memref<2x2x16xf32, #tpu.memory_space<vmem>>, vector<1x2x16xf32>
    %154 = vector.shape_cast %153 : vector<1x2x16xf32> to vector<2x16xf32>
    %155 = vector.shape_cast %147 : vector<2x16xf32> to vector<1x2x16xf32>
    tpu.vector_store %arg8[%c0_82, %c0_83, %c0_84], %155 {strides = array<i32>} : memref<2x2x16xf32, #tpu.memory_space<vmem>>, vector<1x2x16xf32>,
    %156 = arith.index_cast %c1_i32 : i32 to index
    %c0_85 = arith.constant 0 : index
    %c0_86 = arith.constant 0 : index
    %157 = vector.load %arg5[%156, %c0_85, %c0_86] : memref<8x2x16xf32, #tpu.memory_space<vmem>>, vector<1x2x16xf32>
    %158 = vector.shape_cast %157 : vector<1x2x16xf32> to vector<2x16xf32>
    %159 = vector.shape_cast %149 : vector<2x16xf32> to vector<1x2x16xf32>
    tpu.vector_store %arg5[%156, %c0_85, %c0_86], %159 {strides = array<i32>} : memref<8x2x16xf32, #tpu.memory_space<vmem>>, vector<1x2x16xf32>,
    %c7_i32_87 = arith.constant 7 : i32
    %160 = arith.subi %c7_i32_87, %c1_i32 : i32
    %161 = arith.index_cast %160 : i32 to index
    %c0_88 = arith.constant 0 : index
    %c0_89 = arith.constant 0 : index
    %162 = vector.load %arg2[%161, %c0_88, %c0_89] : memref<8x2x64xf32, #tpu.memory_space<vmem>>, vector<1x2x64xf32>
    %163 = vector.shape_cast %162 : vector<1x2x64xf32> to vector<2x64xf32>
    %c1_90 = arith.constant 1 : index
    %c0_91 = arith.constant 0 : index
    %c0_92 = arith.constant 0 : index
    %164 = vector.load %arg7[%c1_90, %c0_91, %c0_92] : memref<2x2x16xf32, #tpu.memory_space<vmem>>, vector<1x2x16xf32>
    %165 = vector.shape_cast %164 : vector<1x2x16xf32> to vector<2x16xf32>
    %c1_93 = arith.constant 1 : index
    %c0_94 = arith.constant 0 : index
    %c0_95 = arith.constant 0 : index
    %166 = vector.load %arg8[%c1_93, %c0_94, %c0_95] : memref<2x2x16xf32, #tpu.memory_space<vmem>>, vector<1x2x16xf32>
    %167 = vector.shape_cast %166 : vector<1x2x16xf32> to vector<2x16xf32>
    %168 = arith.truncf %165 : vector<2x16xf32> to vector<2x16xbf16>
    %cst_96 = arith.constant dense<0.000000e+00> : vector<2x64xf32>
    %169 = tpu.matmul %168, %5, %cst_96 {dimension_numbers = #tpu.dot_dimension_numbers<[1], [0], [0], [1], [0, 0, 1, 1], [], []>} : vector<2x16xbf16>, vector<16x64xbf16>, vector<2x64xf32> -> vector<2x64xf32>
    %170 = arith.addf %163, %169 : vector<2x64xf32>
    %171 = vector.extract_strided_slice %170 {offsets = [0, 0], sizes = [2, 16], strides = [1, 1]} : vector<2x64xf32> to vector<2x16xf32>
    %cst_97 = arith.constant 0.000000e+00 : f32
    %172 = vector.broadcast %cst_97 : f32 to vector<2x16xf32>
    %173 = arith.subf %172, %171 : vector<2x16xf32>
    %174 = math.exp %173 : vector<2x16xf32>
    %cst_98 = arith.constant 1.000000e+00 : f32
    %175 = vector.broadcast %cst_98 : f32 to vector<2x16xf32>
    %176 = arith.addf %175, %174 : vector<2x16xf32>
    %cst_99 = arith.constant 1.000000e+00 : f32
    %177 = vector.broadcast %cst_99 : f32 to vector<2x16xf32>
    %178 = arith.divf %177, %176 : vector<2x16xf32>
    %179 = vector.extract_strided_slice %170 {offsets = [0, 16], sizes = [2, 16], strides = [1, 1]} : vector<2x64xf32> to vector<2x16xf32>
    %cst_100 = arith.constant 0.000000e+00 : f32
    %180 = vector.broadcast %cst_100 : f32 to vector<2x16xf32>
    %181 = arith.subf %180, %179 : vector<2x16xf32>
    %182 = math.exp %181 : vector<2x16xf32>
    %cst_101 = arith.constant 1.000000e+00 : f32
    %183 = vector.broadcast %cst_101 : f32 to vector<2x16xf32>
    %184 = arith.addf %183, %182 : vector<2x16xf32>
    %cst_102 = arith.constant 1.000000e+00 : f32
    %185 = vector.broadcast %cst_102 : f32 to vector<2x16xf32>
    %186 = arith.divf %185, %184 : vector<2x16xf32>
    %187 = vector.extract_strided_slice %170 {offsets = [0, 32], sizes = [2, 16], strides = [1, 1]} : vector<2x64xf32> to vector<2x16xf32>
    %188 = math.tanh %187 : vector<2x16xf32>
    %189 = vector.extract_strided_slice %170 {offsets = [0, 48], sizes = [2, 16], strides = [1, 1]} : vector<2x64xf32> to vector<2x16xf32>
    %cst_103 = arith.constant 0.000000e+00 : f32
    %190 = vector.broadcast %cst_103 : f32 to vector<2x16xf32>
    %191 = arith.subf %190, %189 : vector<2x16xf32>
    %192 = math.exp %191 : vector<2x16xf32>
    %cst_104 = arith.constant 1.000000e+00 : f32
    %193 = vector.broadcast %cst_104 : f32 to vector<2x16xf32>
    %194 = arith.addf %193, %192 : vector<2x16xf32>
    %cst_105 = arith.constant 1.000000e+00 : f32
    %195 = vector.broadcast %cst_105 : f32 to vector<2x16xf32>
    %196 = arith.divf %195, %194 : vector<2x16xf32>
    %197 = arith.mulf %186, %167 : vector<2x16xf32>
    %198 = arith.mulf %178, %188 : vector<2x16xf32>
    %199 = arith.addf %197, %198 : vector<2x16xf32>
    %200 = math.tanh %199 : vector<2x16xf32>
    %201 = arith.mulf %196, %200 : vector<2x16xf32>
    %c1_106 = arith.constant 1 : index
    %c0_107 = arith.constant 0 : index
    %c0_108 = arith.constant 0 : index
    %202 = vector.load %arg7[%c1_106, %c0_107, %c0_108] : memref<2x2x16xf32, #tpu.memory_space<vmem>>, vector<1x2x16xf32>
    %203 = vector.shape_cast %202 : vector<1x2x16xf32> to vector<2x16xf32>
    %204 = vector.shape_cast %201 : vector<2x16xf32> to vector<1x2x16xf32>
    tpu.vector_store %arg7[%c1_106, %c0_107, %c0_108], %204 {strides = array<i32>} : memref<2x2x16xf32, #tpu.memory_space<vmem>>, vector<1x2x16xf32>,
    %c1_109 = arith.constant 1 : index
    %c0_110 = arith.constant 0 : index
    %c0_111 = arith.constant 0 : index
    %205 = vector.load %arg8[%c1_109, %c0_110, %c0_111] : memref<2x2x16xf32, #tpu.memory_space<vmem>>, vector<1x2x16xf32>
    %206 = vector.shape_cast %205 : vector<1x2x16xf32> to vector<2x16xf32>
    %207 = vector.shape_cast %199 : vector<2x16xf32> to vector<1x2x16xf32>
    tpu.vector_store %arg8[%c1_109, %c0_110, %c0_111], %207 {strides = array<i32>} : memref<2x2x16xf32, #tpu.memory_space<vmem>>, vector<1x2x16xf32>,
    %208 = arith.index_cast %160 : i32 to index
    %c0_112 = arith.constant 0 : index
    %c0_113 = arith.constant 0 : index
    %209 = vector.load %arg6[%208, %c0_112, %c0_113] : memref<8x2x16xf32, #tpu.memory_space<vmem>>, vector<1x2x16xf32>
    %210 = vector.shape_cast %209 : vector<1x2x16xf32> to vector<2x16xf32>
    %211 = vector.shape_cast %201 : vector<2x16xf32> to vector<1x2x16xf32>
    tpu.vector_store %arg6[%208, %c0_112, %c0_113], %211 {strides = array<i32>} : memref<8x2x16xf32, #tpu.memory_space<vmem>>, vector<1x2x16xf32>,
    %c2_i32 = arith.constant 2 : i32
    %212 = arith.index_cast %c2_i32 : i32 to index
    %c0_114 = arith.constant 0 : index
    %c0_115 = arith.constant 0 : index
    %213 = vector.load %arg1[%212, %c0_114, %c0_115] : memref<8x2x64xf32, #tpu.memory_space<vmem>>, vector<1x2x64xf32>
    %214 = vector.shape_cast %213 : vector<1x2x64xf32> to vector<2x64xf32>
    %c0_116 = arith.constant 0 : index
    %c0_117 = arith.constant 0 : index
    %c0_118 = arith.constant 0 : index
    %215 = vector.load %arg7[%c0_116, %c0_117, %c0_118] : memref<2x2x16xf32, #tpu.memory_space<vmem>>, vector<1x2x16xf32>
    %216 = vector.shape_cast %215 : vector<1x2x16xf32> to vector<2x16xf32>
    %c0_119 = arith.constant 0 : index
    %c0_120 = arith.constant 0 : index
    %c0_121 = arith.constant 0 : index
    %217 = vector.load %arg8[%c0_119, %c0_120, %c0_121] : memref<2x2x16xf32, #tpu.memory_space<vmem>>, vector<1x2x16xf32>
    %218 = vector.shape_cast %217 : vector<1x2x16xf32> to vector<2x16xf32>
    %219 = arith.truncf %216 : vector<2x16xf32> to vector<2x16xbf16>
    %cst_122 = arith.constant dense<0.000000e+00> : vector<2x64xf32>
    %220 = tpu.matmul %219, %4, %cst_122 {dimension_numbers = #tpu.dot_dimension_numbers<[1], [0], [0], [1], [0, 0, 1, 1], [], []>} : vector<2x16xbf16>, vector<16x64xbf16>, vector<2x64xf32> -> vector<2x64xf32>
    %221 = arith.addf %214, %220 : vector<2x64xf32>
    %222 = vector.extract_strided_slice %221 {offsets = [0, 0], sizes = [2, 16], strides = [1, 1]} : vector<2x64xf32> to vector<2x16xf32>
    %cst_123 = arith.constant 0.000000e+00 : f32
    %223 = vector.broadcast %cst_123 : f32 to vector<2x16xf32>
    %224 = arith.subf %223, %222 : vector<2x16xf32>
    %225 = math.exp %224 : vector<2x16xf32>
    %cst_124 = arith.constant 1.000000e+00 : f32
    %226 = vector.broadcast %cst_124 : f32 to vector<2x16xf32>
    %227 = arith.addf %226, %225 : vector<2x16xf32>
    %cst_125 = arith.constant 1.000000e+00 : f32
    %228 = vector.broadcast %cst_125 : f32 to vector<2x16xf32>
    %229 = arith.divf %228, %227 : vector<2x16xf32>
    %230 = vector.extract_strided_slice %221 {offsets = [0, 16], sizes = [2, 16], strides = [1, 1]} : vector<2x64xf32> to vector<2x16xf32>
    %cst_126 = arith.constant 0.000000e+00 : f32
    %231 = vector.broadcast %cst_126 : f32 to vector<2x16xf32>
    %232 = arith.subf %231, %230 : vector<2x16xf32>
    %233 = math.exp %232 : vector<2x16xf32>
    %cst_127 = arith.constant 1.000000e+00 : f32
    %234 = vector.broadcast %cst_127 : f32 to vector<2x16xf32>
    %235 = arith.addf %234, %233 : vector<2x16xf32>
    %cst_128 = arith.constant 1.000000e+00 : f32
    %236 = vector.broadcast %cst_128 : f32 to vector<2x16xf32>
    %237 = arith.divf %236, %235 : vector<2x16xf32>
    %238 = vector.extract_strided_slice %221 {offsets = [0, 32], sizes = [2, 16], strides = [1, 1]} : vector<2x64xf32> to vector<2x16xf32>
    %239 = math.tanh %238 : vector<2x16xf32>
    %240 = vector.extract_strided_slice %221 {offsets = [0, 48], sizes = [2, 16], strides = [1, 1]} : vector<2x64xf32> to vector<2x16xf32>
    %cst_129 = arith.constant 0.000000e+00 : f32
    %241 = vector.broadcast %cst_129 : f32 to vector<2x16xf32>
    %242 = arith.subf %241, %240 : vector<2x16xf32>
    %243 = math.exp %242 : vector<2x16xf32>
    %cst_130 = arith.constant 1.000000e+00 : f32
    %244 = vector.broadcast %cst_130 : f32 to vector<2x16xf32>
    %245 = arith.addf %244, %243 : vector<2x16xf32>
    %cst_131 = arith.constant 1.000000e+00 : f32
    %246 = vector.broadcast %cst_131 : f32 to vector<2x16xf32>
    %247 = arith.divf %246, %245 : vector<2x16xf32>
    %248 = arith.mulf %237, %218 : vector<2x16xf32>
    %249 = arith.mulf %229, %239 : vector<2x16xf32>
    %250 = arith.addf %248, %249 : vector<2x16xf32>
    %251 = math.tanh %250 : vector<2x16xf32>
    %252 = arith.mulf %247, %251 : vector<2x16xf32>
    %c0_132 = arith.constant 0 : index
    %c0_133 = arith.constant 0 : index
    %c0_134 = arith.constant 0 : index
    %253 = vector.load %arg7[%c0_132, %c0_133, %c0_134] : memref<2x2x16xf32, #tpu.memory_space<vmem>>, vector<1x2x16xf32>
    %254 = vector.shape_cast %253 : vector<1x2x16xf32> to vector<2x16xf32>
    %255 = vector.shape_cast %252 : vector<2x16xf32> to vector<1x2x16xf32>
    tpu.vector_store %arg7[%c0_132, %c0_133, %c0_134], %255 {strides = array<i32>} : memref<2x2x16xf32, #tpu.memory_space<vmem>>, vector<1x2x16xf32>,
    %c0_135 = arith.constant 0 : index
    %c0_136 = arith.constant 0 : index
    %c0_137 = arith.constant 0 : index
    %256 = vector.load %arg8[%c0_135, %c0_136, %c0_137] : memref<2x2x16xf32, #tpu.memory_space<vmem>>, vector<1x2x16xf32>
    %257 = vector.shape_cast %256 : vector<1x2x16xf32> to vector<2x16xf32>
    %258 = vector.shape_cast %250 : vector<2x16xf32> to vector<1x2x16xf32>
    tpu.vector_store %arg8[%c0_135, %c0_136, %c0_137], %258 {strides = array<i32>} : memref<2x2x16xf32, #tpu.memory_space<vmem>>, vector<1x2x16xf32>,
    %259 = arith.index_cast %c2_i32 : i32 to index
    %c0_138 = arith.constant 0 : index
    %c0_139 = arith.constant 0 : index
    %260 = vector.load %arg5[%259, %c0_138, %c0_139] : memref<8x2x16xf32, #tpu.memory_space<vmem>>, vector<1x2x16xf32>
    %261 = vector.shape_cast %260 : vector<1x2x16xf32> to vector<2x16xf32>
    %262 = vector.shape_cast %252 : vector<2x16xf32> to vector<1x2x16xf32>
    tpu.vector_store %arg5[%259, %c0_138, %c0_139], %262 {strides = array<i32>} : memref<8x2x16xf32, #tpu.memory_space<vmem>>, vector<1x2x16xf32>,
    %c7_i32_140 = arith.constant 7 : i32
    %263 = arith.subi %c7_i32_140, %c2_i32 : i32
    %264 = arith.index_cast %263 : i32 to index
    %c0_141 = arith.constant 0 : index
    %c0_142 = arith.constant 0 : index
    %265 = vector.load %arg2[%264, %c0_141, %c0_142] : memref<8x2x64xf32, #tpu.memory_space<vmem>>, vector<1x2x64xf32>
    %266 = vector.shape_cast %265 : vector<1x2x64xf32> to vector<2x64xf32>
    %c1_143 = arith.constant 1 : index
    %c0_144 = arith.constant 0 : index
    %c0_145 = arith.constant 0 : index
    %267 = vector.load %arg7[%c1_143, %c0_144, %c0_145] : memref<2x2x16xf32, #tpu.memory_space<vmem>>, vector<1x2x16xf32>
    %268 = vector.shape_cast %267 : vector<1x2x16xf32> to vector<2x16xf32>
    %c1_146 = arith.constant 1 : index
    %c0_147 = arith.constant 0 : index
    %c0_148 = arith.constant 0 : index
    %269 = vector.load %arg8[%c1_146, %c0_147, %c0_148] : memref<2x2x16xf32, #tpu.memory_space<vmem>>, vector<1x2x16xf32>
    %270 = vector.shape_cast %269 : vector<1x2x16xf32> to vector<2x16xf32>
    %271 = arith.truncf %268 : vector<2x16xf32> to vector<2x16xbf16>
    %cst_149 = arith.constant dense<0.000000e+00> : vector<2x64xf32>
    %272 = tpu.matmul %271, %5, %cst_149 {dimension_numbers = #tpu.dot_dimension_numbers<[1], [0], [0], [1], [0, 0, 1, 1], [], []>} : vector<2x16xbf16>, vector<16x64xbf16>, vector<2x64xf32> -> vector<2x64xf32>
    %273 = arith.addf %266, %272 : vector<2x64xf32>
    %274 = vector.extract_strided_slice %273 {offsets = [0, 0], sizes = [2, 16], strides = [1, 1]} : vector<2x64xf32> to vector<2x16xf32>
    %cst_150 = arith.constant 0.000000e+00 : f32
    %275 = vector.broadcast %cst_150 : f32 to vector<2x16xf32>
    %276 = arith.subf %275, %274 : vector<2x16xf32>
    %277 = math.exp %276 : vector<2x16xf32>
    %cst_151 = arith.constant 1.000000e+00 : f32
    %278 = vector.broadcast %cst_151 : f32 to vector<2x16xf32>
    %279 = arith.addf %278, %277 : vector<2x16xf32>
    %cst_152 = arith.constant 1.000000e+00 : f32
    %280 = vector.broadcast %cst_152 : f32 to vector<2x16xf32>
    %281 = arith.divf %280, %279 : vector<2x16xf32>
    %282 = vector.extract_strided_slice %273 {offsets = [0, 16], sizes = [2, 16], strides = [1, 1]} : vector<2x64xf32> to vector<2x16xf32>
    %cst_153 = arith.constant 0.000000e+00 : f32
    %283 = vector.broadcast %cst_153 : f32 to vector<2x16xf32>
    %284 = arith.subf %283, %282 : vector<2x16xf32>
    %285 = math.exp %284 : vector<2x16xf32>
    %cst_154 = arith.constant 1.000000e+00 : f32
    %286 = vector.broadcast %cst_154 : f32 to vector<2x16xf32>
    %287 = arith.addf %286, %285 : vector<2x16xf32>
    %cst_155 = arith.constant 1.000000e+00 : f32
    %288 = vector.broadcast %cst_155 : f32 to vector<2x16xf32>
    %289 = arith.divf %288, %287 : vector<2x16xf32>
    %290 = vector.extract_strided_slice %273 {offsets = [0, 32], sizes = [2, 16], strides = [1, 1]} : vector<2x64xf32> to vector<2x16xf32>
    %291 = math.tanh %290 : vector<2x16xf32>
    %292 = vector.extract_strided_slice %273 {offsets = [0, 48], sizes = [2, 16], strides = [1, 1]} : vector<2x64xf32> to vector<2x16xf32>
    %cst_156 = arith.constant 0.000000e+00 : f32
    %293 = vector.broadcast %cst_156 : f32 to vector<2x16xf32>
    %294 = arith.subf %293, %292 : vector<2x16xf32>
    %295 = math.exp %294 : vector<2x16xf32>
    %cst_157 = arith.constant 1.000000e+00 : f32
    %296 = vector.broadcast %cst_157 : f32 to vector<2x16xf32>
    %297 = arith.addf %296, %295 : vector<2x16xf32>
    %cst_158 = arith.constant 1.000000e+00 : f32
    %298 = vector.broadcast %cst_158 : f32 to vector<2x16xf32>
    %299 = arith.divf %298, %297 : vector<2x16xf32>
    %300 = arith.mulf %289, %270 : vector<2x16xf32>
    %301 = arith.mulf %281, %291 : vector<2x16xf32>
    %302 = arith.addf %300, %301 : vector<2x16xf32>
    %303 = math.tanh %302 : vector<2x16xf32>
    %304 = arith.mulf %299, %303 : vector<2x16xf32>
    %c1_159 = arith.constant 1 : index
    %c0_160 = arith.constant 0 : index
    %c0_161 = arith.constant 0 : index
    %305 = vector.load %arg7[%c1_159, %c0_160, %c0_161] : memref<2x2x16xf32, #tpu.memory_space<vmem>>, vector<1x2x16xf32>
    %306 = vector.shape_cast %305 : vector<1x2x16xf32> to vector<2x16xf32>
    %307 = vector.shape_cast %304 : vector<2x16xf32> to vector<1x2x16xf32>
    tpu.vector_store %arg7[%c1_159, %c0_160, %c0_161], %307 {strides = array<i32>} : memref<2x2x16xf32, #tpu.memory_space<vmem>>, vector<1x2x16xf32>,
    %c1_162 = arith.constant 1 : index
    %c0_163 = arith.constant 0 : index
    %c0_164 = arith.constant 0 : index
    %308 = vector.load %arg8[%c1_162, %c0_163, %c0_164] : memref<2x2x16xf32, #tpu.memory_space<vmem>>, vector<1x2x16xf32>
    %309 = vector.shape_cast %308 : vector<1x2x16xf32> to vector<2x16xf32>
    %310 = vector.shape_cast %302 : vector<2x16xf32> to vector<1x2x16xf32>
    tpu.vector_store %arg8[%c1_162, %c0_163, %c0_164], %310 {strides = array<i32>} : memref<2x2x16xf32, #tpu.memory_space<vmem>>, vector<1x2x16xf32>,
    %311 = arith.index_cast %263 : i32 to index
    %c0_165 = arith.constant 0 : index
    %c0_166 = arith.constant 0 : index
    %312 = vector.load %arg6[%311, %c0_165, %c0_166] : memref<8x2x16xf32, #tpu.memory_space<vmem>>, vector<1x2x16xf32>
    %313 = vector.shape_cast %312 : vector<1x2x16xf32> to vector<2x16xf32>
    %314 = vector.shape_cast %304 : vector<2x16xf32> to vector<1x2x16xf32>
    tpu.vector_store %arg6[%311, %c0_165, %c0_166], %314 {strides = array<i32>} : memref<8x2x16xf32, #tpu.memory_space<vmem>>, vector<1x2x16xf32>,
    %c3_i32 = arith.constant 3 : i32
    %315 = arith.index_cast %c3_i32 : i32 to index
    %c0_167 = arith.constant 0 : index
    %c0_168 = arith.constant 0 : index
    %316 = vector.load %arg1[%315, %c0_167, %c0_168] : memref<8x2x64xf32, #tpu.memory_space<vmem>>, vector<1x2x64xf32>
    %317 = vector.shape_cast %316 : vector<1x2x64xf32> to vector<2x64xf32>
    %c0_169 = arith.constant 0 : index
    %c0_170 = arith.constant 0 : index
    %c0_171 = arith.constant 0 : index
    %318 = vector.load %arg7[%c0_169, %c0_170, %c0_171] : memref<2x2x16xf32, #tpu.memory_space<vmem>>, vector<1x2x16xf32>
    %319 = vector.shape_cast %318 : vector<1x2x16xf32> to vector<2x16xf32>
    %c0_172 = arith.constant 0 : index
    %c0_173 = arith.constant 0 : index
    %c0_174 = arith.constant 0 : index
    %320 = vector.load %arg8[%c0_172, %c0_173, %c0_174] : memref<2x2x16xf32, #tpu.memory_space<vmem>>, vector<1x2x16xf32>
    %321 = vector.shape_cast %320 : vector<1x2x16xf32> to vector<2x16xf32>
    %322 = arith.truncf %319 : vector<2x16xf32> to vector<2x16xbf16>
    %cst_175 = arith.constant dense<0.000000e+00> : vector<2x64xf32>
    %323 = tpu.matmul %322, %4, %cst_175 {dimension_numbers = #tpu.dot_dimension_numbers<[1], [0], [0], [1], [0, 0, 1, 1], [], []>} : vector<2x16xbf16>, vector<16x64xbf16>, vector<2x64xf32> -> vector<2x64xf32>
    %324 = arith.addf %317, %323 : vector<2x64xf32>
    %325 = vector.extract_strided_slice %324 {offsets = [0, 0], sizes = [2, 16], strides = [1, 1]} : vector<2x64xf32> to vector<2x16xf32>
    %cst_176 = arith.constant 0.000000e+00 : f32
    %326 = vector.broadcast %cst_176 : f32 to vector<2x16xf32>
    %327 = arith.subf %326, %325 : vector<2x16xf32>
    %328 = math.exp %327 : vector<2x16xf32>
    %cst_177 = arith.constant 1.000000e+00 : f32
    %329 = vector.broadcast %cst_177 : f32 to vector<2x16xf32>
    %330 = arith.addf %329, %328 : vector<2x16xf32>
    %cst_178 = arith.constant 1.000000e+00 : f32
    %331 = vector.broadcast %cst_178 : f32 to vector<2x16xf32>
    %332 = arith.divf %331, %330 : vector<2x16xf32>
    %333 = vector.extract_strided_slice %324 {offsets = [0, 16], sizes = [2, 16], strides = [1, 1]} : vector<2x64xf32> to vector<2x16xf32>
    %cst_179 = arith.constant 0.000000e+00 : f32
    %334 = vector.broadcast %cst_179 : f32 to vector<2x16xf32>
    %335 = arith.subf %334, %333 : vector<2x16xf32>
    %336 = math.exp %335 : vector<2x16xf32>
    %cst_180 = arith.constant 1.000000e+00 : f32
    %337 = vector.broadcast %cst_180 : f32 to vector<2x16xf32>
    %338 = arith.addf %337, %336 : vector<2x16xf32>
    %cst_181 = arith.constant 1.000000e+00 : f32
    %339 = vector.broadcast %cst_181 : f32 to vector<2x16xf32>
    %340 = arith.divf %339, %338 : vector<2x16xf32>
    %341 = vector.extract_strided_slice %324 {offsets = [0, 32], sizes = [2, 16], strides = [1, 1]} : vector<2x64xf32> to vector<2x16xf32>
    %342 = math.tanh %341 : vector<2x16xf32>
    %343 = vector.extract_strided_slice %324 {offsets = [0, 48], sizes = [2, 16], strides = [1, 1]} : vector<2x64xf32> to vector<2x16xf32>
    %cst_182 = arith.constant 0.000000e+00 : f32
    %344 = vector.broadcast %cst_182 : f32 to vector<2x16xf32>
    %345 = arith.subf %344, %343 : vector<2x16xf32>
    %346 = math.exp %345 : vector<2x16xf32>
    %cst_183 = arith.constant 1.000000e+00 : f32
    %347 = vector.broadcast %cst_183 : f32 to vector<2x16xf32>
    %348 = arith.addf %347, %346 : vector<2x16xf32>
    %cst_184 = arith.constant 1.000000e+00 : f32
    %349 = vector.broadcast %cst_184 : f32 to vector<2x16xf32>
    %350 = arith.divf %349, %348 : vector<2x16xf32>
    %351 = arith.mulf %340, %321 : vector<2x16xf32>
    %352 = arith.mulf %332, %342 : vector<2x16xf32>
    %353 = arith.addf %351, %352 : vector<2x16xf32>
    %354 = math.tanh %353 : vector<2x16xf32>
    %355 = arith.mulf %350, %354 : vector<2x16xf32>
    %c0_185 = arith.constant 0 : index
    %c0_186 = arith.constant 0 : index
    %c0_187 = arith.constant 0 : index
    %356 = vector.load %arg7[%c0_185, %c0_186, %c0_187] : memref<2x2x16xf32, #tpu.memory_space<vmem>>, vector<1x2x16xf32>
    %357 = vector.shape_cast %356 : vector<1x2x16xf32> to vector<2x16xf32>
    %358 = vector.shape_cast %355 : vector<2x16xf32> to vector<1x2x16xf32>
    tpu.vector_store %arg7[%c0_185, %c0_186, %c0_187], %358 {strides = array<i32>} : memref<2x2x16xf32, #tpu.memory_space<vmem>>, vector<1x2x16xf32>,
    %c0_188 = arith.constant 0 : index
    %c0_189 = arith.constant 0 : index
    %c0_190 = arith.constant 0 : index
    %359 = vector.load %arg8[%c0_188, %c0_189, %c0_190] : memref<2x2x16xf32, #tpu.memory_space<vmem>>, vector<1x2x16xf32>
    %360 = vector.shape_cast %359 : vector<1x2x16xf32> to vector<2x16xf32>
    %361 = vector.shape_cast %353 : vector<2x16xf32> to vector<1x2x16xf32>
    tpu.vector_store %arg8[%c0_188, %c0_189, %c0_190], %361 {strides = array<i32>} : memref<2x2x16xf32, #tpu.memory_space<vmem>>, vector<1x2x16xf32>,
    %362 = arith.index_cast %c3_i32 : i32 to index
    %c0_191 = arith.constant 0 : index
    %c0_192 = arith.constant 0 : index
    %363 = vector.load %arg5[%362, %c0_191, %c0_192] : memref<8x2x16xf32, #tpu.memory_space<vmem>>, vector<1x2x16xf32>
    %364 = vector.shape_cast %363 : vector<1x2x16xf32> to vector<2x16xf32>
    %365 = vector.shape_cast %355 : vector<2x16xf32> to vector<1x2x16xf32>
    tpu.vector_store %arg5[%362, %c0_191, %c0_192], %365 {strides = array<i32>} : memref<8x2x16xf32, #tpu.memory_space<vmem>>, vector<1x2x16xf32>,
    %c7_i32_193 = arith.constant 7 : i32
    %366 = arith.subi %c7_i32_193, %c3_i32 : i32
    %367 = arith.index_cast %366 : i32 to index
    %c0_194 = arith.constant 0 : index
    %c0_195 = arith.constant 0 : index
    %368 = vector.load %arg2[%367, %c0_194, %c0_195] : memref<8x2x64xf32, #tpu.memory_space<vmem>>, vector<1x2x64xf32>
    %369 = vector.shape_cast %368 : vector<1x2x64xf32> to vector<2x64xf32>
    %c1_196 = arith.constant 1 : index
    %c0_197 = arith.constant 0 : index
    %c0_198 = arith.constant 0 : index
    %370 = vector.load %arg7[%c1_196, %c0_197, %c0_198] : memref<2x2x16xf32, #tpu.memory_space<vmem>>, vector<1x2x16xf32>
    %371 = vector.shape_cast %370 : vector<1x2x16xf32> to vector<2x16xf32>
    %c1_199 = arith.constant 1 : index
    %c0_200 = arith.constant 0 : index
    %c0_201 = arith.constant 0 : index
    %372 = vector.load %arg8[%c1_199, %c0_200, %c0_201] : memref<2x2x16xf32, #tpu.memory_space<vmem>>, vector<1x2x16xf32>
    %373 = vector.shape_cast %372 : vector<1x2x16xf32> to vector<2x16xf32>
    %374 = arith.truncf %371 : vector<2x16xf32> to vector<2x16xbf16>
    %cst_202 = arith.constant dense<0.000000e+00> : vector<2x64xf32>
    %375 = tpu.matmul %374, %5, %cst_202 {dimension_numbers = #tpu.dot_dimension_numbers<[1], [0], [0], [1], [0, 0, 1, 1], [], []>} : vector<2x16xbf16>, vector<16x64xbf16>, vector<2x64xf32> -> vector<2x64xf32>
    %376 = arith.addf %369, %375 : vector<2x64xf32>
    %377 = vector.extract_strided_slice %376 {offsets = [0, 0], sizes = [2, 16], strides = [1, 1]} : vector<2x64xf32> to vector<2x16xf32>
    %cst_203 = arith.constant 0.000000e+00 : f32
    %378 = vector.broadcast %cst_203 : f32 to vector<2x16xf32>
    %379 = arith.subf %378, %377 : vector<2x16xf32>
    %380 = math.exp %379 : vector<2x16xf32>
    %cst_204 = arith.constant 1.000000e+00 : f32
    %381 = vector.broadcast %cst_204 : f32 to vector<2x16xf32>
    %382 = arith.addf %381, %380 : vector<2x16xf32>
    %cst_205 = arith.constant 1.000000e+00 : f32
    %383 = vector.broadcast %cst_205 : f32 to vector<2x16xf32>
    %384 = arith.divf %383, %382 : vector<2x16xf32>
    %385 = vector.extract_strided_slice %376 {offsets = [0, 16], sizes = [2, 16], strides = [1, 1]} : vector<2x64xf32> to vector<2x16xf32>
    %cst_206 = arith.constant 0.000000e+00 : f32
    %386 = vector.broadcast %cst_206 : f32 to vector<2x16xf32>
    %387 = arith.subf %386, %385 : vector<2x16xf32>
    %388 = math.exp %387 : vector<2x16xf32>
    %cst_207 = arith.constant 1.000000e+00 : f32
    %389 = vector.broadcast %cst_207 : f32 to vector<2x16xf32>
    %390 = arith.addf %389, %388 : vector<2x16xf32>
    %cst_208 = arith.constant 1.000000e+00 : f32
    %391 = vector.broadcast %cst_208 : f32 to vector<2x16xf32>
    %392 = arith.divf %391, %390 : vector<2x16xf32>
    %393 = vector.extract_strided_slice %376 {offsets = [0, 32], sizes = [2, 16], strides = [1, 1]} : vector<2x64xf32> to vector<2x16xf32>
    %394 = math.tanh %393 : vector<2x16xf32>
    %395 = vector.extract_strided_slice %376 {offsets = [0, 48], sizes = [2, 16], strides = [1, 1]} : vector<2x64xf32> to vector<2x16xf32>
    %cst_209 = arith.constant 0.000000e+00 : f32
    %396 = vector.broadcast %cst_209 : f32 to vector<2x16xf32>
    %397 = arith.subf %396, %395 : vector<2x16xf32>
    %398 = math.exp %397 : vector<2x16xf32>
    %cst_210 = arith.constant 1.000000e+00 : f32
    %399 = vector.broadcast %cst_210 : f32 to vector<2x16xf32>
    %400 = arith.addf %399, %398 : vector<2x16xf32>
    %cst_211 = arith.constant 1.000000e+00 : f32
    %401 = vector.broadcast %cst_211 : f32 to vector<2x16xf32>
    %402 = arith.divf %401, %400 : vector<2x16xf32>
    %403 = arith.mulf %392, %373 : vector<2x16xf32>
    %404 = arith.mulf %384, %394 : vector<2x16xf32>
    %405 = arith.addf %403, %404 : vector<2x16xf32>
    %406 = math.tanh %405 : vector<2x16xf32>
    %407 = arith.mulf %402, %406 : vector<2x16xf32>
    %c1_212 = arith.constant 1 : index
    %c0_213 = arith.constant 0 : index
    %c0_214 = arith.constant 0 : index
    %408 = vector.load %arg7[%c1_212, %c0_213, %c0_214] : memref<2x2x16xf32, #tpu.memory_space<vmem>>, vector<1x2x16xf32>
    %409 = vector.shape_cast %408 : vector<1x2x16xf32> to vector<2x16xf32>
    %410 = vector.shape_cast %407 : vector<2x16xf32> to vector<1x2x16xf32>
    tpu.vector_store %arg7[%c1_212, %c0_213, %c0_214], %410 {strides = array<i32>} : memref<2x2x16xf32, #tpu.memory_space<vmem>>, vector<1x2x16xf32>,
    %c1_215 = arith.constant 1 : index
    %c0_216 = arith.constant 0 : index
    %c0_217 = arith.constant 0 : index
    %411 = vector.load %arg8[%c1_215, %c0_216, %c0_217] : memref<2x2x16xf32, #tpu.memory_space<vmem>>, vector<1x2x16xf32>
    %412 = vector.shape_cast %411 : vector<1x2x16xf32> to vector<2x16xf32>
    %413 = vector.shape_cast %405 : vector<2x16xf32> to vector<1x2x16xf32>
    tpu.vector_store %arg8[%c1_215, %c0_216, %c0_217], %413 {strides = array<i32>} : memref<2x2x16xf32, #tpu.memory_space<vmem>>, vector<1x2x16xf32>,
    %414 = arith.index_cast %366 : i32 to index
    %c0_218 = arith.constant 0 : index
    %c0_219 = arith.constant 0 : index
    %415 = vector.load %arg6[%414, %c0_218, %c0_219] : memref<8x2x16xf32, #tpu.memory_space<vmem>>, vector<1x2x16xf32>
    %416 = vector.shape_cast %415 : vector<1x2x16xf32> to vector<2x16xf32>
    %417 = vector.shape_cast %407 : vector<2x16xf32> to vector<1x2x16xf32>
    tpu.vector_store %arg6[%414, %c0_218, %c0_219], %417 {strides = array<i32>} : memref<8x2x16xf32, #tpu.memory_space<vmem>>, vector<1x2x16xf32>,
    %c4_i32 = arith.constant 4 : i32
    %418 = arith.index_cast %c4_i32 : i32 to index
    %c0_220 = arith.constant 0 : index
    %c0_221 = arith.constant 0 : index
    %419 = vector.load %arg1[%418, %c0_220, %c0_221] : memref<8x2x64xf32, #tpu.memory_space<vmem>>, vector<1x2x64xf32>
    %420 = vector.shape_cast %419 : vector<1x2x64xf32> to vector<2x64xf32>
    %c0_222 = arith.constant 0 : index
    %c0_223 = arith.constant 0 : index
    %c0_224 = arith.constant 0 : index
    %421 = vector.load %arg7[%c0_222, %c0_223, %c0_224] : memref<2x2x16xf32, #tpu.memory_space<vmem>>, vector<1x2x16xf32>
    %422 = vector.shape_cast %421 : vector<1x2x16xf32> to vector<2x16xf32>
    %c0_225 = arith.constant 0 : index
    %c0_226 = arith.constant 0 : index
    %c0_227 = arith.constant 0 : index
    %423 = vector.load %arg8[%c0_225, %c0_226, %c0_227] : memref<2x2x16xf32, #tpu.memory_space<vmem>>, vector<1x2x16xf32>
    %424 = vector.shape_cast %423 : vector<1x2x16xf32> to vector<2x16xf32>
    %425 = arith.truncf %422 : vector<2x16xf32> to vector<2x16xbf16>
    %cst_228 = arith.constant dense<0.000000e+00> : vector<2x64xf32>
    %426 = tpu.matmul %425, %4, %cst_228 {dimension_numbers = #tpu.dot_dimension_numbers<[1], [0], [0], [1], [0, 0, 1, 1], [], []>} : vector<2x16xbf16>, vector<16x64xbf16>, vector<2x64xf32> -> vector<2x64xf32>
    %427 = arith.addf %420, %426 : vector<2x64xf32>
    %428 = vector.extract_strided_slice %427 {offsets = [0, 0], sizes = [2, 16], strides = [1, 1]} : vector<2x64xf32> to vector<2x16xf32>
    %cst_229 = arith.constant 0.000000e+00 : f32
    %429 = vector.broadcast %cst_229 : f32 to vector<2x16xf32>
    %430 = arith.subf %429, %428 : vector<2x16xf32>
    %431 = math.exp %430 : vector<2x16xf32>
    %cst_230 = arith.constant 1.000000e+00 : f32
    %432 = vector.broadcast %cst_230 : f32 to vector<2x16xf32>
    %433 = arith.addf %432, %431 : vector<2x16xf32>
    %cst_231 = arith.constant 1.000000e+00 : f32
    %434 = vector.broadcast %cst_231 : f32 to vector<2x16xf32>
    %435 = arith.divf %434, %433 : vector<2x16xf32>
    %436 = vector.extract_strided_slice %427 {offsets = [0, 16], sizes = [2, 16], strides = [1, 1]} : vector<2x64xf32> to vector<2x16xf32>
    %cst_232 = arith.constant 0.000000e+00 : f32
    %437 = vector.broadcast %cst_232 : f32 to vector<2x16xf32>
    %438 = arith.subf %437, %436 : vector<2x16xf32>
    %439 = math.exp %438 : vector<2x16xf32>
    %cst_233 = arith.constant 1.000000e+00 : f32
    %440 = vector.broadcast %cst_233 : f32 to vector<2x16xf32>
    %441 = arith.addf %440, %439 : vector<2x16xf32>
    %cst_234 = arith.constant 1.000000e+00 : f32
    %442 = vector.broadcast %cst_234 : f32 to vector<2x16xf32>
    %443 = arith.divf %442, %441 : vector<2x16xf32>
    %444 = vector.extract_strided_slice %427 {offsets = [0, 32], sizes = [2, 16], strides = [1, 1]} : vector<2x64xf32> to vector<2x16xf32>
    %445 = math.tanh %444 : vector<2x16xf32>
    %446 = vector.extract_strided_slice %427 {offsets = [0, 48], sizes = [2, 16], strides = [1, 1]} : vector<2x64xf32> to vector<2x16xf32>
    %cst_235 = arith.constant 0.000000e+00 : f32
    %447 = vector.broadcast %cst_235 : f32 to vector<2x16xf32>
    %448 = arith.subf %447, %446 : vector<2x16xf32>
    %449 = math.exp %448 : vector<2x16xf32>
    %cst_236 = arith.constant 1.000000e+00 : f32
    %450 = vector.broadcast %cst_236 : f32 to vector<2x16xf32>
    %451 = arith.addf %450, %449 : vector<2x16xf32>
    %cst_237 = arith.constant 1.000000e+00 : f32
    %452 = vector.broadcast %cst_237 : f32 to vector<2x16xf32>
    %453 = arith.divf %452, %451 : vector<2x16xf32>
    %454 = arith.mulf %443, %424 : vector<2x16xf32>
    %455 = arith.mulf %435, %445 : vector<2x16xf32>
    %456 = arith.addf %454, %455 : vector<2x16xf32>
    %457 = math.tanh %456 : vector<2x16xf32>
    %458 = arith.mulf %453, %457 : vector<2x16xf32>
    %c0_238 = arith.constant 0 : index
    %c0_239 = arith.constant 0 : index
    %c0_240 = arith.constant 0 : index
    %459 = vector.load %arg7[%c0_238, %c0_239, %c0_240] : memref<2x2x16xf32, #tpu.memory_space<vmem>>, vector<1x2x16xf32>
    %460 = vector.shape_cast %459 : vector<1x2x16xf32> to vector<2x16xf32>
    %461 = vector.shape_cast %458 : vector<2x16xf32> to vector<1x2x16xf32>
    tpu.vector_store %arg7[%c0_238, %c0_239, %c0_240], %461 {strides = array<i32>} : memref<2x2x16xf32, #tpu.memory_space<vmem>>, vector<1x2x16xf32>,
    %c0_241 = arith.constant 0 : index
    %c0_242 = arith.constant 0 : index
    %c0_243 = arith.constant 0 : index
    %462 = vector.load %arg8[%c0_241, %c0_242, %c0_243] : memref<2x2x16xf32, #tpu.memory_space<vmem>>, vector<1x2x16xf32>
    %463 = vector.shape_cast %462 : vector<1x2x16xf32> to vector<2x16xf32>
    %464 = vector.shape_cast %456 : vector<2x16xf32> to vector<1x2x16xf32>
    tpu.vector_store %arg8[%c0_241, %c0_242, %c0_243], %464 {strides = array<i32>} : memref<2x2x16xf32, #tpu.memory_space<vmem>>, vector<1x2x16xf32>,
    %465 = arith.index_cast %c4_i32 : i32 to index
    %c0_244 = arith.constant 0 : index
    %c0_245 = arith.constant 0 : index
    %466 = vector.load %arg5[%465, %c0_244, %c0_245] : memref<8x2x16xf32, #tpu.memory_space<vmem>>, vector<1x2x16xf32>
    %467 = vector.shape_cast %466 : vector<1x2x16xf32> to vector<2x16xf32>
    %468 = vector.shape_cast %458 : vector<2x16xf32> to vector<1x2x16xf32>
    tpu.vector_store %arg5[%465, %c0_244, %c0_245], %468 {strides = array<i32>} : memref<8x2x16xf32, #tpu.memory_space<vmem>>, vector<1x2x16xf32>,
    %c7_i32_246 = arith.constant 7 : i32
    %469 = arith.subi %c7_i32_246, %c4_i32 : i32
    %470 = arith.index_cast %469 : i32 to index
    %c0_247 = arith.constant 0 : index
    %c0_248 = arith.constant 0 : index
    %471 = vector.load %arg2[%470, %c0_247, %c0_248] : memref<8x2x64xf32, #tpu.memory_space<vmem>>, vector<1x2x64xf32>
    %472 = vector.shape_cast %471 : vector<1x2x64xf32> to vector<2x64xf32>
    %c1_249 = arith.constant 1 : index
    %c0_250 = arith.constant 0 : index
    %c0_251 = arith.constant 0 : index
    %473 = vector.load %arg7[%c1_249, %c0_250, %c0_251] : memref<2x2x16xf32, #tpu.memory_space<vmem>>, vector<1x2x16xf32>
    %474 = vector.shape_cast %473 : vector<1x2x16xf32> to vector<2x16xf32>
    %c1_252 = arith.constant 1 : index
    %c0_253 = arith.constant 0 : index
    %c0_254 = arith.constant 0 : index
    %475 = vector.load %arg8[%c1_252, %c0_253, %c0_254] : memref<2x2x16xf32, #tpu.memory_space<vmem>>, vector<1x2x16xf32>
    %476 = vector.shape_cast %475 : vector<1x2x16xf32> to vector<2x16xf32>
    %477 = arith.truncf %474 : vector<2x16xf32> to vector<2x16xbf16>
    %cst_255 = arith.constant dense<0.000000e+00> : vector<2x64xf32>
    %478 = tpu.matmul %477, %5, %cst_255 {dimension_numbers = #tpu.dot_dimension_numbers<[1], [0], [0], [1], [0, 0, 1, 1], [], []>} : vector<2x16xbf16>, vector<16x64xbf16>, vector<2x64xf32> -> vector<2x64xf32>
    %479 = arith.addf %472, %478 : vector<2x64xf32>
    %480 = vector.extract_strided_slice %479 {offsets = [0, 0], sizes = [2, 16], strides = [1, 1]} : vector<2x64xf32> to vector<2x16xf32>
    %cst_256 = arith.constant 0.000000e+00 : f32
    %481 = vector.broadcast %cst_256 : f32 to vector<2x16xf32>
    %482 = arith.subf %481, %480 : vector<2x16xf32>
    %483 = math.exp %482 : vector<2x16xf32>
    %cst_257 = arith.constant 1.000000e+00 : f32
    %484 = vector.broadcast %cst_257 : f32 to vector<2x16xf32>
    %485 = arith.addf %484, %483 : vector<2x16xf32>
    %cst_258 = arith.constant 1.000000e+00 : f32
    %486 = vector.broadcast %cst_258 : f32 to vector<2x16xf32>
    %487 = arith.divf %486, %485 : vector<2x16xf32>
    %488 = vector.extract_strided_slice %479 {offsets = [0, 16], sizes = [2, 16], strides = [1, 1]} : vector<2x64xf32> to vector<2x16xf32>
    %cst_259 = arith.constant 0.000000e+00 : f32
    %489 = vector.broadcast %cst_259 : f32 to vector<2x16xf32>
    %490 = arith.subf %489, %488 : vector<2x16xf32>
    %491 = math.exp %490 : vector<2x16xf32>
    %cst_260 = arith.constant 1.000000e+00 : f32
    %492 = vector.broadcast %cst_260 : f32 to vector<2x16xf32>
    %493 = arith.addf %492, %491 : vector<2x16xf32>
    %cst_261 = arith.constant 1.000000e+00 : f32
    %494 = vector.broadcast %cst_261 : f32 to vector<2x16xf32>
    %495 = arith.divf %494, %493 : vector<2x16xf32>
    %496 = vector.extract_strided_slice %479 {offsets = [0, 32], sizes = [2, 16], strides = [1, 1]} : vector<2x64xf32> to vector<2x16xf32>
    %497 = math.tanh %496 : vector<2x16xf32>
    %498 = vector.extract_strided_slice %479 {offsets = [0, 48], sizes = [2, 16], strides = [1, 1]} : vector<2x64xf32> to vector<2x16xf32>
    %cst_262 = arith.constant 0.000000e+00 : f32
    %499 = vector.broadcast %cst_262 : f32 to vector<2x16xf32>
    %500 = arith.subf %499, %498 : vector<2x16xf32>
    %501 = math.exp %500 : vector<2x16xf32>
    %cst_263 = arith.constant 1.000000e+00 : f32
    %502 = vector.broadcast %cst_263 : f32 to vector<2x16xf32>
    %503 = arith.addf %502, %501 : vector<2x16xf32>
    %cst_264 = arith.constant 1.000000e+00 : f32
    %504 = vector.broadcast %cst_264 : f32 to vector<2x16xf32>
    %505 = arith.divf %504, %503 : vector<2x16xf32>
    %506 = arith.mulf %495, %476 : vector<2x16xf32>
    %507 = arith.mulf %487, %497 : vector<2x16xf32>
    %508 = arith.addf %506, %507 : vector<2x16xf32>
    %509 = math.tanh %508 : vector<2x16xf32>
    %510 = arith.mulf %505, %509 : vector<2x16xf32>
    %c1_265 = arith.constant 1 : index
    %c0_266 = arith.constant 0 : index
    %c0_267 = arith.constant 0 : index
    %511 = vector.load %arg7[%c1_265, %c0_266, %c0_267] : memref<2x2x16xf32, #tpu.memory_space<vmem>>, vector<1x2x16xf32>
    %512 = vector.shape_cast %511 : vector<1x2x16xf32> to vector<2x16xf32>
    %513 = vector.shape_cast %510 : vector<2x16xf32> to vector<1x2x16xf32>
    tpu.vector_store %arg7[%c1_265, %c0_266, %c0_267], %513 {strides = array<i32>} : memref<2x2x16xf32, #tpu.memory_space<vmem>>, vector<1x2x16xf32>,
    %c1_268 = arith.constant 1 : index
    %c0_269 = arith.constant 0 : index
    %c0_270 = arith.constant 0 : index
    %514 = vector.load %arg8[%c1_268, %c0_269, %c0_270] : memref<2x2x16xf32, #tpu.memory_space<vmem>>, vector<1x2x16xf32>
    %515 = vector.shape_cast %514 : vector<1x2x16xf32> to vector<2x16xf32>
    %516 = vector.shape_cast %508 : vector<2x16xf32> to vector<1x2x16xf32>
    tpu.vector_store %arg8[%c1_268, %c0_269, %c0_270], %516 {strides = array<i32>} : memref<2x2x16xf32, #tpu.memory_space<vmem>>, vector<1x2x16xf32>,
    %517 = arith.index_cast %469 : i32 to index
    %c0_271 = arith.constant 0 : index
    %c0_272 = arith.constant 0 : index
    %518 = vector.load %arg6[%517, %c0_271, %c0_272] : memref<8x2x16xf32, #tpu.memory_space<vmem>>, vector<1x2x16xf32>
    %519 = vector.shape_cast %518 : vector<1x2x16xf32> to vector<2x16xf32>
    %520 = vector.shape_cast %510 : vector<2x16xf32> to vector<1x2x16xf32>
    tpu.vector_store %arg6[%517, %c0_271, %c0_272], %520 {strides = array<i32>} : memref<8x2x16xf32, #tpu.memory_space<vmem>>, vector<1x2x16xf32>,
    %c5_i32 = arith.constant 5 : i32
    %521 = arith.index_cast %c5_i32 : i32 to index
    %c0_273 = arith.constant 0 : index
    %c0_274 = arith.constant 0 : index
    %522 = vector.load %arg1[%521, %c0_273, %c0_274] : memref<8x2x64xf32, #tpu.memory_space<vmem>>, vector<1x2x64xf32>
    %523 = vector.shape_cast %522 : vector<1x2x64xf32> to vector<2x64xf32>
    %c0_275 = arith.constant 0 : index
    %c0_276 = arith.constant 0 : index
    %c0_277 = arith.constant 0 : index
    %524 = vector.load %arg7[%c0_275, %c0_276, %c0_277] : memref<2x2x16xf32, #tpu.memory_space<vmem>>, vector<1x2x16xf32>
    %525 = vector.shape_cast %524 : vector<1x2x16xf32> to vector<2x16xf32>
    %c0_278 = arith.constant 0 : index
    %c0_279 = arith.constant 0 : index
    %c0_280 = arith.constant 0 : index
    %526 = vector.load %arg8[%c0_278, %c0_279, %c0_280] : memref<2x2x16xf32, #tpu.memory_space<vmem>>, vector<1x2x16xf32>
    %527 = vector.shape_cast %526 : vector<1x2x16xf32> to vector<2x16xf32>
    %528 = arith.truncf %525 : vector<2x16xf32> to vector<2x16xbf16>
    %cst_281 = arith.constant dense<0.000000e+00> : vector<2x64xf32>
    %529 = tpu.matmul %528, %4, %cst_281 {dimension_numbers = #tpu.dot_dimension_numbers<[1], [0], [0], [1], [0, 0, 1, 1], [], []>} : vector<2x16xbf16>, vector<16x64xbf16>, vector<2x64xf32> -> vector<2x64xf32>
    %530 = arith.addf %523, %529 : vector<2x64xf32>
    %531 = vector.extract_strided_slice %530 {offsets = [0, 0], sizes = [2, 16], strides = [1, 1]} : vector<2x64xf32> to vector<2x16xf32>
    %cst_282 = arith.constant 0.000000e+00 : f32
    %532 = vector.broadcast %cst_282 : f32 to vector<2x16xf32>
    %533 = arith.subf %532, %531 : vector<2x16xf32>
    %534 = math.exp %533 : vector<2x16xf32>
    %cst_283 = arith.constant 1.000000e+00 : f32
    %535 = vector.broadcast %cst_283 : f32 to vector<2x16xf32>
    %536 = arith.addf %535, %534 : vector<2x16xf32>
    %cst_284 = arith.constant 1.000000e+00 : f32
    %537 = vector.broadcast %cst_284 : f32 to vector<2x16xf32>
    %538 = arith.divf %537, %536 : vector<2x16xf32>
    %539 = vector.extract_strided_slice %530 {offsets = [0, 16], sizes = [2, 16], strides = [1, 1]} : vector<2x64xf32> to vector<2x16xf32>
    %cst_285 = arith.constant 0.000000e+00 : f32
    %540 = vector.broadcast %cst_285 : f32 to vector<2x16xf32>
    %541 = arith.subf %540, %539 : vector<2x16xf32>
    %542 = math.exp %541 : vector<2x16xf32>
    %cst_286 = arith.constant 1.000000e+00 : f32
    %543 = vector.broadcast %cst_286 : f32 to vector<2x16xf32>
    %544 = arith.addf %543, %542 : vector<2x16xf32>
    %cst_287 = arith.constant 1.000000e+00 : f32
    %545 = vector.broadcast %cst_287 : f32 to vector<2x16xf32>
    %546 = arith.divf %545, %544 : vector<2x16xf32>
    %547 = vector.extract_strided_slice %530 {offsets = [0, 32], sizes = [2, 16], strides = [1, 1]} : vector<2x64xf32> to vector<2x16xf32>
    %548 = math.tanh %547 : vector<2x16xf32>
    %549 = vector.extract_strided_slice %530 {offsets = [0, 48], sizes = [2, 16], strides = [1, 1]} : vector<2x64xf32> to vector<2x16xf32>
    %cst_288 = arith.constant 0.000000e+00 : f32
    %550 = vector.broadcast %cst_288 : f32 to vector<2x16xf32>
    %551 = arith.subf %550, %549 : vector<2x16xf32>
    %552 = math.exp %551 : vector<2x16xf32>
    %cst_289 = arith.constant 1.000000e+00 : f32
    %553 = vector.broadcast %cst_289 : f32 to vector<2x16xf32>
    %554 = arith.addf %553, %552 : vector<2x16xf32>
    %cst_290 = arith.constant 1.000000e+00 : f32
    %555 = vector.broadcast %cst_290 : f32 to vector<2x16xf32>
    %556 = arith.divf %555, %554 : vector<2x16xf32>
    %557 = arith.mulf %546, %527 : vector<2x16xf32>
    %558 = arith.mulf %538, %548 : vector<2x16xf32>
    %559 = arith.addf %557, %558 : vector<2x16xf32>
    %560 = math.tanh %559 : vector<2x16xf32>
    %561 = arith.mulf %556, %560 : vector<2x16xf32>
    %c0_291 = arith.constant 0 : index
    %c0_292 = arith.constant 0 : index
    %c0_293 = arith.constant 0 : index
    %562 = vector.load %arg7[%c0_291, %c0_292, %c0_293] : memref<2x2x16xf32, #tpu.memory_space<vmem>>, vector<1x2x16xf32>
    %563 = vector.shape_cast %562 : vector<1x2x16xf32> to vector<2x16xf32>
    %564 = vector.shape_cast %561 : vector<2x16xf32> to vector<1x2x16xf32>
    tpu.vector_store %arg7[%c0_291, %c0_292, %c0_293], %564 {strides = array<i32>} : memref<2x2x16xf32, #tpu.memory_space<vmem>>, vector<1x2x16xf32>,
    %c0_294 = arith.constant 0 : index
    %c0_295 = arith.constant 0 : index
    %c0_296 = arith.constant 0 : index
    %565 = vector.load %arg8[%c0_294, %c0_295, %c0_296] : memref<2x2x16xf32, #tpu.memory_space<vmem>>, vector<1x2x16xf32>
    %566 = vector.shape_cast %565 : vector<1x2x16xf32> to vector<2x16xf32>
    %567 = vector.shape_cast %559 : vector<2x16xf32> to vector<1x2x16xf32>
    tpu.vector_store %arg8[%c0_294, %c0_295, %c0_296], %567 {strides = array<i32>} : memref<2x2x16xf32, #tpu.memory_space<vmem>>, vector<1x2x16xf32>,
    %568 = arith.index_cast %c5_i32 : i32 to index
    %c0_297 = arith.constant 0 : index
    %c0_298 = arith.constant 0 : index
    %569 = vector.load %arg5[%568, %c0_297, %c0_298] : memref<8x2x16xf32, #tpu.memory_space<vmem>>, vector<1x2x16xf32>
    %570 = vector.shape_cast %569 : vector<1x2x16xf32> to vector<2x16xf32>
    %571 = vector.shape_cast %561 : vector<2x16xf32> to vector<1x2x16xf32>
    tpu.vector_store %arg5[%568, %c0_297, %c0_298], %571 {strides = array<i32>} : memref<8x2x16xf32, #tpu.memory_space<vmem>>, vector<1x2x16xf32>,
    %c7_i32_299 = arith.constant 7 : i32
    %572 = arith.subi %c7_i32_299, %c5_i32 : i32
    %573 = arith.index_cast %572 : i32 to index
    %c0_300 = arith.constant 0 : index
    %c0_301 = arith.constant 0 : index
    %574 = vector.load %arg2[%573, %c0_300, %c0_301] : memref<8x2x64xf32, #tpu.memory_space<vmem>>, vector<1x2x64xf32>
    %575 = vector.shape_cast %574 : vector<1x2x64xf32> to vector<2x64xf32>
    %c1_302 = arith.constant 1 : index
    %c0_303 = arith.constant 0 : index
    %c0_304 = arith.constant 0 : index
    %576 = vector.load %arg7[%c1_302, %c0_303, %c0_304] : memref<2x2x16xf32, #tpu.memory_space<vmem>>, vector<1x2x16xf32>
    %577 = vector.shape_cast %576 : vector<1x2x16xf32> to vector<2x16xf32>
    %c1_305 = arith.constant 1 : index
    %c0_306 = arith.constant 0 : index
    %c0_307 = arith.constant 0 : index
    %578 = vector.load %arg8[%c1_305, %c0_306, %c0_307] : memref<2x2x16xf32, #tpu.memory_space<vmem>>, vector<1x2x16xf32>
    %579 = vector.shape_cast %578 : vector<1x2x16xf32> to vector<2x16xf32>
    %580 = arith.truncf %577 : vector<2x16xf32> to vector<2x16xbf16>
    %cst_308 = arith.constant dense<0.000000e+00> : vector<2x64xf32>
    %581 = tpu.matmul %580, %5, %cst_308 {dimension_numbers = #tpu.dot_dimension_numbers<[1], [0], [0], [1], [0, 0, 1, 1], [], []>} : vector<2x16xbf16>, vector<16x64xbf16>, vector<2x64xf32> -> vector<2x64xf32>
    %582 = arith.addf %575, %581 : vector<2x64xf32>
    %583 = vector.extract_strided_slice %582 {offsets = [0, 0], sizes = [2, 16], strides = [1, 1]} : vector<2x64xf32> to vector<2x16xf32>
    %cst_309 = arith.constant 0.000000e+00 : f32
    %584 = vector.broadcast %cst_309 : f32 to vector<2x16xf32>
    %585 = arith.subf %584, %583 : vector<2x16xf32>
    %586 = math.exp %585 : vector<2x16xf32>
    %cst_310 = arith.constant 1.000000e+00 : f32
    %587 = vector.broadcast %cst_310 : f32 to vector<2x16xf32>
    %588 = arith.addf %587, %586 : vector<2x16xf32>
    %cst_311 = arith.constant 1.000000e+00 : f32
    %589 = vector.broadcast %cst_311 : f32 to vector<2x16xf32>
    %590 = arith.divf %589, %588 : vector<2x16xf32>
    %591 = vector.extract_strided_slice %582 {offsets = [0, 16], sizes = [2, 16], strides = [1, 1]} : vector<2x64xf32> to vector<2x16xf32>
    %cst_312 = arith.constant 0.000000e+00 : f32
    %592 = vector.broadcast %cst_312 : f32 to vector<2x16xf32>
    %593 = arith.subf %592, %591 : vector<2x16xf32>
    %594 = math.exp %593 : vector<2x16xf32>
    %cst_313 = arith.constant 1.000000e+00 : f32
    %595 = vector.broadcast %cst_313 : f32 to vector<2x16xf32>
    %596 = arith.addf %595, %594 : vector<2x16xf32>
    %cst_314 = arith.constant 1.000000e+00 : f32
    %597 = vector.broadcast %cst_314 : f32 to vector<2x16xf32>
    %598 = arith.divf %597, %596 : vector<2x16xf32>
    %599 = vector.extract_strided_slice %582 {offsets = [0, 32], sizes = [2, 16], strides = [1, 1]} : vector<2x64xf32> to vector<2x16xf32>
    %600 = math.tanh %599 : vector<2x16xf32>
    %601 = vector.extract_strided_slice %582 {offsets = [0, 48], sizes = [2, 16], strides = [1, 1]} : vector<2x64xf32> to vector<2x16xf32>
    %cst_315 = arith.constant 0.000000e+00 : f32
    %602 = vector.broadcast %cst_315 : f32 to vector<2x16xf32>
    %603 = arith.subf %602, %601 : vector<2x16xf32>
    %604 = math.exp %603 : vector<2x16xf32>
    %cst_316 = arith.constant 1.000000e+00 : f32
    %605 = vector.broadcast %cst_316 : f32 to vector<2x16xf32>
    %606 = arith.addf %605, %604 : vector<2x16xf32>
    %cst_317 = arith.constant 1.000000e+00 : f32
    %607 = vector.broadcast %cst_317 : f32 to vector<2x16xf32>
    %608 = arith.divf %607, %606 : vector<2x16xf32>
    %609 = arith.mulf %598, %579 : vector<2x16xf32>
    %610 = arith.mulf %590, %600 : vector<2x16xf32>
    %611 = arith.addf %609, %610 : vector<2x16xf32>
    %612 = math.tanh %611 : vector<2x16xf32>
    %613 = arith.mulf %608, %612 : vector<2x16xf32>
    %c1_318 = arith.constant 1 : index
    %c0_319 = arith.constant 0 : index
    %c0_320 = arith.constant 0 : index
    %614 = vector.load %arg7[%c1_318, %c0_319, %c0_320] : memref<2x2x16xf32, #tpu.memory_space<vmem>>, vector<1x2x16xf32>
    %615 = vector.shape_cast %614 : vector<1x2x16xf32> to vector<2x16xf32>
    %616 = vector.shape_cast %613 : vector<2x16xf32> to vector<1x2x16xf32>
    tpu.vector_store %arg7[%c1_318, %c0_319, %c0_320], %616 {strides = array<i32>} : memref<2x2x16xf32, #tpu.memory_space<vmem>>, vector<1x2x16xf32>,
    %c1_321 = arith.constant 1 : index
    %c0_322 = arith.constant 0 : index
    %c0_323 = arith.constant 0 : index
    %617 = vector.load %arg8[%c1_321, %c0_322, %c0_323] : memref<2x2x16xf32, #tpu.memory_space<vmem>>, vector<1x2x16xf32>
    %618 = vector.shape_cast %617 : vector<1x2x16xf32> to vector<2x16xf32>
    %619 = vector.shape_cast %611 : vector<2x16xf32> to vector<1x2x16xf32>
    tpu.vector_store %arg8[%c1_321, %c0_322, %c0_323], %619 {strides = array<i32>} : memref<2x2x16xf32, #tpu.memory_space<vmem>>, vector<1x2x16xf32>,
    %620 = arith.index_cast %572 : i32 to index
    %c0_324 = arith.constant 0 : index
    %c0_325 = arith.constant 0 : index
    %621 = vector.load %arg6[%620, %c0_324, %c0_325] : memref<8x2x16xf32, #tpu.memory_space<vmem>>, vector<1x2x16xf32>
    %622 = vector.shape_cast %621 : vector<1x2x16xf32> to vector<2x16xf32>
    %623 = vector.shape_cast %613 : vector<2x16xf32> to vector<1x2x16xf32>
    tpu.vector_store %arg6[%620, %c0_324, %c0_325], %623 {strides = array<i32>} : memref<8x2x16xf32, #tpu.memory_space<vmem>>, vector<1x2x16xf32>,
    %c6_i32 = arith.constant 6 : i32
    %624 = arith.index_cast %c6_i32 : i32 to index
    %c0_326 = arith.constant 0 : index
    %c0_327 = arith.constant 0 : index
    %625 = vector.load %arg1[%624, %c0_326, %c0_327] : memref<8x2x64xf32, #tpu.memory_space<vmem>>, vector<1x2x64xf32>
    %626 = vector.shape_cast %625 : vector<1x2x64xf32> to vector<2x64xf32>
    %c0_328 = arith.constant 0 : index
    %c0_329 = arith.constant 0 : index
    %c0_330 = arith.constant 0 : index
    %627 = vector.load %arg7[%c0_328, %c0_329, %c0_330] : memref<2x2x16xf32, #tpu.memory_space<vmem>>, vector<1x2x16xf32>
    %628 = vector.shape_cast %627 : vector<1x2x16xf32> to vector<2x16xf32>
    %c0_331 = arith.constant 0 : index
    %c0_332 = arith.constant 0 : index
    %c0_333 = arith.constant 0 : index
    %629 = vector.load %arg8[%c0_331, %c0_332, %c0_333] : memref<2x2x16xf32, #tpu.memory_space<vmem>>, vector<1x2x16xf32>
    %630 = vector.shape_cast %629 : vector<1x2x16xf32> to vector<2x16xf32>
    %631 = arith.truncf %628 : vector<2x16xf32> to vector<2x16xbf16>
    %cst_334 = arith.constant dense<0.000000e+00> : vector<2x64xf32>
    %632 = tpu.matmul %631, %4, %cst_334 {dimension_numbers = #tpu.dot_dimension_numbers<[1], [0], [0], [1], [0, 0, 1, 1], [], []>} : vector<2x16xbf16>, vector<16x64xbf16>, vector<2x64xf32> -> vector<2x64xf32>
    %633 = arith.addf %626, %632 : vector<2x64xf32>
    %634 = vector.extract_strided_slice %633 {offsets = [0, 0], sizes = [2, 16], strides = [1, 1]} : vector<2x64xf32> to vector<2x16xf32>
    %cst_335 = arith.constant 0.000000e+00 : f32
    %635 = vector.broadcast %cst_335 : f32 to vector<2x16xf32>
    %636 = arith.subf %635, %634 : vector<2x16xf32>
    %637 = math.exp %636 : vector<2x16xf32>
    %cst_336 = arith.constant 1.000000e+00 : f32
    %638 = vector.broadcast %cst_336 : f32 to vector<2x16xf32>
    %639 = arith.addf %638, %637 : vector<2x16xf32>
    %cst_337 = arith.constant 1.000000e+00 : f32
    %640 = vector.broadcast %cst_337 : f32 to vector<2x16xf32>
    %641 = arith.divf %640, %639 : vector<2x16xf32>
    %642 = vector.extract_strided_slice %633 {offsets = [0, 16], sizes = [2, 16], strides = [1, 1]} : vector<2x64xf32> to vector<2x16xf32>
    %cst_338 = arith.constant 0.000000e+00 : f32
    %643 = vector.broadcast %cst_338 : f32 to vector<2x16xf32>
    %644 = arith.subf %643, %642 : vector<2x16xf32>
    %645 = math.exp %644 : vector<2x16xf32>
    %cst_339 = arith.constant 1.000000e+00 : f32
    %646 = vector.broadcast %cst_339 : f32 to vector<2x16xf32>
    %647 = arith.addf %646, %645 : vector<2x16xf32>
    %cst_340 = arith.constant 1.000000e+00 : f32
    %648 = vector.broadcast %cst_340 : f32 to vector<2x16xf32>
    %649 = arith.divf %648, %647 : vector<2x16xf32>
    %650 = vector.extract_strided_slice %633 {offsets = [0, 32], sizes = [2, 16], strides = [1, 1]} : vector<2x64xf32> to vector<2x16xf32>
    %651 = math.tanh %650 : vector<2x16xf32>
    %652 = vector.extract_strided_slice %633 {offsets = [0, 48], sizes = [2, 16], strides = [1, 1]} : vector<2x64xf32> to vector<2x16xf32>
    %cst_341 = arith.constant 0.000000e+00 : f32
    %653 = vector.broadcast %cst_341 : f32 to vector<2x16xf32>
    %654 = arith.subf %653, %652 : vector<2x16xf32>
    %655 = math.exp %654 : vector<2x16xf32>
    %cst_342 = arith.constant 1.000000e+00 : f32
    %656 = vector.broadcast %cst_342 : f32 to vector<2x16xf32>
    %657 = arith.addf %656, %655 : vector<2x16xf32>
    %cst_343 = arith.constant 1.000000e+00 : f32
    %658 = vector.broadcast %cst_343 : f32 to vector<2x16xf32>
    %659 = arith.divf %658, %657 : vector<2x16xf32>
    %660 = arith.mulf %649, %630 : vector<2x16xf32>
    %661 = arith.mulf %641, %651 : vector<2x16xf32>
    %662 = arith.addf %660, %661 : vector<2x16xf32>
    %663 = math.tanh %662 : vector<2x16xf32>
    %664 = arith.mulf %659, %663 : vector<2x16xf32>
    %c0_344 = arith.constant 0 : index
    %c0_345 = arith.constant 0 : index
    %c0_346 = arith.constant 0 : index
    %665 = vector.load %arg7[%c0_344, %c0_345, %c0_346] : memref<2x2x16xf32, #tpu.memory_space<vmem>>, vector<1x2x16xf32>
    %666 = vector.shape_cast %665 : vector<1x2x16xf32> to vector<2x16xf32>
    %667 = vector.shape_cast %664 : vector<2x16xf32> to vector<1x2x16xf32>
    tpu.vector_store %arg7[%c0_344, %c0_345, %c0_346], %667 {strides = array<i32>} : memref<2x2x16xf32, #tpu.memory_space<vmem>>, vector<1x2x16xf32>,
    %c0_347 = arith.constant 0 : index
    %c0_348 = arith.constant 0 : index
    %c0_349 = arith.constant 0 : index
    %668 = vector.load %arg8[%c0_347, %c0_348, %c0_349] : memref<2x2x16xf32, #tpu.memory_space<vmem>>, vector<1x2x16xf32>
    %669 = vector.shape_cast %668 : vector<1x2x16xf32> to vector<2x16xf32>
    %670 = vector.shape_cast %662 : vector<2x16xf32> to vector<1x2x16xf32>
    tpu.vector_store %arg8[%c0_347, %c0_348, %c0_349], %670 {strides = array<i32>} : memref<2x2x16xf32, #tpu.memory_space<vmem>>, vector<1x2x16xf32>,
    %671 = arith.index_cast %c6_i32 : i32 to index
    %c0_350 = arith.constant 0 : index
    %c0_351 = arith.constant 0 : index
    %672 = vector.load %arg5[%671, %c0_350, %c0_351] : memref<8x2x16xf32, #tpu.memory_space<vmem>>, vector<1x2x16xf32>
    %673 = vector.shape_cast %672 : vector<1x2x16xf32> to vector<2x16xf32>
    %674 = vector.shape_cast %664 : vector<2x16xf32> to vector<1x2x16xf32>
    tpu.vector_store %arg5[%671, %c0_350, %c0_351], %674 {strides = array<i32>} : memref<8x2x16xf32, #tpu.memory_space<vmem>>, vector<1x2x16xf32>,
    %c7_i32_352 = arith.constant 7 : i32
    %675 = arith.subi %c7_i32_352, %c6_i32 : i32
    %676 = arith.index_cast %675 : i32 to index
    %c0_353 = arith.constant 0 : index
    %c0_354 = arith.constant 0 : index
    %677 = vector.load %arg2[%676, %c0_353, %c0_354] : memref<8x2x64xf32, #tpu.memory_space<vmem>>, vector<1x2x64xf32>
    %678 = vector.shape_cast %677 : vector<1x2x64xf32> to vector<2x64xf32>
    %c1_355 = arith.constant 1 : index
    %c0_356 = arith.constant 0 : index
    %c0_357 = arith.constant 0 : index
    %679 = vector.load %arg7[%c1_355, %c0_356, %c0_357] : memref<2x2x16xf32, #tpu.memory_space<vmem>>, vector<1x2x16xf32>
    %680 = vector.shape_cast %679 : vector<1x2x16xf32> to vector<2x16xf32>
    %c1_358 = arith.constant 1 : index
    %c0_359 = arith.constant 0 : index
    %c0_360 = arith.constant 0 : index
    %681 = vector.load %arg8[%c1_358, %c0_359, %c0_360] : memref<2x2x16xf32, #tpu.memory_space<vmem>>, vector<1x2x16xf32>
    %682 = vector.shape_cast %681 : vector<1x2x16xf32> to vector<2x16xf32>
    %683 = arith.truncf %680 : vector<2x16xf32> to vector<2x16xbf16>
    %cst_361 = arith.constant dense<0.000000e+00> : vector<2x64xf32>
    %684 = tpu.matmul %683, %5, %cst_361 {dimension_numbers = #tpu.dot_dimension_numbers<[1], [0], [0], [1], [0, 0, 1, 1], [], []>} : vector<2x16xbf16>, vector<16x64xbf16>, vector<2x64xf32> -> vector<2x64xf32>
    %685 = arith.addf %678, %684 : vector<2x64xf32>
    %686 = vector.extract_strided_slice %685 {offsets = [0, 0], sizes = [2, 16], strides = [1, 1]} : vector<2x64xf32> to vector<2x16xf32>
    %cst_362 = arith.constant 0.000000e+00 : f32
    %687 = vector.broadcast %cst_362 : f32 to vector<2x16xf32>
    %688 = arith.subf %687, %686 : vector<2x16xf32>
    %689 = math.exp %688 : vector<2x16xf32>
    %cst_363 = arith.constant 1.000000e+00 : f32
    %690 = vector.broadcast %cst_363 : f32 to vector<2x16xf32>
    %691 = arith.addf %690, %689 : vector<2x16xf32>
    %cst_364 = arith.constant 1.000000e+00 : f32
    %692 = vector.broadcast %cst_364 : f32 to vector<2x16xf32>
    %693 = arith.divf %692, %691 : vector<2x16xf32>
    %694 = vector.extract_strided_slice %685 {offsets = [0, 16], sizes = [2, 16], strides = [1, 1]} : vector<2x64xf32> to vector<2x16xf32>
    %cst_365 = arith.constant 0.000000e+00 : f32
    %695 = vector.broadcast %cst_365 : f32 to vector<2x16xf32>
    %696 = arith.subf %695, %694 : vector<2x16xf32>
    %697 = math.exp %696 : vector<2x16xf32>
    %cst_366 = arith.constant 1.000000e+00 : f32
    %698 = vector.broadcast %cst_366 : f32 to vector<2x16xf32>
    %699 = arith.addf %698, %697 : vector<2x16xf32>
    %cst_367 = arith.constant 1.000000e+00 : f32
    %700 = vector.broadcast %cst_367 : f32 to vector<2x16xf32>
    %701 = arith.divf %700, %699 : vector<2x16xf32>
    %702 = vector.extract_strided_slice %685 {offsets = [0, 32], sizes = [2, 16], strides = [1, 1]} : vector<2x64xf32> to vector<2x16xf32>
    %703 = math.tanh %702 : vector<2x16xf32>
    %704 = vector.extract_strided_slice %685 {offsets = [0, 48], sizes = [2, 16], strides = [1, 1]} : vector<2x64xf32> to vector<2x16xf32>
    %cst_368 = arith.constant 0.000000e+00 : f32
    %705 = vector.broadcast %cst_368 : f32 to vector<2x16xf32>
    %706 = arith.subf %705, %704 : vector<2x16xf32>
    %707 = math.exp %706 : vector<2x16xf32>
    %cst_369 = arith.constant 1.000000e+00 : f32
    %708 = vector.broadcast %cst_369 : f32 to vector<2x16xf32>
    %709 = arith.addf %708, %707 : vector<2x16xf32>
    %cst_370 = arith.constant 1.000000e+00 : f32
    %710 = vector.broadcast %cst_370 : f32 to vector<2x16xf32>
    %711 = arith.divf %710, %709 : vector<2x16xf32>
    %712 = arith.mulf %701, %682 : vector<2x16xf32>
    %713 = arith.mulf %693, %703 : vector<2x16xf32>
    %714 = arith.addf %712, %713 : vector<2x16xf32>
    %715 = math.tanh %714 : vector<2x16xf32>
    %716 = arith.mulf %711, %715 : vector<2x16xf32>
    %c1_371 = arith.constant 1 : index
    %c0_372 = arith.constant 0 : index
    %c0_373 = arith.constant 0 : index
    %717 = vector.load %arg7[%c1_371, %c0_372, %c0_373] : memref<2x2x16xf32, #tpu.memory_space<vmem>>, vector<1x2x16xf32>
    %718 = vector.shape_cast %717 : vector<1x2x16xf32> to vector<2x16xf32>
    %719 = vector.shape_cast %716 : vector<2x16xf32> to vector<1x2x16xf32>
    tpu.vector_store %arg7[%c1_371, %c0_372, %c0_373], %719 {strides = array<i32>} : memref<2x2x16xf32, #tpu.memory_space<vmem>>, vector<1x2x16xf32>,
    %c1_374 = arith.constant 1 : index
    %c0_375 = arith.constant 0 : index
    %c0_376 = arith.constant 0 : index
    %720 = vector.load %arg8[%c1_374, %c0_375, %c0_376] : memref<2x2x16xf32, #tpu.memory_space<vmem>>, vector<1x2x16xf32>
    %721 = vector.shape_cast %720 : vector<1x2x16xf32> to vector<2x16xf32>
    %722 = vector.shape_cast %714 : vector<2x16xf32> to vector<1x2x16xf32>
    tpu.vector_store %arg8[%c1_374, %c0_375, %c0_376], %722 {strides = array<i32>} : memref<2x2x16xf32, #tpu.memory_space<vmem>>, vector<1x2x16xf32>,
    %723 = arith.index_cast %675 : i32 to index
    %c0_377 = arith.constant 0 : index
    %c0_378 = arith.constant 0 : index
    %724 = vector.load %arg6[%723, %c0_377, %c0_378] : memref<8x2x16xf32, #tpu.memory_space<vmem>>, vector<1x2x16xf32>
    %725 = vector.shape_cast %724 : vector<1x2x16xf32> to vector<2x16xf32>
    %726 = vector.shape_cast %716 : vector<2x16xf32> to vector<1x2x16xf32>
    tpu.vector_store %arg6[%723, %c0_377, %c0_378], %726 {strides = array<i32>} : memref<8x2x16xf32, #tpu.memory_space<vmem>>, vector<1x2x16xf32>,
    %c7_i32_379 = arith.constant 7 : i32
    %727 = arith.index_cast %c7_i32_379 : i32 to index
    %c0_380 = arith.constant 0 : index
    %c0_381 = arith.constant 0 : index
    %728 = vector.load %arg1[%727, %c0_380, %c0_381] : memref<8x2x64xf32, #tpu.memory_space<vmem>>, vector<1x2x64xf32>
    %729 = vector.shape_cast %728 : vector<1x2x64xf32> to vector<2x64xf32>
    %c0_382 = arith.constant 0 : index
    %c0_383 = arith.constant 0 : index
    %c0_384 = arith.constant 0 : index
    %730 = vector.load %arg7[%c0_382, %c0_383, %c0_384] : memref<2x2x16xf32, #tpu.memory_space<vmem>>, vector<1x2x16xf32>
    %731 = vector.shape_cast %730 : vector<1x2x16xf32> to vector<2x16xf32>
    %c0_385 = arith.constant 0 : index
    %c0_386 = arith.constant 0 : index
    %c0_387 = arith.constant 0 : index
    %732 = vector.load %arg8[%c0_385, %c0_386, %c0_387] : memref<2x2x16xf32, #tpu.memory_space<vmem>>, vector<1x2x16xf32>
    %733 = vector.shape_cast %732 : vector<1x2x16xf32> to vector<2x16xf32>
    %734 = arith.truncf %731 : vector<2x16xf32> to vector<2x16xbf16>
    %cst_388 = arith.constant dense<0.000000e+00> : vector<2x64xf32>
    %735 = tpu.matmul %734, %4, %cst_388 {dimension_numbers = #tpu.dot_dimension_numbers<[1], [0], [0], [1], [0, 0, 1, 1], [], []>} : vector<2x16xbf16>, vector<16x64xbf16>, vector<2x64xf32> -> vector<2x64xf32>
    %736 = arith.addf %729, %735 : vector<2x64xf32>
    %737 = vector.extract_strided_slice %736 {offsets = [0, 0], sizes = [2, 16], strides = [1, 1]} : vector<2x64xf32> to vector<2x16xf32>
    %cst_389 = arith.constant 0.000000e+00 : f32
    %738 = vector.broadcast %cst_389 : f32 to vector<2x16xf32>
    %739 = arith.subf %738, %737 : vector<2x16xf32>
    %740 = math.exp %739 : vector<2x16xf32>
    %cst_390 = arith.constant 1.000000e+00 : f32
    %741 = vector.broadcast %cst_390 : f32 to vector<2x16xf32>
    %742 = arith.addf %741, %740 : vector<2x16xf32>
    %cst_391 = arith.constant 1.000000e+00 : f32
    %743 = vector.broadcast %cst_391 : f32 to vector<2x16xf32>
    %744 = arith.divf %743, %742 : vector<2x16xf32>
    %745 = vector.extract_strided_slice %736 {offsets = [0, 16], sizes = [2, 16], strides = [1, 1]} : vector<2x64xf32> to vector<2x16xf32>
    %cst_392 = arith.constant 0.000000e+00 : f32
    %746 = vector.broadcast %cst_392 : f32 to vector<2x16xf32>
    %747 = arith.subf %746, %745 : vector<2x16xf32>
    %748 = math.exp %747 : vector<2x16xf32>
    %cst_393 = arith.constant 1.000000e+00 : f32
    %749 = vector.broadcast %cst_393 : f32 to vector<2x16xf32>
    %750 = arith.addf %749, %748 : vector<2x16xf32>
    %cst_394 = arith.constant 1.000000e+00 : f32
    %751 = vector.broadcast %cst_394 : f32 to vector<2x16xf32>
    %752 = arith.divf %751, %750 : vector<2x16xf32>
    %753 = vector.extract_strided_slice %736 {offsets = [0, 32], sizes = [2, 16], strides = [1, 1]} : vector<2x64xf32> to vector<2x16xf32>
    %754 = math.tanh %753 : vector<2x16xf32>
    %755 = vector.extract_strided_slice %736 {offsets = [0, 48], sizes = [2, 16], strides = [1, 1]} : vector<2x64xf32> to vector<2x16xf32>
    %cst_395 = arith.constant 0.000000e+00 : f32
    %756 = vector.broadcast %cst_395 : f32 to vector<2x16xf32>
    %757 = arith.subf %756, %755 : vector<2x16xf32>
    %758 = math.exp %757 : vector<2x16xf32>
    %cst_396 = arith.constant 1.000000e+00 : f32
    %759 = vector.broadcast %cst_396 : f32 to vector<2x16xf32>
    %760 = arith.addf %759, %758 : vector<2x16xf32>
    %cst_397 = arith.constant 1.000000e+00 : f32
    %761 = vector.broadcast %cst_397 : f32 to vector<2x16xf32>
    %762 = arith.divf %761, %760 : vector<2x16xf32>
    %763 = arith.mulf %752, %733 : vector<2x16xf32>
    %764 = arith.mulf %744, %754 : vector<2x16xf32>
    %765 = arith.addf %763, %764 : vector<2x16xf32>
    %766 = math.tanh %765 : vector<2x16xf32>
    %767 = arith.mulf %762, %766 : vector<2x16xf32>
    %c0_398 = arith.constant 0 : index
    %c0_399 = arith.constant 0 : index
    %c0_400 = arith.constant 0 : index
    %768 = vector.load %arg7[%c0_398, %c0_399, %c0_400] : memref<2x2x16xf32, #tpu.memory_space<vmem>>, vector<1x2x16xf32>
    %769 = vector.shape_cast %768 : vector<1x2x16xf32> to vector<2x16xf32>
    %770 = vector.shape_cast %767 : vector<2x16xf32> to vector<1x2x16xf32>
    tpu.vector_store %arg7[%c0_398, %c0_399, %c0_400], %770 {strides = array<i32>} : memref<2x2x16xf32, #tpu.memory_space<vmem>>, vector<1x2x16xf32>,
    %c0_401 = arith.constant 0 : index
    %c0_402 = arith.constant 0 : index
    %c0_403 = arith.constant 0 : index
    %771 = vector.load %arg8[%c0_401, %c0_402, %c0_403] : memref<2x2x16xf32, #tpu.memory_space<vmem>>, vector<1x2x16xf32>
    %772 = vector.shape_cast %771 : vector<1x2x16xf32> to vector<2x16xf32>
    %773 = vector.shape_cast %765 : vector<2x16xf32> to vector<1x2x16xf32>
    tpu.vector_store %arg8[%c0_401, %c0_402, %c0_403], %773 {strides = array<i32>} : memref<2x2x16xf32, #tpu.memory_space<vmem>>, vector<1x2x16xf32>,
    %774 = arith.index_cast %c7_i32_379 : i32 to index
    %c0_404 = arith.constant 0 : index
    %c0_405 = arith.constant 0 : index
    %775 = vector.load %arg5[%774, %c0_404, %c0_405] : memref<8x2x16xf32, #tpu.memory_space<vmem>>, vector<1x2x16xf32>
    %776 = vector.shape_cast %775 : vector<1x2x16xf32> to vector<2x16xf32>
    %777 = vector.shape_cast %767 : vector<2x16xf32> to vector<1x2x16xf32>
    tpu.vector_store %arg5[%774, %c0_404, %c0_405], %777 {strides = array<i32>} : memref<8x2x16xf32, #tpu.memory_space<vmem>>, vector<1x2x16xf32>,
    %c7_i32_406 = arith.constant 7 : i32
    %778 = arith.subi %c7_i32_406, %c7_i32_379 : i32
    %779 = arith.index_cast %778 : i32 to index
    %c0_407 = arith.constant 0 : index
    %c0_408 = arith.constant 0 : index
    %780 = vector.load %arg2[%779, %c0_407, %c0_408] : memref<8x2x64xf32, #tpu.memory_space<vmem>>, vector<1x2x64xf32>
    %781 = vector.shape_cast %780 : vector<1x2x64xf32> to vector<2x64xf32>
    %c1_409 = arith.constant 1 : index
    %c0_410 = arith.constant 0 : index
    %c0_411 = arith.constant 0 : index
    %782 = vector.load %arg7[%c1_409, %c0_410, %c0_411] : memref<2x2x16xf32, #tpu.memory_space<vmem>>, vector<1x2x16xf32>
    %783 = vector.shape_cast %782 : vector<1x2x16xf32> to vector<2x16xf32>
    %c1_412 = arith.constant 1 : index
    %c0_413 = arith.constant 0 : index
    %c0_414 = arith.constant 0 : index
    %784 = vector.load %arg8[%c1_412, %c0_413, %c0_414] : memref<2x2x16xf32, #tpu.memory_space<vmem>>, vector<1x2x16xf32>
    %785 = vector.shape_cast %784 : vector<1x2x16xf32> to vector<2x16xf32>
    %786 = arith.truncf %783 : vector<2x16xf32> to vector<2x16xbf16>
    %cst_415 = arith.constant dense<0.000000e+00> : vector<2x64xf32>
    %787 = tpu.matmul %786, %5, %cst_415 {dimension_numbers = #tpu.dot_dimension_numbers<[1], [0], [0], [1], [0, 0, 1, 1], [], []>} : vector<2x16xbf16>, vector<16x64xbf16>, vector<2x64xf32> -> vector<2x64xf32>
    %788 = arith.addf %781, %787 : vector<2x64xf32>
    %789 = vector.extract_strided_slice %788 {offsets = [0, 0], sizes = [2, 16], strides = [1, 1]} : vector<2x64xf32> to vector<2x16xf32>
    %cst_416 = arith.constant 0.000000e+00 : f32
    %790 = vector.broadcast %cst_416 : f32 to vector<2x16xf32>
    %791 = arith.subf %790, %789 : vector<2x16xf32>
    %792 = math.exp %791 : vector<2x16xf32>
    %cst_417 = arith.constant 1.000000e+00 : f32
    %793 = vector.broadcast %cst_417 : f32 to vector<2x16xf32>
    %794 = arith.addf %793, %792 : vector<2x16xf32>
    %cst_418 = arith.constant 1.000000e+00 : f32
    %795 = vector.broadcast %cst_418 : f32 to vector<2x16xf32>
    %796 = arith.divf %795, %794 : vector<2x16xf32>
    %797 = vector.extract_strided_slice %788 {offsets = [0, 16], sizes = [2, 16], strides = [1, 1]} : vector<2x64xf32> to vector<2x16xf32>
    %cst_419 = arith.constant 0.000000e+00 : f32
    %798 = vector.broadcast %cst_419 : f32 to vector<2x16xf32>
    %799 = arith.subf %798, %797 : vector<2x16xf32>
    %800 = math.exp %799 : vector<2x16xf32>
    %cst_420 = arith.constant 1.000000e+00 : f32
    %801 = vector.broadcast %cst_420 : f32 to vector<2x16xf32>
    %802 = arith.addf %801, %800 : vector<2x16xf32>
    %cst_421 = arith.constant 1.000000e+00 : f32
    %803 = vector.broadcast %cst_421 : f32 to vector<2x16xf32>
    %804 = arith.divf %803, %802 : vector<2x16xf32>
    %805 = vector.extract_strided_slice %788 {offsets = [0, 32], sizes = [2, 16], strides = [1, 1]} : vector<2x64xf32> to vector<2x16xf32>
    %806 = math.tanh %805 : vector<2x16xf32>
    %807 = vector.extract_strided_slice %788 {offsets = [0, 48], sizes = [2, 16], strides = [1, 1]} : vector<2x64xf32> to vector<2x16xf32>
    %cst_422 = arith.constant 0.000000e+00 : f32
    %808 = vector.broadcast %cst_422 : f32 to vector<2x16xf32>
    %809 = arith.subf %808, %807 : vector<2x16xf32>
    %810 = math.exp %809 : vector<2x16xf32>
    %cst_423 = arith.constant 1.000000e+00 : f32
    %811 = vector.broadcast %cst_423 : f32 to vector<2x16xf32>
    %812 = arith.addf %811, %810 : vector<2x16xf32>
    %cst_424 = arith.constant 1.000000e+00 : f32
    %813 = vector.broadcast %cst_424 : f32 to vector<2x16xf32>
    %814 = arith.divf %813, %812 : vector<2x16xf32>
    %815 = arith.mulf %804, %785 : vector<2x16xf32>
    %816 = arith.mulf %796, %806 : vector<2x16xf32>
    %817 = arith.addf %815, %816 : vector<2x16xf32>
    %818 = math.tanh %817 : vector<2x16xf32>
    %819 = arith.mulf %814, %818 : vector<2x16xf32>
    %c1_425 = arith.constant 1 : index
    %c0_426 = arith.constant 0 : index
    %c0_427 = arith.constant 0 : index
    %820 = vector.load %arg7[%c1_425, %c0_426, %c0_427] : memref<2x2x16xf32, #tpu.memory_space<vmem>>, vector<1x2x16xf32>
    %821 = vector.shape_cast %820 : vector<1x2x16xf32> to vector<2x16xf32>
    %822 = vector.shape_cast %819 : vector<2x16xf32> to vector<1x2x16xf32>
    tpu.vector_store %arg7[%c1_425, %c0_426, %c0_427], %822 {strides = array<i32>} : memref<2x2x16xf32, #tpu.memory_space<vmem>>, vector<1x2x16xf32>,
    %c1_428 = arith.constant 1 : index
    %c0_429 = arith.constant 0 : index
    %c0_430 = arith.constant 0 : index
    %823 = vector.load %arg8[%c1_428, %c0_429, %c0_430] : memref<2x2x16xf32, #tpu.memory_space<vmem>>, vector<1x2x16xf32>
    %824 = vector.shape_cast %823 : vector<1x2x16xf32> to vector<2x16xf32>
    %825 = vector.shape_cast %817 : vector<2x16xf32> to vector<1x2x16xf32>
    tpu.vector_store %arg8[%c1_428, %c0_429, %c0_430], %825 {strides = array<i32>} : memref<2x2x16xf32, #tpu.memory_space<vmem>>, vector<1x2x16xf32>,
    %826 = arith.index_cast %778 : i32 to index
    %c0_431 = arith.constant 0 : index
    %c0_432 = arith.constant 0 : index
    %827 = vector.load %arg6[%826, %c0_431, %c0_432] : memref<8x2x16xf32, #tpu.memory_space<vmem>>, vector<1x2x16xf32>
    %828 = vector.shape_cast %827 : vector<1x2x16xf32> to vector<2x16xf32>
    %829 = vector.shape_cast %819 : vector<2x16xf32> to vector<1x2x16xf32>
    tpu.vector_store %arg6[%826, %c0_431, %c0_432], %829 {strides = array<i32>} : memref<8x2x16xf32, #tpu.memory_space<vmem>>, vector<1x2x16xf32>,
    %c8_i32 = arith.constant 8 : i32
    return
  }
  func.func @transform_0(%arg0: i32) -> (i32, i32, i32) {
    %c0_i32 = arith.constant 0 : i32
    %c0_i32_0 = arith.constant 0 : i32
    %c0_i32_1 = arith.constant 0 : i32
    %c0_i32_2 = arith.constant 0 : i32
    return %c0_i32, %c0_i32_0, %c0_i32_1 : i32, i32, i32
  }
  func.func @transform_1(%arg0: i32) -> (i32, i32, i32) {
    %c0_i32 = arith.constant 0 : i32
    %c0_i32_0 = arith.constant 0 : i32
    %c0_i32_1 = arith.constant 0 : i32
    %c0_i32_2 = arith.constant 0 : i32
    return %c0_i32, %c0_i32_0, %c0_i32_1 : i32, i32, i32
  }
  func.func @transform_2(%arg0: i32) -> (i32, i32) {
    %c0_i32 = arith.constant 0 : i32
    %c0_i32_0 = arith.constant 0 : i32
    %c0_i32_1 = arith.constant 0 : i32
    return %c0_i32, %c0_i32_0 : i32, i32
  }
  func.func @transform_3(%arg0: i32) -> (i32, i32) {
    %c0_i32 = arith.constant 0 : i32
    %c0_i32_0 = arith.constant 0 : i32
    %c0_i32_1 = arith.constant 0 : i32
    return %c0_i32, %c0_i32_0 : i32, i32
  }
  func.func @transform_4(%arg0: i32) -> (i32, i32, i32) {
    %c0_i32 = arith.constant 0 : i32
    %c0_i32_0 = arith.constant 0 : i32
    %c0_i32_1 = arith.constant 0 : i32
    %c0_i32_2 = arith.constant 0 : i32
    return %c0_i32, %c0_i32_0, %c0_i32_1 : i32, i32, i32
  }
  func.func @transform_5(%arg0: i32) -> (i32, i32, i32) {
    %c0_i32 = arith.constant 0 : i32
    %c0_i32_0 = arith.constant 0 : i32
    %c0_i32_1 = arith.constant 0 : i32
    %c0_i32_2 = arith.constant 0 : i32
    return %c0_i32, %c0_i32_0, %c0_i32_1 : i32, i32, i32
  }
}

</mosaic_0001>

<llo_original>
// kernel: forward.12
$region0: #{forward.12}
  #allocation0 [shape = 'u32[]', space=smem, size = 0x4, offset = 0x4, fixed_abs, tag = 'smem constant byte address 0x4 - core index']
  #allocation1 [shape = 'u32[144,128]{1,0:T(1,128)}', space=vmem, size = 0x12000, scoped, tag = 'internal scratch']
  %s0 = inlined_call_operand.vmem [shape: f32[16,32], index: 0, kind: input, shape index: {}]
  %s1 = inlined_call_operand.vmem [shape: bf16[32,96], index: 1, kind: input, shape index: {}]
  %s2 = inlined_call_operand.vmem [shape: f32[1,96], index: 2, kind: input, shape index: {}]
  %s3 = inlined_call_operand.vmem [shape: f32[16,96], index: 3, kind: output, shape index: {}]
  %s4 = sld [smem:[#allocation0]]
  $region22: #{forward.12} parent=0
    _
  %s6 = ssub.s32 1, %s4
  %s7 = scalar_select 0, %s6, %s4
  // Predicated region
  $region2: #{forward.12} parent=0 // pred_check
    _
  $region3: #{forward.12} parent=0 // pred_check_branch
    %9 = sbr.rel (0) target = $region5
  $region4: #{forward.12} parent=0 // pred_region
    _
  $region5: #{forward.12} parent=0 // pred_fallthru
    _
  // Predicated region
  $region6: #{forward.12} parent=0 // pred_check
    _
  $region7: #{forward.12} parent=0 // pred_check_branch
    %11 = sbr.rel (0) target = $region9
  $region8: #{forward.12} parent=0 // pred_region
    _
  $region9: #{forward.12} parent=0 // pred_fallthru
    _
  // Predicated region
  $region10: #{forward.12} parent=0 // pred_check
    _
  $region11: #{forward.12} parent=0 // pred_check_branch
    %13 = sbr.rel (0) target = $region13
  $region12: #{forward.12} parent=0 // pred_region
    _
  $region13: #{forward.12} parent=0 // pred_fallthru
    _
  %v15 = vld [vmem:[%s0] sm:$0xff]
  %v16 = vld [vmem:[%s0 + $0x8] sm:$0xff]
  %v17 = vpack.c.bf16 %v16, %v15
  %v18 = vld [vmem:[%s1] sm:$0xf]
  %v19 = vld [vmem:[%s1 + $0x4] sm:$0xf]
  %v20 = vld [vmem:[%s1 + $0x8] sm:$0xf]
  %v21 = vld [vmem:[%s1 + $0xc] sm:$0xf]
  %v22 = vld [vmem:[%s2] sm:$0x1]
  %v24 = vlaneseq
  %v25 = vshrl.u32 %v24, 7
  %v26 = vsub.s32 0, %v25
  %v27 = vrot.slane %v22, %v26
  %v33 = vunpack.c.l.b16 %v18
  %v34 = vunpack.c.l.b16 %v19
  %v35 = vunpack.c.l.b16 %v20
  %v36 = vunpack.c.l.b16 %v21
  %v37 = vpack.c.b16 %v34, %v33
  %v38 = vpack.c.b16 %v36, %v35
  %vm41 = vcmask 261120
  %v43 = vsel %vm41, %v17, 0
  %45 = vmatprep.subr.bf16.mxu0 0
  %46 = vmatpush1.bf16.msra.mxu0 0
  %47 = vmatprep.subr.bf16.mxu0 0
  %48 = vmatpush1.bf16.msra.mxu0 0
  %49 = vmatprep.subr.bf16.mxu0 0
  %50 = vmatpush1.bf16.msra.mxu0 0
  %51 = vmatprep.subr.bf16.mxu0 0
  %52 = vmatpush1.bf16.msra.mxu0 0
  %53 = vmatprep.subr.bf16.mxu0 0
  %54 = vmatpush1.bf16.msra.mxu0 0
  %55 = vmatprep.subr.bf16.mxu0 0
  %56 = vmatpush1.bf16.msra.mxu0 0
  %57 = vmatprep.subr.bf16.mxu0 0
  %58 = vmatpush1.bf16.msra.mxu0 %v38
  %59 = vmatprep.subr.bf16.mxu0 0
  %60 = vmatpush1.bf16.msra.mxu0 %v37
  %61 = vmatprep.subr.bf16.mxu0 0
  %62 = vmatpush2.bf16.msra.mxu0 0
  %63 = vmatprep.subr.bf16.mxu0 0
  %64 = vmatpush2.bf16.msra.mxu0 0
  %65 = vmatprep.subr.bf16.mxu0 0
  %66 = vmatpush2.bf16.msra.mxu0 0
  %67 = vmatprep.subr.bf16.mxu0 0
  %68 = vmatpush2.bf16.msra.mxu0 0
  %69 = vmatprep.subr.bf16.mxu0 0
  %70 = vmatpush2.bf16.msra.mxu0 0
  %71 = vmatprep.subr.bf16.mxu0 0
  %72 = vmatpush2.bf16.msra.mxu0 0
  %73 = vmatprep.subr.bf16.mxu0 0
  %74 = vmatpush2.bf16.msra.mxu0 0
  %75 = vmatprep.subr.bf16.mxu0 0
  %76 = vmatpush2.bf16.msra.mxu0 0
  %77 = vmatprep.mubr.bf16.mxu0 0
  %78 = vmatmul.mubr.bf16.gmra.mxu0 %v43
  %v79 = vpop.f32.mrf.mxu0
  %v80 = vadd.f32 %v27, %v79
  %v81 = vpop.f32.mrf.mxu0
  %v82 = vpop.f32.mrf.mxu0
  %v83 = vadd.f32 %v27, %v82
  %v84 = vpop.f32.mrf.mxu0
  %85 = vdwg.mxu0
  %vm86 = vcmask 785408
  %87 = vst.msk [vmem:[%s3] sm:$0xff] %vm86, %v80
  %88 = vst.msk [vmem:[%s3 + $0x8] sm:$0xff] %vm86, %v83
  // Predicated region
  $region14: #{forward.12} parent=0 // pred_check
    _
  $region15: #{forward.12} parent=0 // pred_check_branch
    %90 = sbr.rel (0) target = $region17
  $region16: #{forward.12} parent=0 // pred_region
    _
  $region17: #{forward.12} parent=0 // pred_fallthru
    _
  // Predicated region
  $region18: #{forward.12} parent=0 // pred_check
    _
  $region19: #{forward.12} parent=0 // pred_check_branch
    %92 = sbr.rel (0) target = $region21
  $region20: #{forward.12} parent=0 // pred_region
    _
  $region21: #{forward.12} parent=0 // pred_fallthru
    _

// kernel: forward.14
$region0: #{forward.14}
  #allocation0 [shape = 'u32[]', space=smem, size = 0x4, offset = 0x4, fixed_abs, tag = 'smem constant byte address 0x4 - core index']
  #allocation1 [shape = 'u32[144,128]{1,0:T(1,128)}', space=vmem, size = 0x12000, scoped, tag = 'internal scratch']
  %s0 = inlined_call_operand.vmem [shape: f32[16,32], index: 0, kind: input, shape index: {}]
  %s1 = inlined_call_operand.vmem [shape: f32[16,32], index: 1, kind: input, shape index: {}]
  %s2 = inlined_call_operand.vmem [shape: bf16[32,32], index: 2, kind: input, shape index: {}]
  %s3 = inlined_call_operand.vmem [shape: f32[1,32], index: 3, kind: input, shape index: {}]
  %s4 = inlined_call_operand.vmem [shape: f32[1,32], index: 4, kind: input, shape index: {}]
  %s5 = inlined_call_operand.vmem [shape: f32[1,32], index: 5, kind: input, shape index: {}]
  %s6 = inlined_call_operand.vmem [shape: f32[16,32], index: 6, kind: output, shape index: {}]
  %s7 = sld [smem:[#allocation0]]
  $region34: #{forward.14} parent=0
    _
  %s9 = ssub.s32 1, %s7
  %s10 = scalar_select 0, %s9, %s7
  // Predicated region
  $region2: #{forward.14} parent=0 // pred_check
    _
  $region3: #{forward.14} parent=0 // pred_check_branch
    %12 = sbr.rel (0) target = $region5
  $region4: #{forward.14} parent=0 // pred_region
    _
  $region5: #{forward.14} parent=0 // pred_fallthru
    _
  // Predicated region
  $region6: #{forward.14} parent=0 // pred_check
    _
  $region7: #{forward.14} parent=0 // pred_check_branch
    %14 = sbr.rel (0) target = $region9
  $region8: #{forward.14} parent=0 // pred_region
    _
  $region9: #{forward.14} parent=0 // pred_fallthru
    _
  // Predicated region
  $region10: #{forward.14} parent=0 // pred_check
    _
  $region11: #{forward.14} parent=0 // pred_check_branch
    %16 = sbr.rel (0) target = $region13
  $region12: #{forward.14} parent=0 // pred_region
    _
  $region13: #{forward.14} parent=0 // pred_fallthru
    _
  // Predicated region
  $region14: #{forward.14} parent=0 // pred_check
    _
  $region15: #{forward.14} parent=0 // pred_check_branch
    %18 = sbr.rel (0) target = $region17
  $region16: #{forward.14} parent=0 // pred_region
    _
  $region17: #{forward.14} parent=0 // pred_fallthru
    _
  // Predicated region
  $region18: #{forward.14} parent=0 // pred_check
    _
  $region19: #{forward.14} parent=0 // pred_check_branch
    %20 = sbr.rel (0) target = $region21
  $region20: #{forward.14} parent=0 // pred_region
    _
  $region21: #{forward.14} parent=0 // pred_fallthru
    _
  // Predicated region
  $region22: #{forward.14} parent=0 // pred_check
    _
  $region23: #{forward.14} parent=0 // pred_check_branch
    %22 = sbr.rel (0) target = $region25
  $region24: #{forward.14} parent=0 // pred_region
    _
  $region25: #{forward.14} parent=0 // pred_fallthru
    _
  %v24 = vld [vmem:[%s0] sm:$0xff]
  %v25 = vld [vmem:[%s0 + $0x8] sm:$0xff]
  %v26 = vpack.c.bf16 %v25, %v24
  %v27 = vld [vmem:[%s2] sm:$0xf]
  %v28 = vld [vmem:[%s2 + $0x4] sm:$0xf]
  %v29 = vld [vmem:[%s2 + $0x8] sm:$0xf]
  %v30 = vld [vmem:[%s2 + $0xc] sm:$0xf]
  %v31 = vld [vmem:[%s3] sm:$0x1]
  %v33 = vlaneseq
  %v34 = vshrl.u32 %v33, 7
  %v35 = vsub.s32 0, %v34
  %v36 = vrot.slane %v31, %v35
  %v42 = vunpack.c.l.b16 %v27
  %v43 = vunpack.c.l.b16 %v28
  %v44 = vunpack.c.l.b16 %v29
  %v45 = vunpack.c.l.b16 %v30
  %v46 = vpack.c.b16 %v43, %v42
  %v47 = vpack.c.b16 %v45, %v44
  %vm50 = vcmask 261120
  %v52 = vsel %vm50, %v26, 0
  %54 = vmatprep.subr.bf16.mxu0 0
  %55 = vmatpush1.bf16.msra.mxu0 0
  %56 = vmatprep.subr.bf16.mxu0 0
  %57 = vmatpush1.bf16.msra.mxu0 0
  %58 = vmatprep.subr.bf16.mxu0 0
  %59 = vmatpush1.bf16.msra.mxu0 0
  %60 = vmatprep.subr.bf16.mxu0 0
  %61 = vmatpush1.bf16.msra.mxu0 0
  %62 = vmatprep.subr.bf16.mxu0 0
  %63 = vmatpush1.bf16.msra.mxu0 0
  %64 = vmatprep.subr.bf16.mxu0 0
  %65 = vmatpush1.bf16.msra.mxu0 0
  %66 = vmatprep.subr.bf16.mxu0 0
  %67 = vmatpush1.bf16.msra.mxu0 %v47
  %68 = vmatprep.subr.bf16.mxu0 0
  %69 = vmatpush1.bf16.msra.mxu0 %v46
  %70 = vmatprep.subr.bf16.mxu0 0
  %71 = vmatpush2.bf16.msra.mxu0 0
  %72 = vmatprep.subr.bf16.mxu0 0
  %73 = vmatpush2.bf16.msra.mxu0 0
  %74 = vmatprep.subr.bf16.mxu0 0
  %75 = vmatpush2.bf16.msra.mxu0 0
  %76 = vmatprep.subr.bf16.mxu0 0
  %77 = vmatpush2.bf16.msra.mxu0 0
  %78 = vmatprep.subr.bf16.mxu0 0
  %79 = vmatpush2.bf16.msra.mxu0 0
  %80 = vmatprep.subr.bf16.mxu0 0
  %81 = vmatpush2.bf16.msra.mxu0 0
  %82 = vmatprep.subr.bf16.mxu0 0
  %83 = vmatpush2.bf16.msra.mxu0 0
  %84 = vmatprep.subr.bf16.mxu0 0
  %85 = vmatpush2.bf16.msra.mxu0 0
  %86 = vmatprep.mubr.bf16.mxu0 0
  %87 = vmatmul.mubr.bf16.gmra.mxu0 %v52
  %v88 = vpop.f32.mrf.mxu0
  %v89 = vadd.f32 %v36, %v88
  %v90 = vpop.f32.mrf.mxu0
  %v91 = vpop.f32.mrf.mxu0
  %v92 = vadd.f32 %v36, %v91
  %v93 = vpop.f32.mrf.mxu0
  %94 = vdwg.mxu0
  %v95 = vld [vmem:[%s1] sm:$0xff]
  %v96 = vld [vmem:[%s1 + $0x8] sm:$0xff]
  %v97 = vadd.f32 %v89, %v95
  %v98 = vadd.f32 %v92, %v96
  %v99 = vsel %vm50, %v97, 0.0
  %100 = vadd.xlane.f32.xlu0 %v99
  %v101 = vpop.xlane.xlu0 %100
  %v102 = vsel %vm50, %v98, 0.0
  %103 = vadd.xlane.f32.xlu0 %v102
  %v104 = vpop.xlane.xlu0 %103
  %v105 = vrcp.pop 32.0
  %v106 = vmul.f32 %v101, %v105
  %v107 = vmul.f32 %v104, %v105
  %v108 = vsub.f32 %v97, %v106
  %v109 = vsub.f32 %v98, %v107
  %v110 = vmul.f32 %v108, %v108
  %v111 = vmul.f32 %v109, %v109
  %v112 = vsel %vm50, %v110, 0.0
  %113 = vadd.xlane.f32.xlu0 %v112
  %v114 = vpop.xlane.xlu0 %113
  %v115 = vsel %vm50, %v111, 0.0
  %116 = vadd.xlane.f32.xlu0 %v115
  %v117 = vpop.xlane.xlu0 %116
  %v118 = vmul.f32 %v114, %v105
  %v119 = vmul.f32 %v117, %v105
  %v120 = vadd.f32 %v118, 1e-05
  %v121 = vadd.f32 %v119, 1e-05
  %v122 = vrsqrt.pop %v120
  %v123 = vrsqrt.pop %v121
  %v124 = vmul.f32 %v108, %v122
  %v125 = vmul.f32 %v109, %v123
  %v126 = vld [vmem:[%s4] sm:$0x1]
  %v128 = vlaneseq
  %v129 = vshrl.u32 %v128, 7
  %v130 = vsub.s32 0, %v129
  %v131 = vrot.slane %v126, %v130
  %v133 = vmul.f32 %v124, %v131
  %v134 = vmul.f32 %v125, %v131
  %v135 = vld [vmem:[%s5] sm:$0x1]
  %v137 = vlaneseq
  %v138 = vshrl.u32 %v137, 7
  %v139 = vsub.s32 0, %v138
  %v140 = vrot.slane %v135, %v139
  %v142 = vadd.f32 %v133, %v140
  %v143 = vadd.f32 %v134, %v140
  %144 = vst.msk [vmem:[%s6] sm:$0xff] %vm50, %v142
  %145 = vst.msk [vmem:[%s6 + $0x8] sm:$0xff] %vm50, %v143
  // Predicated region
  $region26: #{forward.14} parent=0 // pred_check
    _
  $region27: #{forward.14} parent=0 // pred_check_branch
    %147 = sbr.rel (0) target = $region29
  $region28: #{forward.14} parent=0 // pred_region
    _
  $region29: #{forward.14} parent=0 // pred_fallthru
    _
  // Predicated region
  $region30: #{forward.14} parent=0 // pred_check
    _
  $region31: #{forward.14} parent=0 // pred_check_branch
    %149 = sbr.rel (0) target = $region33
  $region32: #{forward.14} parent=0 // pred_region
    _
  $region33: #{forward.14} parent=0 // pred_fallthru
    _

// kernel: forward.15
$region0: #{forward.15}
  #allocation0 [shape = 'u32[]', space=smem, size = 0x4, offset = 0x4, fixed_abs, tag = 'smem constant byte address 0x4 - core index']
  #allocation1 [shape = 'u32[144,128]{1,0:T(1,128)}', space=vmem, size = 0x12000, scoped, tag = 'internal scratch']
  %s0 = inlined_call_operand.vmem [shape: f32[16,32], index: 0, kind: input, shape index: {}]
  %s1 = inlined_call_operand.vmem [shape: bf16[32,64], index: 1, kind: input, shape index: {}]
  %s2 = inlined_call_operand.vmem [shape: f32[1,64], index: 2, kind: input, shape index: {}]
  %s3 = inlined_call_operand.vmem [shape: bf16[64,32], index: 3, kind: input, shape index: {}]
  %s4 = inlined_call_operand.vmem [shape: f32[1,32], index: 4, kind: input, shape index: {}]
  %s5 = inlined_call_operand.vmem [shape: f32[1,32], index: 5, kind: input, shape index: {}]
  %s6 = inlined_call_operand.vmem [shape: f32[1,32], index: 6, kind: input, shape index: {}]
  %s7 = inlined_call_operand.vmem [shape: f32[16,32], index: 7, kind: output, shape index: {}]
  %s8 = sld [smem:[#allocation0]]
  $region38: #{forward.15} parent=0
    _
  %s10 = ssub.s32 1, %s8
  %s11 = scalar_select 0, %s10, %s8
  // Predicated region
  $region2: #{forward.15} parent=0 // pred_check
    _
  $region3: #{forward.15} parent=0 // pred_check_branch
    %13 = sbr.rel (0) target = $region5
  $region4: #{forward.15} parent=0 // pred_region
    _
  $region5: #{forward.15} parent=0 // pred_fallthru
    _
  // Predicated region
  $region6: #{forward.15} parent=0 // pred_check
    _
  $region7: #{forward.15} parent=0 // pred_check_branch
    %15 = sbr.rel (0) target = $region9
  $region8: #{forward.15} parent=0 // pred_region
    _
  $region9: #{forward.15} parent=0 // pred_fallthru
    _
  // Predicated region
  $region10: #{forward.15} parent=0 // pred_check
    _
  $region11: #{forward.15} parent=0 // pred_check_branch
    %17 = sbr.rel (0) target = $region13
  $region12: #{forward.15} parent=0 // pred_region
    _
  $region13: #{forward.15} parent=0 // pred_fallthru
    _
  // Predicated region
  $region14: #{forward.15} parent=0 // pred_check
    _
  $region15: #{forward.15} parent=0 // pred_check_branch
    %19 = sbr.rel (0) target = $region17
  $region16: #{forward.15} parent=0 // pred_region
    _
  $region17: #{forward.15} parent=0 // pred_fallthru
    _
  // Predicated region
  $region18: #{forward.15} parent=0 // pred_check
    _
  $region19: #{forward.15} parent=0 // pred_check_branch
    %21 = sbr.rel (0) target = $region21
  $region20: #{forward.15} parent=0 // pred_region
    _
  $region21: #{forward.15} parent=0 // pred_fallthru
    _
  // Predicated region
  $region22: #{forward.15} parent=0 // pred_check
    _
  $region23: #{forward.15} parent=0 // pred_check_branch
    %23 = sbr.rel (0) target = $region25
  $region24: #{forward.15} parent=0 // pred_region
    _
  $region25: #{forward.15} parent=0 // pred_fallthru
    _
  // Predicated region
  $region26: #{forward.15} parent=0 // pred_check
    _
  $region27: #{forward.15} parent=0 // pred_check_branch
    %25 = sbr.rel (0) target = $region29
  $region28: #{forward.15} parent=0 // pred_region
    _
  $region29: #{forward.15} parent=0 // pred_fallthru
    _
  %v27 = vld [vmem:[%s0] sm:$0xff]
  %v28 = vld [vmem:[%s0 + $0x8] sm:$0xff]
  %v29 = vpack.c.bf16 %v28, %v27
  %v30 = vld [vmem:[%s1] sm:$0xf]
  %v31 = vld [vmem:[%s1 + $0x4] sm:$0xf]
  %v32 = vld [vmem:[%s1 + $0x8] sm:$0xf]
  %v33 = vld [vmem:[%s1 + $0xc] sm:$0xf]
  %v34 = vld [vmem:[%s2] sm:$0x1]
  %v36 = vlaneseq
  %v37 = vshrl.u32 %v36, 7
  %v38 = vsub.s32 0, %v37
  %v39 = vrot.slane %v34, %v38
  %v45 = vunpack.c.l.b16 %v30
  %v46 = vunpack.c.l.b16 %v31
  %v47 = vunpack.c.l.b16 %v32
  %v48 = vunpack.c.l.b16 %v33
  %v49 = vpack.c.b16 %v46, %v45
  %v50 = vpack.c.b16 %v48, %v47
  %vm53 = vcmask 261120
  %v55 = vsel %vm53, %v29, 0
  %57 = vmatprep.subr.bf16.mxu0 0
  %58 = vmatpush1.bf16.msra.mxu0 0
  %59 = vmatprep.subr.bf16.mxu0 0
  %60 = vmatpush1.bf16.msra.mxu0 0
  %61 = vmatprep.subr.bf16.mxu0 0
  %62 = vmatpush1.bf16.msra.mxu0 0
  %63 = vmatprep.subr.bf16.mxu0 0
  %64 = vmatpush1.bf16.msra.mxu0 0
  %65 = vmatprep.subr.bf16.mxu0 0
  %66 = vmatpush1.bf16.msra.mxu0 0
  %67 = vmatprep.subr.bf16.mxu0 0
  %68 = vmatpush1.bf16.msra.mxu0 0
  %69 = vmatprep.subr.bf16.mxu0 0
  %70 = vmatpush1.bf16.msra.mxu0 %v50
  %71 = vmatprep.subr.bf16.mxu0 0
  %72 = vmatpush1.bf16.msra.mxu0 %v49
  %73 = vmatprep.subr.bf16.mxu0 0
  %74 = vmatpush2.bf16.msra.mxu0 0
  %75 = vmatprep.subr.bf16.mxu0 0
  %76 = vmatpush2.bf16.msra.mxu0 0
  %77 = vmatprep.subr.bf16.mxu0 0
  %78 = vmatpush2.bf16.msra.mxu0 0
  %79 = vmatprep.subr.bf16.mxu0 0
  %80 = vmatpush2.bf16.msra.mxu0 0
  %81 = vmatprep.subr.bf16.mxu0 0
  %82 = vmatpush2.bf16.msra.mxu0 0
  %83 = vmatprep.subr.bf16.mxu0 0
  %84 = vmatpush2.bf16.msra.mxu0 0
  %85 = vmatprep.subr.bf16.mxu0 0
  %86 = vmatpush2.bf16.msra.mxu0 0
  %87 = vmatprep.subr.bf16.mxu0 0
  %88 = vmatpush2.bf16.msra.mxu0 0
  %89 = vmatprep.mubr.bf16.mxu0 0
  %90 = vmatmul.mubr.bf16.gmra.mxu0 %v55
  %v91 = vpop.f32.mrf.mxu0
  %v92 = vadd.f32 %v39, %v91
  %v93 = vpop.f32.mrf.mxu0
  %v94 = vpop.f32.mrf.mxu0
  %v95 = vadd.f32 %v39, %v94
  %v96 = vpop.f32.mrf.mxu0
  %97 = vdwg.mxu0
  %v98 = vmax.f32 %v92, 0.0
  %v99 = vmax.f32 %v95, 0.0
  %v100 = vpack.c.bf16 %v99, %v98
  %v101 = vld [vmem:[%s3] sm:$0xf]
  %v102 = vld [vmem:[%s3 + $0x4] sm:$0xf]
  %v103 = vld [vmem:[%s3 + $0x8] sm:$0xf]
  %v104 = vld [vmem:[%s3 + $0xc] sm:$0xf]
  %v105 = vld [vmem:[%s3 + $0x10] sm:$0xf]
  %v106 = vld [vmem:[%s3 + $0x14] sm:$0xf]
  %v107 = vld [vmem:[%s3 + $0x18] sm:$0xf]
  %v108 = vld [vmem:[%s3 + $0x1c] sm:$0xf]
  %v109 = vld [vmem:[%s4] sm:$0x1]
  %v111 = vlaneseq
  %v112 = vshrl.u32 %v111, 7
  %v113 = vsub.s32 0, %v112
  %v114 = vrot.slane %v109, %v113
  %v124 = vunpack.c.l.b16 %v101
  %v125 = vunpack.c.l.b16 %v102
  %v126 = vunpack.c.l.b16 %v103
  %v127 = vunpack.c.l.b16 %v104
  %v128 = vunpack.c.l.b16 %v105
  %v129 = vunpack.c.l.b16 %v106
  %v130 = vunpack.c.l.b16 %v107
  %v131 = vunpack.c.l.b16 %v108
  %v132 = vpack.c.b16 %v125, %v124
  %v133 = vpack.c.b16 %v127, %v126
  %v134 = vpack.c.b16 %v129, %v128
  %v135 = vpack.c.b16 %v131, %v130
  %vm140 = vcmask 523264
  %v142 = vsel %vm140, %v100, 0
  %144 = vmatprep.subr.bf16.mxu0 0
  %145 = vmatpush1.bf16.msra.mxu0 0
  %146 = vmatprep.subr.bf16.mxu0 0
  %147 = vmatpush1.bf16.msra.mxu0 0
  %148 = vmatprep.subr.bf16.mxu0 0
  %149 = vmatpush1.bf16.msra.mxu0 0
  %150 = vmatprep.subr.bf16.mxu0 0
  %151 = vmatpush1.bf16.msra.mxu0 0
  %152 = vmatprep.subr.bf16.mxu0 0
  %153 = vmatpush1.bf16.msra.mxu0 %v135
  %154 = vmatprep.subr.bf16.mxu0 0
  %155 = vmatpush1.bf16.msra.mxu0 %v134
  %156 = vmatprep.subr.bf16.mxu0 0
  %157 = vmatpush1.bf16.msra.mxu0 %v133
  %158 = vmatprep.subr.bf16.mxu0 0
  %159 = vmatpush1.bf16.msra.mxu0 %v132
  %160 = vmatprep.subr.bf16.mxu0 0
  %161 = vmatpush2.bf16.msra.mxu0 0
  %162 = vmatprep.subr.bf16.mxu0 0
  %163 = vmatpush2.bf16.msra.mxu0 0
  %164 = vmatprep.subr.bf16.mxu0 0
  %165 = vmatpush2.bf16.msra.mxu0 0
  %166 = vmatprep.subr.bf16.mxu0 0
  %167 = vmatpush2.bf16.msra.mxu0 0
  %168 = vmatprep.subr.bf16.mxu0 0
  %169 = vmatpush2.bf16.msra.mxu0 0
  %170 = vmatprep.subr.bf16.mxu0 0
  %171 = vmatpush2.bf16.msra.mxu0 0
  %172 = vmatprep.subr.bf16.mxu0 0
  %173 = vmatpush2.bf16.msra.mxu0 0
  %174 = vmatprep.subr.bf16.mxu0 0
  %175 = vmatpush2.bf16.msra.mxu0 0
  %176 = vmatprep.mubr.bf16.mxu0 0
  %177 = vmatmul.mubr.bf16.gmra.mxu0 %v142
  %v178 = vpop.f32.mrf.mxu0
  %v179 = vadd.f32 %v114, %v178
  %v180 = vpop.f32.mrf.mxu0
  %v181 = vpop.f32.mrf.mxu0
  %v182 = vadd.f32 %v114, %v181
  %v183 = vpop.f32.mrf.mxu0
  %184 = vdwg.mxu0
  %v185 = vadd.f32 %v179, %v27
  %v186 = vadd.f32 %v182, %v28
  %v187 = vsel %vm53, %v185, 0.0
  %188 = vadd.xlane.f32.xlu0 %v187
  %v189 = vpop.xlane.xlu0 %188
  %v190 = vsel %vm53, %v186, 0.0
  %191 = vadd.xlane.f32.xlu0 %v190
  %v192 = vpop.xlane.xlu0 %191
  %v193 = vrcp.pop 32.0
  %v194 = vmul.f32 %v189, %v193
  %v195 = vmul.f32 %v192, %v193
  %v196 = vsub.f32 %v185, %v194
  %v197 = vsub.f32 %v186, %v195
  %v198 = vmul.f32 %v196, %v196
  %v199 = vmul.f32 %v197, %v197
  %v200 = vsel %vm53, %v198, 0.0
  %201 = vadd.xlane.f32.xlu0 %v200
  %v202 = vpop.xlane.xlu0 %201
  %v203 = vsel %vm53, %v199, 0.0
  %204 = vadd.xlane.f32.xlu0 %v203
  %v205 = vpop.xlane.xlu0 %204
  %v206 = vmul.f32 %v202, %v193
  %v207 = vmul.f32 %v205, %v193
  %v208 = vadd.f32 %v206, 1e-05
  %v209 = vadd.f32 %v207, 1e-05
  %v210 = vrsqrt.pop %v208
  %v211 = vrsqrt.pop %v209
  %v212 = vmul.f32 %v196, %v210
  %v213 = vmul.f32 %v197, %v211
  %v214 = vld [vmem:[%s5] sm:$0x1]
  %v216 = vlaneseq
  %v217 = vshrl.u32 %v216, 7
  %v218 = vsub.s32 0, %v217
  %v219 = vrot.slane %v214, %v218
  %v221 = vmul.f32 %v212, %v219
  %v222 = vmul.f32 %v213, %v219
  %v223 = vld [vmem:[%s6] sm:$0x1]
  %v225 = vlaneseq
  %v226 = vshrl.u32 %v225, 7
  %v227 = vsub.s32 0, %v226
  %v228 = vrot.slane %v223, %v227
  %v230 = vadd.f32 %v221, %v228
  %v231 = vadd.f32 %v222, %v228
  %232 = vst.msk [vmem:[%s7] sm:$0xff] %vm53, %v230
  %233 = vst.msk [vmem:[%s7 + $0x8] sm:$0xff] %vm53, %v231
  // Predicated region
  $region30: #{forward.15} parent=0 // pred_check
    _
  $region31: #{forward.15} parent=0 // pred_check_branch
    %235 = sbr.rel (0) target = $region33
  $region32: #{forward.15} parent=0 // pred_region
    _
  $region33: #{forward.15} parent=0 // pred_fallthru
    _
  // Predicated region
  $region34: #{forward.15} parent=0 // pred_check
    _
  $region35: #{forward.15} parent=0 // pred_check_branch
    %237 = sbr.rel (0) target = $region37
  $region36: #{forward.15} parent=0 // pred_region
    _
  $region37: #{forward.15} parent=0 // pred_fallthru
    _

// kernel: forward.13
$region0: #{forward.13}
  #allocation0 [shape = 'u32[]', space=smem, size = 0x4, offset = 0x4, fixed_abs, tag = 'smem constant byte address 0x4 - core index']
  #allocation1 [shape = 'u32[144,128]{1,0:T(1,128)}', space=vmem, size = 0x12000, scoped, tag = 'internal scratch']
  #allocation2 [shape = 's32[1]{0}', space=sflag, size = 0x4, scoped, tag = 'scoped memory for forward.13']
  #allocation3 [shape = 'u8[512]{0}', space=smem, size = 0x200, scoped, tag = 'prefetched SMEM operand 0']
  %s0 = inlined_call_operand.vmem [shape: s32[2], index: 0, kind: input, shape index: {}]
  %s1 = inlined_call_operand.vmem [shape: f32[2,8,96], index: 1, kind: input, shape index: {}]
  %s2 = inlined_call_operand.vmem [shape: f32[2,8,32], index: 2, kind: output, shape index: {}]
  %s3 = sld [smem:[#allocation0]]
  $region37: #{forward.13} parent=0
    _
  %s5 = ssub.s32 1, %s3
  %s6 = scalar_select 0, %s5, %s3
  %s7 = sshll.u32 %s0, 4
  %s8 = int_to_ptr.vmem [resolvable:$true] %s7
  %10 = dma.vmem_to_smem %s8, 16, [#allocation3], [#allocation2]
  %11 = dma.done [#allocation2], 16
  %12 = sfence
  loop: start=0, step=1, limit=4
  $region2: #{forward.13} parent=0 // loop_pre_header
    _
  $region3: #{forward.13} parent=0 // loop_header
    %s14 = sphi 0, %s18
    %p15 = scmp.ge.s32.totalorder %s14, 4
    %s24 = sphi 0, %s26
    %s27 = sphi 0, %s24
    %s28 = sphi 0, %s27
    %s44 = sphi 0, %s28
    %s50 = sphi 0, %s52
    %s53 = sphi 0, %s50
    %s54 = sphi 0, %s53
    %s70 = sphi 0, %s54
  $region4: #{forward.13} parent=0 // loop_header_branch
    %17 = sbr.rel (%p15) target = $region8
  $region5: #{forward.13} parent=0 // loop_body
    %s19 = ssub.s32 %s14, 1
    %s20 = ssub.s32 %s14, 2
    %s21 = sadd.s32 %s14, 1
    %s22 = ssub.s32 %s14, %s21
    %p23 = scmp.eq.s32.totalorder %s22, 0
    %s25 = sadd.s32 %s24, 1
    %s26 = scalar_select %p23, %s24, %s25
    %p29 = pneg %p23
    %p30 = scmp.eq.s32.totalorder %s14, 1
    %p31 = por %p29, %p30
    %p32 = scmp.ne.s32.totalorder %s24, %s27
    %p33 = scmp.eq.s32.totalorder %s14, 0
    %p34 = por %p32, %p33
    %p35 = scmp.ne.s32.totalorder %s24, %s27
    %p36 = scmp.eq.s32.totalorder %s19, 1
    %p37 = por %p35, %p36
    %p38 = scmp.ne.s32.totalorder %s27, %s28
    %p39 = scmp.eq.s32.totalorder %s19, 0
    %p40 = por %p38, %p39
    %p41 = scmp.ne.s32.totalorder %s27, %s28
    %p42 = scmp.eq.s32.totalorder %s20, 1
    %p43 = por %p41, %p42
    %p45 = scmp.ne.s32.totalorder %s28, %s44
    %p46 = scmp.eq.s32.totalorder %s20, 0
    %p47 = por %p45, %p46
    %s48 = ssub.s32 %s14, %s21
    %p49 = scmp.eq.s32.totalorder %s48, 0
    %s51 = sadd.s32 %s50, 1
    %s52 = scalar_select %p49, %s50, %s51
    %p55 = pneg %p49
    %p56 = scmp.eq.s32.totalorder %s14, 1
    %p57 = por %p55, %p56
    %p58 = scmp.ne.s32.totalorder %s50, %s53
    %p59 = scmp.eq.s32.totalorder %s14, 0
    %p60 = por %p58, %p59
    %p61 = scmp.ne.s32.totalorder %s50, %s53
    %p62 = scmp.eq.s32.totalorder %s19, 1
    %p63 = por %p61, %p62
    %p64 = scmp.ne.s32.totalorder %s53, %s54
    %p65 = scmp.eq.s32.totalorder %s19, 0
    %p66 = por %p64, %p65
    %p67 = scmp.ne.s32.totalorder %s53, %s54
    %p68 = scmp.eq.s32.totalorder %s20, 1
    %p69 = por %p67, %p68
    %p71 = scmp.ne.s32.totalorder %s54, %s70
    %p72 = scmp.eq.s32.totalorder %s20, 0
    %p73 = por %p71, %p72
    %p74 = scmp.le.s32.totalorder 1, %s14
    %p75 = scmp.lt.s32.totalorder %s14, 3
    %p76 = pnand %p74, %p75
    %p77 = pneg %p76
    // Predicated region
    $region9: #{forward.13} parent=5 // pred_check
      _
    $region10: #{forward.13} parent=5 // pred_check_branch
      %79 = sbr.rel (%p76) target = $region12
    $region11: #{forward.13} parent=5 // pred_region
      %s80 = ssub.s32 %s14, 1
    $region12: #{forward.13} parent=5 // pred_fallthru
      _
    %p81 = scmp.lt.s32.totalorder %s14, 2
    // Predicated region
    $region13: #{forward.13} parent=5 // pred_check
      %p82 = pneg %p81
    $region14: #{forward.13} parent=5 // pred_check_branch
      %84 = sbr.rel (%p82) target = $region16
    $region15: #{forward.13} parent=5 // pred_region
      // Predicated region
      $region17: #{forward.13} parent=15 // pred_check
        %p85 = pneg %p34
      $region18: #{forward.13} parent=15 // pred_check_branch
        %87 = sbr.rel (%p85) target = $region20
      $region19: #{forward.13} parent=15 // pred_region
        %p88 = scmp.lt.s32.totalorder %s14, 1
        %s89 = scalar_select %p88, %s14, 1
        %s90 = smul.addr %s89, 8
        %s91 = scalar_lea.vmem %s1, %s90
      $region20: #{forward.13} parent=15 // pred_fallthru
        _
    $region16: #{forward.13} parent=5 // pred_fallthru
      _
    %p92 = scmp.le.s32.totalorder 1, %s14
    %p93 = scmp.lt.s32.totalorder %s14, 3
    %p94 = pnand %p92, %p93
    %p95 = pneg %p94
    // Predicated region
    $region21: #{forward.13} parent=5 // pred_check
      _
    $region22: #{forward.13} parent=5 // pred_check_branch
      %97 = sbr.rel (%p94) target = $region24
    $region23: #{forward.13} parent=5 // pred_region
      %s98 = ssub.s32 %s14, 1
      %p99 = scmp.lt.s32.totalorder %s19, 1
      %s100 = scalar_select %p99, %s19, 1
      %s101 = smul.addr %s100, 8
      %s102 = scalar_lea.vmem %s1, %s101
      %p103 = pneg %p40
      %p104 = pneg %p37
      %p105 = pneg %p66
      %p106 = pneg %p63
      %p107 = scmp.lt.s32.totalorder %s19, 1
      %s108 = scalar_select %p107, %s19, 1
      %s109 = smul.addr %s108, 8
      %s110 = scalar_lea.vmem %s2, %s109
      %p111 = scmp.lt.s32.totalorder %s19, 1
      %s112 = scalar_select %p111, %s19, 1
      %s113 = smul.addr %s112, 8
      %s114 = scalar_lea.vmem %s1, %s113
      %p115 = scmp.lt.s32.totalorder %s19, 1
      %s116 = scalar_select %p115, %s19, 1
      %s117 = smul.addr %s116, 8
      %s118 = scalar_lea.vmem %s2, %s117
      %s120 = sld [smem:[#allocation3 + %s19]]
      %v121 = vld [vmem:[%s114] sm:$0xff]
      %v122 = vlaneseq
      %v123 = vshrl.u32 %v122, 7
      %v124 = vlaneseq
      %v125 = vand.u32 %v124, 127
      %vm126 = vcmp.le.s32.totalorder %v125, %v123
      %v127 = vstv %s120
      %vm128 = vcmp.lt.s32.totalorder %v125, %v127
      %vm129 = vmand %vm126, %vm128
      %v130 = vmul.f32 %v121, 0.35355338
      %v131 = vpack.c.bf16 %v130, %v130
      %v132 = vpack.c.bf16 %v121, %v121
      %134 = vrot.lane.b32.xlu0 %v132, 96
      %v135 = vpop.permute.xlu0 %134
      %vm136 = vcmask 64512
      %v138 = vsel %vm136, %v131, 0
      %v141 = vsel %vm136, %v135, 0
      %143 = vmatprep.subr.bf16.mxu0 0
      %144 = vmatpush1.bf16.xpose.msra.mxu0 0
      %145 = vmatprep.subr.bf16.mxu0 0
      %146 = vmatpush1.bf16.xpose.msra.mxu0 0
      %147 = vmatprep.subr.bf16.mxu0 0
      %148 = vmatpush1.bf16.xpose.msra.mxu0 0
      %149 = vmatprep.subr.bf16.mxu0 0
      %150 = vmatpush1.bf16.xpose.msra.mxu0 0
      %151 = vmatprep.subr.bf16.mxu0 0
      %152 = vmatpush1.bf16.xpose.msra.mxu0 0
      %153 = vmatprep.subr.bf16.mxu0 0
      %154 = vmatpush1.bf16.xpose.msra.mxu0 0
      %155 = vmatprep.subr.bf16.mxu0 0
      %156 = vmatpush1.bf16.xpose.msra.mxu0 0
      %157 = vmatprep.subr.bf16.mxu0 0
      %158 = vmatpush1.bf16.xpose.msra.mxu0 %v141
      %159 = vmatprep.subr.bf16.mxu0 0
      %160 = vmatpush2.bf16.xpose.msra.mxu0 0
      %161 = vmatprep.subr.bf16.mxu0 0
      %162 = vmatpush2.bf16.xpose.msra.mxu0 0
      %163 = vmatprep.subr.bf16.mxu0 0
      %164 = vmatpush2.bf16.xpose.msra.mxu0 0
      %165 = vmatprep.subr.bf16.mxu0 0
      %166 = vmatpush2.bf16.xpose.msra.mxu0 0
      %167 = vmatprep.subr.bf16.mxu0 0
      %168 = vmatpush2.bf16.xpose.msra.mxu0 0
      %169 = vmatprep.subr.bf16.mxu0 0
      %170 = vmatpush2.bf16.xpose.msra.mxu0 0
      %171 = vmatprep.subr.bf16.mxu0 0
      %172 = vmatpush2.bf16.xpose.msra.mxu0 0
      %173 = vmatprep.subr.bf16.mxu0 0
      %174 = vmatpush2.bf16.xpose.msra.mxu0 0
      %175 = vmatprep.mubr.bf16.mxu0 0
      %176 = vmatmul.mubr.bf16.gmra.mxu0 %v138
      %v177 = vpop.f32.mrf.mxu0
      %v178 = vadd.f32 0.0, %v177
      %v179 = vpop.f32.mrf.mxu0
      %v180 = vpop.f32.mrf.mxu0
      %v181 = vpop.f32.mrf.mxu0
      %182 = vdwg.mxu0
      %v183 = vsel %vm129, %v178, -1e+30
      %v184 = vsel %vm136, %v183, -inf
      %185 = vmax.xlane.f32.xlu0 %v184
      %v186 = vpop.xlane.xlu0 %185
      %v187 = vsub.f32 %v183, %v186
      %v188 = vmul.f32 %v187, 1.442695
      %v189 = vpow.pop %v188
      %v190 = vsel %vm136, %v189, 0.0
      %191 = vadd.xlane.f32.xlu0 %v190
      %v192 = vpop.xlane.xlu0 %191
      %v193 = vmax.f32 %v192, 1e-30
      %v194 = vrcp.pop %v193
      %v195 = vmul.f32 %v189, %v194
      %v196 = vpack.c.bf16 %v195, %v195
      %197 = vrot.lane.b32.xlu0 %v132, 64
      %v198 = vpop.permute.xlu0 %197
      %v200 = vsel %vm136, %v196, 0
      %vm202 = vcmask 1043456
      %v204 = vsel %vm202, %v198, 0
      %206 = vmatprep.subr.bf16.mxu0 0
      %207 = vmatpush1.bf16.msra.mxu0 0
      %208 = vmatprep.subr.bf16.mxu0 0
      %209 = vmatpush1.bf16.msra.mxu0 0
      %210 = vmatprep.subr.bf16.mxu0 0
      %211 = vmatpush1.bf16.msra.mxu0 0
      %212 = vmatprep.subr.bf16.mxu0 0
      %213 = vmatpush1.bf16.msra.mxu0 0
      %214 = vmatprep.subr.bf16.mxu0 0
      %215 = vmatpush1.bf16.msra.mxu0 0
      %216 = vmatprep.subr.bf16.mxu0 0
      %217 = vmatpush1.bf16.msra.mxu0 0
      %218 = vmatprep.subr.bf16.mxu0 0
      %219 = vmatpush1.bf16.msra.mxu0 0
      %220 = vmatprep.subr.bf16.mxu0 0
      %221 = vmatpush1.bf16.msra.mxu0 %v204
      %222 = vmatprep.subr.bf16.mxu0 0
      %223 = vmatpush2.bf16.msra.mxu0 0
      %224 = vmatprep.subr.bf16.mxu0 0
      %225 = vmatpush2.bf16.msra.mxu0 0
      %226 = vmatprep.subr.bf16.mxu0 0
      %227 = vmatpush2.bf16.msra.mxu0 0
      %228 = vmatprep.subr.bf16.mxu0 0
      %229 = vmatpush2.bf16.msra.mxu0 0
      %230 = vmatprep.subr.bf16.mxu0 0
      %231 = vmatpush2.bf16.msra.mxu0 0
      %232 = vmatprep.subr.bf16.mxu0 0
      %233 = vmatpush2.bf16.msra.mxu0 0
      %234 = vmatprep.subr.bf16.mxu0 0
      %235 = vmatpush2.bf16.msra.mxu0 0
      %236 = vmatprep.subr.bf16.mxu0 0
      %237 = vmatpush2.bf16.msra.mxu0 0
      %238 = vmatprep.mubr.bf16.mxu0 0
      %239 = vmatmul.mubr.bf16.gmra.mxu0 %v200
      %v240 = vpop.f32.mrf.mxu0
      %v241 = vadd.f32 0.0, %v240
      %v242 = vpop.f32.mrf.mxu0
      %v243 = vpop.f32.mrf.mxu0
      %v244 = vpop.f32.mrf.mxu0
      %245 = vdwg.mxu0
      %247 = vrot.lane.b32.xlu0 %v131, 120
      %v248 = vpop.permute.xlu0 %247
      %249 = vrot.lane.b32.xlu0 %v132, 88
      %v250 = vpop.permute.xlu0 %249
      %v252 = vsel %vm136, %v248, 0
      %v255 = vsel %vm136, %v250, 0
      %257 = vmatprep.subr.bf16.mxu0 0
      %258 = vmatpush1.bf16.xpose.msra.mxu0 0
      %259 = vmatprep.subr.bf16.mxu0 0
      %260 = vmatpush1.bf16.xpose.msra.mxu0 0
      %261 = vmatprep.subr.bf16.mxu0 0
      %262 = vmatpush1.bf16.xpose.msra.mxu0 0
      %263 = vmatprep.subr.bf16.mxu0 0
      %264 = vmatpush1.bf16.xpose.msra.mxu0 0
      %265 = vmatprep.subr.bf16.mxu0 0
      %266 = vmatpush1.bf16.xpose.msra.mxu0 0
      %267 = vmatprep.subr.bf16.mxu0 0
      %268 = vmatpush1.bf16.xpose.msra.mxu0 0
      %269 = vmatprep.subr.bf16.mxu0 0
      %270 = vmatpush1.bf16.xpose.msra.mxu0 0
      %271 = vmatprep.subr.bf16.mxu0 0
      %272 = vmatpush1.bf16.xpose.msra.mxu0 %v255
      %273 = vmatprep.subr.bf16.mxu0 0
      %274 = vmatpush2.bf16.xpose.msra.mxu0 0
      %275 = vmatprep.subr.bf16.mxu0 0
      %276 = vmatpush2.bf16.xpose.msra.mxu0 0
      %277 = vmatprep.subr.bf16.mxu0 0
      %278 = vmatpush2.bf16.xpose.msra.mxu0 0
      %279 = vmatprep.subr.bf16.mxu0 0
      %280 = vmatpush2.bf16.xpose.msra.mxu0 0
      %281 = vmatprep.subr.bf16.mxu0 0
      %282 = vmatpush2.bf16.xpose.msra.mxu0 0
      %283 = vmatprep.subr.bf16.mxu0 0
      %284 = vmatpush2.bf16.xpose.msra.mxu0 0
      %285 = vmatprep.subr.bf16.mxu0 0
      %286 = vmatpush2.bf16.xpose.msra.mxu0 0
      %287 = vmatprep.subr.bf16.mxu0 0
      %288 = vmatpush2.bf16.xpose.msra.mxu0 0
      %289 = vmatprep.mubr.bf16.mxu0 0
      %290 = vmatmul.mubr.bf16.gmra.mxu0 %v252
      %v291 = vpop.f32.mrf.mxu0
      %v292 = vadd.f32 0.0, %v291
      %v293 = vpop.f32.mrf.mxu0
      %v294 = vpop.f32.mrf.mxu0
      %v295 = vpop.f32.mrf.mxu0
      %296 = vdwg.mxu0
      %v297 = vsel %vm129, %v292, -1e+30
      %v298 = vsel %vm136, %v297, -inf
      %299 = vmax.xlane.f32.xlu0 %v298
      %v300 = vpop.xlane.xlu0 %299
      %v301 = vsub.f32 %v297, %v300
      %v302 = vmul.f32 %v301, 1.442695
      %v303 = vpow.pop %v302
      %v304 = vsel %vm136, %v303, 0.0
      %305 = vadd.xlane.f32.xlu0 %v304
      %v306 = vpop.xlane.xlu0 %305
      %v307 = vmax.f32 %v306, 1e-30
      %v308 = vrcp.pop %v307
      %v309 = vmul.f32 %v303, %v308
      %v310 = vpack.c.bf16 %v309, %v309
      %311 = vrot.lane.b32.xlu0 %v132, 56
      %v312 = vpop.permute.xlu0 %311
      %v314 = vsel %vm136, %v310, 0
      %v317 = vsel %vm202, %v312, 0
      %319 = vmatprep.subr.bf16.mxu0 0
      %320 = vmatpush1.bf16.msra.mxu0 0
      %321 = vmatprep.subr.bf16.mxu0 0
      %322 = vmatpush1.bf16.msra.mxu0 0
      %323 = vmatprep.subr.bf16.mxu0 0
      %324 = vmatpush1.bf16.msra.mxu0 0
      %325 = vmatprep.subr.bf16.mxu0 0
      %326 = vmatpush1.bf16.msra.mxu0 0
      %327 = vmatprep.subr.bf16.mxu0 0
      %328 = vmatpush1.bf16.msra.mxu0 0
      %329 = vmatprep.subr.bf16.mxu0 0
      %330 = vmatpush1.bf16.msra.mxu0 0
      %331 = vmatprep.subr.bf16.mxu0 0
      %332 = vmatpush1.bf16.msra.mxu0 0
      %333 = vmatprep.subr.bf16.mxu0 0
      %334 = vmatpush1.bf16.msra.mxu0 %v317
      %335 = vmatprep.subr.bf16.mxu0 0
      %336 = vmatpush2.bf16.msra.mxu0 0
      %337 = vmatprep.subr.bf16.mxu0 0
      %338 = vmatpush2.bf16.msra.mxu0 0
      %339 = vmatprep.subr.bf16.mxu0 0
      %340 = vmatpush2.bf16.msra.mxu0 0
      %341 = vmatprep.subr.bf16.mxu0 0
      %342 = vmatpush2.bf16.msra.mxu0 0
      %343 = vmatprep.subr.bf16.mxu0 0
      %344 = vmatpush2.bf16.msra.mxu0 0
      %345 = vmatprep.subr.bf16.mxu0 0
      %346 = vmatpush2.bf16.msra.mxu0 0
      %347 = vmatprep.subr.bf16.mxu0 0
      %348 = vmatpush2.bf16.msra.mxu0 0
      %349 = vmatprep.subr.bf16.mxu0 0
      %350 = vmatpush2.bf16.msra.mxu0 0
      %351 = vmatprep.mubr.bf16.mxu0 0
      %352 = vmatmul.mubr.bf16.gmra.mxu0 %v314
      %v353 = vpop.f32.mrf.mxu0
      %v354 = vadd.f32 0.0, %v353
      %v355 = vpop.f32.mrf.mxu0
      %v356 = vpop.f32.mrf.mxu0
      %v357 = vpop.f32.mrf.mxu0
      %358 = vdwg.mxu0
      %359 = vrot.lane.b32.xlu0 %v131, 112
      %v360 = vpop.permute.xlu0 %359
      %361 = vrot.lane.b32.xlu0 %v132, 80
      %v362 = vpop.permute.xlu0 %361
      %v364 = vsel %vm136, %v360, 0
      %v367 = vsel %vm136, %v362, 0
      %369 = vmatprep.subr.bf16.mxu0 0
      %370 = vmatpush1.bf16.xpose.msra.mxu0 0
      %371 = vmatprep.subr.bf16.mxu0 0
      %372 = vmatpush1.bf16.xpose.msra.mxu0 0
      %373 = vmatprep.subr.bf16.mxu0 0
      %374 = vmatpush1.bf16.xpose.msra.mxu0 0
      %375 = vmatprep.subr.bf16.mxu0 0
      %376 = vmatpush1.bf16.xpose.msra.mxu0 0
      %377 = vmatprep.subr.bf16.mxu0 0
      %378 = vmatpush1.bf16.xpose.msra.mxu0 0
      %379 = vmatprep.subr.bf16.mxu0 0
      %380 = vmatpush1.bf16.xpose.msra.mxu0 0
      %381 = vmatprep.subr.bf16.mxu0 0
      %382 = vmatpush1.bf16.xpose.msra.mxu0 0
      %383 = vmatprep.subr.bf16.mxu0 0
      %384 = vmatpush1.bf16.xpose.msra.mxu0 %v367
      %385 = vmatprep.subr.bf16.mxu0 0
      %386 = vmatpush2.bf16.xpose.msra.mxu0 0
      %387 = vmatprep.subr.bf16.mxu0 0
      %388 = vmatpush2.bf16.xpose.msra.mxu0 0
      %389 = vmatprep.subr.bf16.mxu0 0
      %390 = vmatpush2.bf16.xpose.msra.mxu0 0
      %391 = vmatprep.subr.bf16.mxu0 0
      %392 = vmatpush2.bf16.xpose.msra.mxu0 0
      %393 = vmatprep.subr.bf16.mxu0 0
      %394 = vmatpush2.bf16.xpose.msra.mxu0 0
      %395 = vmatprep.subr.bf16.mxu0 0
      %396 = vmatpush2.bf16.xpose.msra.mxu0 0
      %397 = vmatprep.subr.bf16.mxu0 0
      %398 = vmatpush2.bf16.xpose.msra.mxu0 0
      %399 = vmatprep.subr.bf16.mxu0 0
      %400 = vmatpush2.bf16.xpose.msra.mxu0 0
      %401 = vmatprep.mubr.bf16.mxu0 0
      %402 = vmatmul.mubr.bf16.gmra.mxu0 %v364
      %v403 = vpop.f32.mrf.mxu0
      %v404 = vadd.f32 0.0, %v403
      %v405 = vpop.f32.mrf.mxu0
      %v406 = vpop.f32.mrf.mxu0
      %v407 = vpop.f32.mrf.mxu0
      %408 = vdwg.mxu0
      %v409 = vsel %vm129, %v404, -1e+30
      %v410 = vsel %vm136, %v409, -inf
      %411 = vmax.xlane.f32.xlu0 %v410
      %v412 = vpop.xlane.xlu0 %411
      %v413 = vsub.f32 %v409, %v412
      %v414 = vmul.f32 %v413, 1.442695
      %v415 = vpow.pop %v414
      %v416 = vsel %vm136, %v415, 0.0
      %417 = vadd.xlane.f32.xlu0 %v416
      %v418 = vpop.xlane.xlu0 %417
      %v419 = vmax.f32 %v418, 1e-30
      %v420 = vrcp.pop %v419
      %v421 = vmul.f32 %v415, %v420
      %v422 = vpack.c.bf16 %v421, %v421
      %423 = vrot.lane.b32.xlu0 %v132, 48
      %v424 = vpop.permute.xlu0 %423
      %v426 = vsel %vm136, %v422, 0
      %v429 = vsel %vm202, %v424, 0
      %431 = vmatprep.subr.bf16.mxu0 0
      %432 = vmatpush1.bf16.msra.mxu0 0
      %433 = vmatprep.subr.bf16.mxu0 0
      %434 = vmatpush1.bf16.msra.mxu0 0
      %435 = vmatprep.subr.bf16.mxu0 0
      %436 = vmatpush1.bf16.msra.mxu0 0
      %437 = vmatprep.subr.bf16.mxu0 0
      %438 = vmatpush1.bf16.msra.mxu0 0
      %439 = vmatprep.subr.bf16.mxu0 0
      %440 = vmatpush1.bf16.msra.mxu0 0
      %441 = vmatprep.subr.bf16.mxu0 0
      %442 = vmatpush1.bf16.msra.mxu0 0
      %443 = vmatprep.subr.bf16.mxu0 0
      %444 = vmatpush1.bf16.msra.mxu0 0
      %445 = vmatprep.subr.bf16.mxu0 0
      %446 = vmatpush1.bf16.msra.mxu0 %v429
      %447 = vmatprep.subr.bf16.mxu0 0
      %448 = vmatpush2.bf16.msra.mxu0 0
      %449 = vmatprep.subr.bf16.mxu0 0
      %450 = vmatpush2.bf16.msra.mxu0 0
      %451 = vmatprep.subr.bf16.mxu0 0
      %452 = vmatpush2.bf16.msra.mxu0 0
      %453 = vmatprep.subr.bf16.mxu0 0
      %454 = vmatpush2.bf16.msra.mxu0 0
      %455 = vmatprep.subr.bf16.mxu0 0
      %456 = vmatpush2.bf16.msra.mxu0 0
      %457 = vmatprep.subr.bf16.mxu0 0
      %458 = vmatpush2.bf16.msra.mxu0 0
      %459 = vmatprep.subr.bf16.mxu0 0
      %460 = vmatpush2.bf16.msra.mxu0 0
      %461 = vmatprep.subr.bf16.mxu0 0
      %462 = vmatpush2.bf16.msra.mxu0 0
      %463 = vmatprep.mubr.bf16.mxu0 0
      %464 = vmatmul.mubr.bf16.gmra.mxu0 %v426
      %v465 = vpop.f32.mrf.mxu0
      %v466 = vadd.f32 0.0, %v465
      %v467 = vpop.f32.mrf.mxu0
      %v468 = vpop.f32.mrf.mxu0
      %v469 = vpop.f32.mrf.mxu0
      %470 = vdwg.mxu0
      %471 = vrot.lane.b32.xlu0 %v131, 104
      %v472 = vpop.permute.xlu0 %471
      %473 = vrot.lane.b32.xlu0 %v132, 72
      %v474 = vpop.permute.xlu0 %473
      %v476 = vsel %vm136, %v472, 0
      %v479 = vsel %vm136, %v474, 0
      %481 = vmatprep.subr.bf16.mxu0 0
      %482 = vmatpush1.bf16.xpose.msra.mxu0 0
      %483 = vmatprep.subr.bf16.mxu0 0
      %484 = vmatpush1.bf16.xpose.msra.mxu0 0
      %485 = vmatprep.subr.bf16.mxu0 0
      %486 = vmatpush1.bf16.xpose.msra.mxu0 0
      %487 = vmatprep.subr.bf16.mxu0 0
      %488 = vmatpush1.bf16.xpose.msra.mxu0 0
      %489 = vmatprep.subr.bf16.mxu0 0
      %490 = vmatpush1.bf16.xpose.msra.mxu0 0
      %491 = vmatprep.subr.bf16.mxu0 0
      %492 = vmatpush1.bf16.xpose.msra.mxu0 0
      %493 = vmatprep.subr.bf16.mxu0 0
      %494 = vmatpush1.bf16.xpose.msra.mxu0 0
      %495 = vmatprep.subr.bf16.mxu0 0
      %496 = vmatpush1.bf16.xpose.msra.mxu0 %v479
      %497 = vmatprep.subr.bf16.mxu0 0
      %498 = vmatpush2.bf16.xpose.msra.mxu0 0
      %499 = vmatprep.subr.bf16.mxu0 0
      %500 = vmatpush2.bf16.xpose.msra.mxu0 0
      %501 = vmatprep.subr.bf16.mxu0 0
      %502 = vmatpush2.bf16.xpose.msra.mxu0 0
      %503 = vmatprep.subr.bf16.mxu0 0
      %504 = vmatpush2.bf16.xpose.msra.mxu0 0
      %505 = vmatprep.subr.bf16.mxu0 0
      %506 = vmatpush2.bf16.xpose.msra.mxu0 0
      %507 = vmatprep.subr.bf16.mxu0 0
      %508 = vmatpush2.bf16.xpose.msra.mxu0 0
      %509 = vmatprep.subr.bf16.mxu0 0
      %510 = vmatpush2.bf16.xpose.msra.mxu0 0
      %511 = vmatprep.subr.bf16.mxu0 0
      %512 = vmatpush2.bf16.xpose.msra.mxu0 0
      %513 = vmatprep.mubr.bf16.mxu0 0
      %514 = vmatmul.mubr.bf16.gmra.mxu0 %v476
      %v515 = vpop.f32.mrf.mxu0
      %v516 = vadd.f32 0.0, %v515
      %v517 = vpop.f32.mrf.mxu0
      %v518 = vpop.f32.mrf.mxu0
      %v519 = vpop.f32.mrf.mxu0
      %520 = vdwg.mxu0
      %v521 = vsel %vm129, %v516, -1e+30
      %v522 = vsel %vm136, %v521, -inf
      %523 = vmax.xlane.f32.xlu0 %v522
      %v524 = vpop.xlane.xlu0 %523
      %v525 = vsub.f32 %v521, %v524
      %v526 = vmul.f32 %v525, 1.442695
      %v527 = vpow.pop %v526
      %v528 = vsel %vm136, %v527, 0.0
      %529 = vadd.xlane.f32.xlu0 %v528
      %v530 = vpop.xlane.xlu0 %529
      %v531 = vmax.f32 %v530, 1e-30
      %v532 = vrcp.pop %v531
      %v533 = vmul.f32 %v527, %v532
      %v534 = vpack.c.bf16 %v533, %v533
      %535 = vrot.lane.b32.xlu0 %v132, 40
      %v536 = vpop.permute.xlu0 %535
      %v538 = vsel %vm136, %v534, 0
      %v541 = vsel %vm202, %v536, 0
      %543 = vmatprep.subr.bf16.mxu0 0
      %544 = vmatpush1.bf16.msra.mxu0 0
      %545 = vmatprep.subr.bf16.mxu0 0
      %546 = vmatpush1.bf16.msra.mxu0 0
      %547 = vmatprep.subr.bf16.mxu0 0
      %548 = vmatpush1.bf16.msra.mxu0 0
      %549 = vmatprep.subr.bf16.mxu0 0
      %550 = vmatpush1.bf16.msra.mxu0 0
      %551 = vmatprep.subr.bf16.mxu0 0
      %552 = vmatpush1.bf16.msra.mxu0 0
      %553 = vmatprep.subr.bf16.mxu0 0
      %554 = vmatpush1.bf16.msra.mxu0 0
      %555 = vmatprep.subr.bf16.mxu0 0
      %556 = vmatpush1.bf16.msra.mxu0 0
      %557 = vmatprep.subr.bf16.mxu0 0
      %558 = vmatpush1.bf16.msra.mxu0 %v541
      %559 = vmatprep.subr.bf16.mxu0 0
      %560 = vmatpush2.bf16.msra.mxu0 0
      %561 = vmatprep.subr.bf16.mxu0 0
      %562 = vmatpush2.bf16.msra.mxu0 0
      %563 = vmatprep.subr.bf16.mxu0 0
      %564 = vmatpush2.bf16.msra.mxu0 0
      %565 = vmatprep.subr.bf16.mxu0 0
      %566 = vmatpush2.bf16.msra.mxu0 0
      %567 = vmatprep.subr.bf16.mxu0 0
      %568 = vmatpush2.bf16.msra.mxu0 0
      %569 = vmatprep.subr.bf16.mxu0 0
      %570 = vmatpush2.bf16.msra.mxu0 0
      %571 = vmatprep.subr.bf16.mxu0 0
      %572 = vmatpush2.bf16.msra.mxu0 0
      %573 = vmatprep.subr.bf16.mxu0 0
      %574 = vmatpush2.bf16.msra.mxu0 0
      %575 = vmatprep.mubr.bf16.mxu0 0
      %576 = vmatmul.mubr.bf16.gmra.mxu0 %v538
      %v577 = vpop.f32.mrf.mxu0
      %v578 = vadd.f32 0.0, %v577
      %v579 = vpop.f32.mrf.mxu0
      %v580 = vpop.f32.mrf.mxu0
      %v581 = vpop.f32.mrf.mxu0
      %582 = vdwg.mxu0
      %584 = vrot.lane.b32.xlu0 %v354, 8
      %v585 = vpop.permute.xlu0 %584
      %588 = vrot.lane.b32.xlu0 %v466, 16
      %v589 = vpop.permute.xlu0 %588
      %592 = vrot.lane.b32.xlu0 %v578, 24
      %v593 = vpop.permute.xlu0 %592
      %v595 = vsel %vm136, %v241, %v585
      %vm596 = vcmask 130048
      %v597 = vsel %vm596, %v595, %v589
      %vm598 = vcmask 195584
      %v599 = vsel %vm598, %v597, %v593
      %vm600 = vcmask 261120
      %601 = vst.msk [vmem:[%s118] sm:$0xff] %vm600, %v599
      %p602 = scmp.lt.s32.totalorder %s19, 1
      %s603 = scalar_select %p602, %s19, 1
      %s604 = smul.addr %s603, 8
      %s605 = scalar_lea.vmem %s2, %s604
      // Predicated region
      $region25: #{forward.13} parent=23 // pred_check
        %p606 = pneg %p63
      $region26: #{forward.13} parent=23 // pred_check_branch
        %608 = sbr.rel (%p606) target = $region28
      $region27: #{forward.13} parent=23 // pred_region
        _
      $region28: #{forward.13} parent=23 // pred_fallthru
        _
    $region24: #{forward.13} parent=5 // pred_fallthru
      _
    %p609 = scmp.le.s32.totalorder 2, %s14
    // Predicated region
    $region29: #{forward.13} parent=5 // pred_check
      %p610 = pneg %p609
    $region30: #{forward.13} parent=5 // pred_check_branch
      %612 = sbr.rel (%p610) target = $region32
    $region31: #{forward.13} parent=5 // pred_region
      %s613 = ssub.s32 %s14, 2
      // Predicated region
      $region33: #{forward.13} parent=31 // pred_check
        %p614 = pneg %p69
      $region34: #{forward.13} parent=31 // pred_check_branch
        %616 = sbr.rel (%p614) target = $region36
      $region35: #{forward.13} parent=31 // pred_region
        %p617 = scmp.lt.s32.totalorder %s20, 1
        %s618 = scalar_select %p617, %s20, 1
        %s619 = smul.addr %s618, 8
        %s620 = scalar_lea.vmem %s2, %s619
      $region36: #{forward.13} parent=31 // pred_fallthru
        _
    $region32: #{forward.13} parent=5 // pred_fallthru
      _
  $region6: #{forward.13} parent=0 // loop_footer
    %s18 = sadd.s32 1, %s14
  $region7: #{forward.13} parent=0 // loop_footer_branch
    %13 = sbr.rel target = $region3
  $region8: #{forward.13} parent=0 // loop_exit
    _

// kernel: forward.20
$region0: #{forward.20}
  #allocation0 [shape = 'u32[]', space=smem, size = 0x4, offset = 0x4, fixed_abs, tag = 'smem constant byte address 0x4 - core index']
  #allocation1 [shape = 'u32[144,128]{1,0:T(1,128)}', space=vmem, size = 0x12000, scoped, tag = 'internal scratch']
  %s0 = inlined_call_operand.vmem [shape: f32[16,32], index: 0, kind: input, shape index: {}]
  %s1 = inlined_call_operand.vmem [shape: bf16[32,64], index: 1, kind: input, shape index: {}]
  %s2 = inlined_call_operand.vmem [shape: f32[1,64], index: 2, kind: input, shape index: {}]
  %s3 = inlined_call_operand.vmem [shape: f32[16,64], index: 3, kind: output, shape index: {}]
  %s4 = sld [smem:[#allocation0]]
  $region22: #{forward.20} parent=0
    _
  %s6 = ssub.s32 1, %s4
  %s7 = scalar_select 0, %s6, %s4
  // Predicated region
  $region2: #{forward.20} parent=0 // pred_check
    _
  $region3: #{forward.20} parent=0 // pred_check_branch
    %9 = sbr.rel (0) target = $region5
  $region4: #{forward.20} parent=0 // pred_region
    _
  $region5: #{forward.20} parent=0 // pred_fallthru
    _
  // Predicated region
  $region6: #{forward.20} parent=0 // pred_check
    _
  $region7: #{forward.20} parent=0 // pred_check_branch
    %11 = sbr.rel (0) target = $region9
  $region8: #{forward.20} parent=0 // pred_region
    _
  $region9: #{forward.20} parent=0 // pred_fallthru
    _
  // Predicated region
  $region10: #{forward.20} parent=0 // pred_check
    _
  $region11: #{forward.20} parent=0 // pred_check_branch
    %13 = sbr.rel (0) target = $region13
  $region12: #{forward.20} parent=0 // pred_region
    _
  $region13: #{forward.20} parent=0 // pred_fallthru
    _
  %v15 = vld [vmem:[%s0] sm:$0xff]
  %v16 = vld [vmem:[%s0 + $0x8] sm:$0xff]
  %v17 = vpack.c.bf16 %v16, %v15
  %v18 = vld [vmem:[%s1] sm:$0xf]
  %v19 = vld [vmem:[%s1 + $0x4] sm:$0xf]
  %v20 = vld [vmem:[%s1 + $0x8] sm:$0xf]
  %v21 = vld [vmem:[%s1 + $0xc] sm:$0xf]
  %v22 = vld [vmem:[%s2] sm:$0x1]
  %v24 = vlaneseq
  %v25 = vshrl.u32 %v24, 7
  %v26 = vsub.s32 0, %v25
  %v27 = vrot.slane %v22, %v26
  %v33 = vunpack.c.l.b16 %v18
  %v34 = vunpack.c.l.b16 %v19
  %v35 = vunpack.c.l.b16 %v20
  %v36 = vunpack.c.l.b16 %v21
  %v37 = vpack.c.b16 %v34, %v33
  %v38 = vpack.c.b16 %v36, %v35
  %vm41 = vcmask 261120
  %v43 = vsel %vm41, %v17, 0
  %45 = vmatprep.subr.bf16.mxu0 0
  %46 = vmatpush1.bf16.msra.mxu0 0
  %47 = vmatprep.subr.bf16.mxu0 0
  %48 = vmatpush1.bf16.msra.mxu0 0
  %49 = vmatprep.subr.bf16.mxu0 0
  %50 = vmatpush1.bf16.msra.mxu0 0
  %51 = vmatprep.subr.bf16.mxu0 0
  %52 = vmatpush1.bf16.msra.mxu0 0
  %53 = vmatprep.subr.bf16.mxu0 0
  %54 = vmatpush1.bf16.msra.mxu0 0
  %55 = vmatprep.subr.bf16.mxu0 0
  %56 = vmatpush1.bf16.msra.mxu0 0
  %57 = vmatprep.subr.bf16.mxu0 0
  %58 = vmatpush1.bf16.msra.mxu0 %v38
  %59 = vmatprep.subr.bf16.mxu0 0
  %60 = vmatpush1.bf16.msra.mxu0 %v37
  %61 = vmatprep.subr.bf16.mxu0 0
  %62 = vmatpush2.bf16.msra.mxu0 0
  %63 = vmatprep.subr.bf16.mxu0 0
  %64 = vmatpush2.bf16.msra.mxu0 0
  %65 = vmatprep.subr.bf16.mxu0 0
  %66 = vmatpush2.bf16.msra.mxu0 0
  %67 = vmatprep.subr.bf16.mxu0 0
  %68 = vmatpush2.bf16.msra.mxu0 0
  %69 = vmatprep.subr.bf16.mxu0 0
  %70 = vmatpush2.bf16.msra.mxu0 0
  %71 = vmatprep.subr.bf16.mxu0 0
  %72 = vmatpush2.bf16.msra.mxu0 0
  %73 = vmatprep.subr.bf16.mxu0 0
  %74 = vmatpush2.bf16.msra.mxu0 0
  %75 = vmatprep.subr.bf16.mxu0 0
  %76 = vmatpush2.bf16.msra.mxu0 0
  %77 = vmatprep.mubr.bf16.mxu0 0
  %78 = vmatmul.mubr.bf16.gmra.mxu0 %v43
  %v79 = vpop.f32.mrf.mxu0
  %v80 = vadd.f32 %v27, %v79
  %v81 = vpop.f32.mrf.mxu0
  %v82 = vpop.f32.mrf.mxu0
  %v83 = vadd.f32 %v27, %v82
  %v84 = vpop.f32.mrf.mxu0
  %85 = vdwg.mxu0
  %vm86 = vcmask 523264
  %87 = vst.msk [vmem:[%s3] sm:$0xff] %vm86, %v80
  %88 = vst.msk [vmem:[%s3 + $0x8] sm:$0xff] %vm86, %v83
  // Predicated region
  $region14: #{forward.20} parent=0 // pred_check
    _
  $region15: #{forward.20} parent=0 // pred_check_branch
    %90 = sbr.rel (0) target = $region17
  $region16: #{forward.20} parent=0 // pred_region
    _
  $region17: #{forward.20} parent=0 // pred_fallthru
    _
  // Predicated region
  $region18: #{forward.20} parent=0 // pred_check
    _
  $region19: #{forward.20} parent=0 // pred_check_branch
    %92 = sbr.rel (0) target = $region21
  $region20: #{forward.20} parent=0 // pred_region
    _
  $region21: #{forward.20} parent=0 // pred_fallthru
    _

// kernel: custom-call.4
$region0: #{custom-call.4}
  %s0 = inlined_call_operand.vmem [shape: s32[7,2,5], index: 0, kind: output, shape index: {}]

// kernel: forward.23
$region0: #{forward.23}
  #allocation0 [shape = 'u32[]', space=smem, size = 0x4, offset = 0x4, fixed_abs, tag = 'smem constant byte address 0x4 - core index']
  #allocation1 [shape = 'u32[144,128]{1,0:T(1,128)}', space=vmem, size = 0x12000, scoped, tag = 'internal scratch']
  %s0 = inlined_call_operand.vmem [shape: f32[16,32], index: 0, kind: input, shape index: {}]
  %s1 = inlined_call_operand.vmem [shape: bf16[32,5], index: 1, kind: input, shape index: {}]
  %s2 = inlined_call_operand.vmem [shape: f32[1,5], index: 2, kind: input, shape index: {}]
  %s3 = inlined_call_operand.vmem [shape: f32[16,5], index: 3, kind: output, shape index: {}]
  %s4 = sld [smem:[#allocation0]]
  $region22: #{forward.23} parent=0
    _
  %s6 = ssub.s32 1, %s4
  %s7 = scalar_select 0, %s6, %s4
  // Predicated region
  $region2: #{forward.23} parent=0 // pred_check
    _
  $region3: #{forward.23} parent=0 // pred_check_branch
    %9 = sbr.rel (0) target = $region5
  $region4: #{forward.23} parent=0 // pred_region
    _
  $region5: #{forward.23} parent=0 // pred_fallthru
    _
  // Predicated region
  $region6: #{forward.23} parent=0 // pred_check
    _
  $region7: #{forward.23} parent=0 // pred_check_branch
    %11 = sbr.rel (0) target = $region9
  $region8: #{forward.23} parent=0 // pred_region
    _
  $region9: #{forward.23} parent=0 // pred_fallthru
    _
  // Predicated region
  $region10: #{forward.23} parent=0 // pred_check
    _
  $region11: #{forward.23} parent=0 // pred_check_branch
    %13 = sbr.rel (0) target = $region13
  $region12: #{forward.23} parent=0 // pred_region
    _
  $region13: #{forward.23} parent=0 // pred_fallthru
    _
  %v15 = vld [vmem:[%s0] sm:$0xff]
  %v16 = vld [vmem:[%s0 + $0x8] sm:$0xff]
  %v17 = vpack.c.bf16 %v16, %v15
  %v18 = vld [vmem:[%s1] sm:$0xf]
  %v19 = vld [vmem:[%s1 + $0x4] sm:$0xf]
  %v20 = vld [vmem:[%s1 + $0x8] sm:$0xf]
  %v21 = vld [vmem:[%s1 + $0xc] sm:$0xf]
  %v22 = vld [vmem:[%s2] sm:$0x1]
  %v24 = vlaneseq
  %v25 = vshrl.u32 %v24, 7
  %v26 = vsub.s32 0, %v25
  %v27 = vrot.slane %v22, %v26
  %v33 = vunpack.c.l.b16 %v18
  %v34 = vunpack.c.l.b16 %v19
  %v35 = vunpack.c.l.b16 %v20
  %v36 = vunpack.c.l.b16 %v21
  %v37 = vpack.c.b16 %v34, %v33
  %v38 = vpack.c.b16 %v36, %v35
  %vm41 = vcmask 261120
  %v43 = vsel %vm41, %v17, 0
  %45 = vmatprep.subr.bf16.mxu0 0
  %46 = vmatpush1.bf16.msra.mxu0 0
  %47 = vmatprep.subr.bf16.mxu0 0
  %48 = vmatpush1.bf16.msra.mxu0 0
  %49 = vmatprep.subr.bf16.mxu0 0
  %50 = vmatpush1.bf16.msra.mxu0 0
  %51 = vmatprep.subr.bf16.mxu0 0
  %52 = vmatpush1.bf16.msra.mxu0 0
  %53 = vmatprep.subr.bf16.mxu0 0
  %54 = vmatpush1.bf16.msra.mxu0 0
  %55 = vmatprep.subr.bf16.mxu0 0
  %56 = vmatpush1.bf16.msra.mxu0 0
  %57 = vmatprep.subr.bf16.mxu0 0
  %58 = vmatpush1.bf16.msra.mxu0 %v38
  %59 = vmatprep.subr.bf16.mxu0 0
  %60 = vmatpush1.bf16.msra.mxu0 %v37
  %61 = vmatprep.subr.bf16.mxu0 0
  %62 = vmatpush2.bf16.msra.mxu0 0
  %63 = vmatprep.subr.bf16.mxu0 0
  %64 = vmatpush2.bf16.msra.mxu0 0
  %65 = vmatprep.subr.bf16.mxu0 0
  %66 = vmatpush2.bf16.msra.mxu0 0
  %67 = vmatprep.subr.bf16.mxu0 0
  %68 = vmatpush2.bf16.msra.mxu0 0
  %69 = vmatprep.subr.bf16.mxu0 0
  %70 = vmatpush2.bf16.msra.mxu0 0
  %71 = vmatprep.subr.bf16.mxu0 0
  %72 = vmatpush2.bf16.msra.mxu0 0
  %73 = vmatprep.subr.bf16.mxu0 0
  %74 = vmatpush2.bf16.msra.mxu0 0
  %75 = vmatprep.subr.bf16.mxu0 0
  %76 = vmatpush2.bf16.msra.mxu0 0
  %77 = vmatprep.mubr.bf16.mxu0 0
  %78 = vmatmul.mubr.bf16.gmra.mxu0 %v43
  %v79 = vpop.f32.mrf.mxu0
  %v80 = vadd.f32 %v27, %v79
  %v81 = vpop.f32.mrf.mxu0
  %v82 = vpop.f32.mrf.mxu0
  %v83 = vadd.f32 %v27, %v82
  %v84 = vpop.f32.mrf.mxu0
  %85 = vdwg.mxu0
  %vm86 = vcmask 39936
  %87 = vst.msk [vmem:[%s3] sm:$0xff] %vm86, %v80
  %88 = vst.msk [vmem:[%s3 + $0x8] sm:$0xff] %vm86, %v83
  // Predicated region
  $region14: #{forward.23} parent=0 // pred_check
    _
  $region15: #{forward.23} parent=0 // pred_check_branch
    %90 = sbr.rel (0) target = $region17
  $region16: #{forward.23} parent=0 // pred_region
    _
  $region17: #{forward.23} parent=0 // pred_fallthru
    _
  // Predicated region
  $region18: #{forward.23} parent=0 // pred_check
    _
  $region19: #{forward.23} parent=0 // pred_check_branch
    %92 = sbr.rel (0) target = $region21
  $region20: #{forward.23} parent=0 // pred_region
    _
  $region21: #{forward.23} parent=0 // pred_fallthru
    _

// kernel: custom-call.5
$region0: #{custom-call.5}
  %s0 = inlined_call_operand.vmem [shape: s32[7,2], index: 0, kind: output, shape index: {}]

// kernel: forward.22
$region0: #{forward.22}
  #allocation0 [shape = 'u32[]', space=smem, size = 0x4, offset = 0x4, fixed_abs, tag = 'smem constant byte address 0x4 - core index']
  #allocation1 [shape = 'u32[144,128]{1,0:T(1,128)}', space=vmem, size = 0x12000, scoped, tag = 'internal scratch']
  #allocation2 [shape = 'f32[2,2,16]{2,1,0:T(2,128)}', space=vmem, size = 0x800, scoped, tag = 'scratch operand']
  #allocation3 [shape = 'f32[2,2,16]{2,1,0:T(2,128)}', space=vmem, size = 0x800, scoped, tag = 'scratch operand']
  %s0 = inlined_call_operand.vmem [shape: f32[8,2,64], index: 0, kind: input, shape index: {}]
  %s1 = inlined_call_operand.vmem [shape: f32[8,2,64], index: 1, kind: input, shape index: {}]
  %s2 = inlined_call_operand.vmem [shape: bf16[16,64], index: 2, kind: input, shape index: {}]
  %s3 = inlined_call_operand.vmem [shape: bf16[16,64], index: 3, kind: input, shape index: {}]
  %s4 = inlined_call_operand.vmem [shape: f32[8,2,16], index: 4, kind: output, shape index: {0}]
  %s5 = inlined_call_operand.vmem [shape: f32[8,2,16], index: 5, kind: output, shape index: {1}]
  %6 = xla_tuple %s4, %s5
  %s7 = sld [smem:[#allocation0]]
  $region34: #{forward.22} parent=0
    _
  %s9 = ssub.s32 1, %s7
  %s10 = scalar_select 0, %s9, %s7
  // Predicated region
  $region2: #{forward.22} parent=0 // pred_check
    _
  $region3: #{forward.22} parent=0 // pred_check_branch
    %12 = sbr.rel (0) target = $region5
  $region4: #{forward.22} parent=0 // pred_region
    _
  $region5: #{forward.22} parent=0 // pred_fallthru
    _
  // Predicated region
  $region6: #{forward.22} parent=0 // pred_check
    _
  $region7: #{forward.22} parent=0 // pred_check_branch
    %14 = sbr.rel (0) target = $region9
  $region8: #{forward.22} parent=0 // pred_region
    _
  $region9: #{forward.22} parent=0 // pred_fallthru
    _
  // Predicated region
  $region10: #{forward.22} parent=0 // pred_check
    _
  $region11: #{forward.22} parent=0 // pred_check_branch
    %16 = sbr.rel (0) target = $region13
  $region12: #{forward.22} parent=0 // pred_region
    _
  $region13: #{forward.22} parent=0 // pred_fallthru
    _
  // Predicated region
  $region14: #{forward.22} parent=0 // pred_check
    _
  $region15: #{forward.22} parent=0 // pred_check_branch
    %18 = sbr.rel (0) target = $region17
  $region16: #{forward.22} parent=0 // pred_region
    _
  $region17: #{forward.22} parent=0 // pred_fallthru
    _
  %vm20 = vcmask 123904
  %21 = vst.msk [vmem:[#allocation2] sm:$0x3] %vm20, 0.0
  %22 = vst.msk [vmem:[#allocation2 + $0x2] sm:$0x3] %vm20, 0.0
  %23 = vst.msk [vmem:[#allocation3] sm:$0x3] %vm20, 0.0
  %24 = vst.msk [vmem:[#allocation3 + $0x2] sm:$0x3] %vm20, 0.0
  %v25 = vld [vmem:[%s2] sm:$0xf]
  %v26 = vld [vmem:[%s2 + $0x4] sm:$0xf]
  %v27 = vld [vmem:[%s3] sm:$0xf]
  %v28 = vld [vmem:[%s3 + $0x4] sm:$0xf]
  %v29 = vld [vmem:[%s0] sm:$0x3]
  %v30 = vld [vmem:[#allocation2] sm:$0x3]
  %v31 = vld [vmem:[#allocation3] sm:$0x3]
  %v32 = vpack.c.bf16 %v30, %v30
  %v35 = vunpack.c.l.b16 %v25
  %v36 = vunpack.c.l.b16 %v26
  %v37 = vpack.c.b16 %v36, %v35
  %vm39 = vcmask 130048
  %v41 = vsel %vm39, %v32, 0
  %43 = vmatprep.subr.bf16.mxu0 0
  %44 = vmatpush1.bf16.msra.mxu0 0
  %45 = vmatprep.subr.bf16.mxu0 0
  %46 = vmatpush1.bf16.msra.mxu0 0
  %47 = vmatprep.subr.bf16.mxu0 0
  %48 = vmatpush1.bf16.msra.mxu0 0
  %49 = vmatprep.subr.bf16.mxu0 0
  %50 = vmatpush1.bf16.msra.mxu0 0
  %51 = vmatprep.subr.bf16.mxu0 0
  %52 = vmatpush1.bf16.msra.mxu0 0
  %53 = vmatprep.subr.bf16.mxu0 0
  %54 = vmatpush1.bf16.msra.mxu0 0
  %55 = vmatprep.subr.bf16.mxu0 0
  %56 = vmatpush1.bf16.msra.mxu0 0
  %57 = vmatprep.subr.bf16.mxu0 0
  %58 = vmatpush1.bf16.msra.mxu0 %v37
  %59 = vmatprep.subr.bf16.mxu0 0
  %60 = vmatpush2.bf16.msra.mxu0 0
  %61 = vmatprep.subr.bf16.mxu0 0
  %62 = vmatpush2.bf16.msra.mxu0 0
  %63 = vmatprep.subr.bf16.mxu0 0
  %64 = vmatpush2.bf16.msra.mxu0 0
  %65 = vmatprep.subr.bf16.mxu0 0
  %66 = vmatpush2.bf16.msra.mxu0 0
  %67 = vmatprep.subr.bf16.mxu0 0
  %68 = vmatpush2.bf16.msra.mxu0 0
  %69 = vmatprep.subr.bf16.mxu0 0
  %70 = vmatpush2.bf16.msra.mxu0 0
  %71 = vmatprep.subr.bf16.mxu0 0
  %72 = vmatpush2.bf16.msra.mxu0 0
  %73 = vmatprep.subr.bf16.mxu0 0
  %74 = vmatpush2.bf16.msra.mxu0 0
  %75 = vmatprep.mubr.bf16.mxu0 0
  %76 = vmatmul.mubr.bf16.gmra.mxu0 %v41
  %v77 = vpop.f32.mrf.mxu0
  %v78 = vadd.f32 0.0, %v77
  %v79 = vpop.f32.mrf.mxu0
  %v80 = vpop.f32.mrf.mxu0
  %v81 = vpop.f32.mrf.mxu0
  %82 = vdwg.mxu0
  %v83 = vadd.f32 %v29, %v78
  %v84 = vsub.f32 0.0, %v83
  %v85 = vmul.f32 %v84, 1.442695
  %v86 = vpow.pop %v85
  %v87 = vadd.f32 %v86, 1.0
  %v88 = vrcp.pop %v87
  %v89 = vmul.f32 1.0, %v88
  %v90 = vtanh.pop %v83
  %92 = vrot.lane.b32.xlu0 %v31, 16
  %v93 = vpop.permute.xlu0 %92
  %v95 = vmul.f32 %v89, %v93
  %97 = vrot.lane.b32.xlu0 %v90, 96
  %v98 = vpop.permute.xlu0 %97
  %v100 = vmul.f32 %v89, %v98
  %102 = vrot.lane.b32.xlu0 %v100, 16
  %v103 = vpop.permute.xlu0 %102
  %v105 = vadd.f32 %v95, %v103
  %v106 = vtanh.pop %v105
  %108 = vrot.lane.b32.xlu0 %v106, 32
  %v109 = vpop.permute.xlu0 %108
  %v111 = vmul.f32 %v89, %v109
  %113 = vrot.lane.b32.xlu0 %v111, 80
  %v114 = vpop.permute.xlu0 %113
  %116 = vst.msk [vmem:[#allocation2] sm:$0x3] %vm20, %v114
  %118 = vrot.lane.b32.xlu0 %v105, 112
  %v119 = vpop.permute.xlu0 %118
  %121 = vst.msk [vmem:[#allocation3] sm:$0x3] %vm20, %v119
  %122 = vst.msk [vmem:[%s4] sm:$0x3] %vm20, %v114
  %s123 = scalar_lea.vmem %s1, 14
  %v124 = vld [vmem:[%s123] sm:$0x3]
  %s125 = scalar_lea.vmem [#allocation2], 2
  %v126 = vld [vmem:[%s125] sm:$0x3]
  %s127 = scalar_lea.vmem [#allocation3], 2
  %v128 = vld [vmem:[%s127] sm:$0x3]
  %v129 = vpack.c.bf16 %v126, %v126
  %v132 = vunpack.c.l.b16 %v27
  %v133 = vunpack.c.l.b16 %v28
  %v134 = vpack.c.b16 %v133, %v132
  %v137 = vsel %vm39, %v129, 0
  %139 = vmatprep.subr.bf16.mxu0 0
  %140 = vmatpush1.bf16.msra.mxu0 0
  %141 = vmatprep.subr.bf16.mxu0 0
  %142 = vmatpush1.bf16.msra.mxu0 0
  %143 = vmatprep.subr.bf16.mxu0 0
  %144 = vmatpush1.bf16.msra.mxu0 0
  %145 = vmatprep.subr.bf16.mxu0 0
  %146 = vmatpush1.bf16.msra.mxu0 0
  %147 = vmatprep.subr.bf16.mxu0 0
  %148 = vmatpush1.bf16.msra.mxu0 0
  %149 = vmatprep.subr.bf16.mxu0 0
  %150 = vmatpush1.bf16.msra.mxu0 0
  %151 = vmatprep.subr.bf16.mxu0 0
  %152 = vmatpush1.bf16.msra.mxu0 0
  %153 = vmatprep.subr.bf16.mxu0 0
  %154 = vmatpush1.bf16.msra.mxu0 %v134
  %155 = vmatprep.subr.bf16.mxu0 0
  %156 = vmatpush2.bf16.msra.mxu0 0
  %157 = vmatprep.subr.bf16.mxu0 0
  %158 = vmatpush2.bf16.msra.mxu0 0
  %159 = vmatprep.subr.bf16.mxu0 0
  %160 = vmatpush2.bf16.msra.mxu0 0
  %161 = vmatprep.subr.bf16.mxu0 0
  %162 = vmatpush2.bf16.msra.mxu0 0
  %163 = vmatprep.subr.bf16.mxu0 0
  %164 = vmatpush2.bf16.msra.mxu0 0
  %165 = vmatprep.subr.bf16.mxu0 0
  %166 = vmatpush2.bf16.msra.mxu0 0
  %167 = vmatprep.subr.bf16.mxu0 0
  %168 = vmatpush2.bf16.msra.mxu0 0
  %169 = vmatprep.subr.bf16.mxu0 0
  %170 = vmatpush2.bf16.msra.mxu0 0
  %171 = vmatprep.mubr.bf16.mxu0 0
  %172 = vmatmul.mubr.bf16.gmra.mxu0 %v137
  %v173 = vpop.f32.mrf.mxu0
  %v174 = vadd.f32 0.0, %v173
  %v175 = vpop.f32.mrf.mxu0
  %v176 = vpop.f32.mrf.mxu0
  %v177 = vpop.f32.mrf.mxu0
  %178 = vdwg.mxu0
  %v179 = vadd.f32 %v124, %v174
  %v180 = vsub.f32 0.0, %v179
  %v181 = vmul.f32 %v180, 1.442695
  %v182 = vpow.pop %v181
  %v183 = vadd.f32 %v182, 1.0
  %v184 = vrcp.pop %v183
  %v185 = vmul.f32 1.0, %v184
  %v186 = vtanh.pop %v179
  %188 = vrot.lane.b32.xlu0 %v128, 16
  %v189 = vpop.permute.xlu0 %188
  %v191 = vmul.f32 %v185, %v189
  %193 = vrot.lane.b32.xlu0 %v186, 96
  %v194 = vpop.permute.xlu0 %193
  %v196 = vmul.f32 %v185, %v194
  %198 = vrot.lane.b32.xlu0 %v196, 16
  %v199 = vpop.permute.xlu0 %198
  %v201 = vadd.f32 %v191, %v199
  %v202 = vtanh.pop %v201
  %204 = vrot.lane.b32.xlu0 %v202, 32
  %v205 = vpop.permute.xlu0 %204
  %v207 = vmul.f32 %v185, %v205
  %209 = vrot.lane.b32.xlu0 %v207, 80
  %v210 = vpop.permute.xlu0 %209
  %212 = vst.msk [vmem:[%s125] sm:$0x3] %vm20, %v210
  %214 = vrot.lane.b32.xlu0 %v201, 112
  %v215 = vpop.permute.xlu0 %214
  %217 = vst.msk [vmem:[%s127] sm:$0x3] %vm20, %v215
  %s218 = scalar_lea.vmem %s5, 14
  %219 = vst.msk [vmem:[%s218] sm:$0x3] %vm20, %v210
  %s220 = scalar_lea.vmem %s0, 2
  %v221 = vld [vmem:[%s220] sm:$0x3]
  %v222 = vld [vmem:[#allocation2] sm:$0x3]
  %v223 = vld [vmem:[#allocation3] sm:$0x3]
  %v224 = vpack.c.bf16 %v222, %v222
  %v226 = vsel %vm39, %v224, 0
  %228 = vmatprep.subr.bf16.mxu0 0
  %229 = vmatpush1.bf16.msra.mxu0 0
  %230 = vmatprep.subr.bf16.mxu0 0
  %231 = vmatpush1.bf16.msra.mxu0 0
  %232 = vmatprep.subr.bf16.mxu0 0
  %233 = vmatpush1.bf16.msra.mxu0 0
  %234 = vmatprep.subr.bf16.mxu0 0
  %235 = vmatpush1.bf16.msra.mxu0 0
  %236 = vmatprep.subr.bf16.mxu0 0
  %237 = vmatpush1.bf16.msra.mxu0 0
  %238 = vmatprep.subr.bf16.mxu0 0
  %239 = vmatpush1.bf16.msra.mxu0 0
  %240 = vmatprep.subr.bf16.mxu0 0
  %241 = vmatpush1.bf16.msra.mxu0 0
  %242 = vmatprep.subr.bf16.mxu0 0
  %243 = vmatpush1.bf16.msra.mxu0 %v37
  %244 = vmatprep.subr.bf16.mxu0 0
  %245 = vmatpush2.bf16.msra.mxu0 0
  %246 = vmatprep.subr.bf16.mxu0 0
  %247 = vmatpush2.bf16.msra.mxu0 0
  %248 = vmatprep.subr.bf16.mxu0 0
  %249 = vmatpush2.bf16.msra.mxu0 0
  %250 = vmatprep.subr.bf16.mxu0 0
  %251 = vmatpush2.bf16.msra.mxu0 0
  %252 = vmatprep.subr.bf16.mxu0 0
  %253 = vmatpush2.bf16.msra.mxu0 0
  %254 = vmatprep.subr.bf16.mxu0 0
  %255 = vmatpush2.bf16.msra.mxu0 0
  %256 = vmatprep.subr.bf16.mxu0 0
  %257 = vmatpush2.bf16.msra.mxu0 0
  %258 = vmatprep.subr.bf16.mxu0 0
  %259 = vmatpush2.bf16.msra.mxu0 0
  %260 = vmatprep.mubr.bf16.mxu0 0
  %261 = vmatmul.mubr.bf16.gmra.mxu0 %v226
  %v262 = vpop.f32.mrf.mxu0
  %v263 = vadd.f32 0.0, %v262
  %v264 = vpop.f32.mrf.mxu0
  %v265 = vpop.f32.mrf.mxu0
  %v266 = vpop.f32.mrf.mxu0
  %267 = vdwg.mxu0
  %v268 = vadd.f32 %v221, %v263
  %v269 = vsub.f32 0.0, %v268
  %v270 = vmul.f32 %v269, 1.442695
  %v271 = vpow.pop %v270
  %v272 = vadd.f32 %v271, 1.0
  %v273 = vrcp.pop %v272
  %v274 = vmul.f32 1.0, %v273
  %v275 = vtanh.pop %v268
  %277 = vrot.lane.b32.xlu0 %v223, 16
  %v278 = vpop.permute.xlu0 %277
  %v280 = vmul.f32 %v274, %v278
  %282 = vrot.lane.b32.xlu0 %v275, 96
  %v283 = vpop.permute.xlu0 %282
  %v285 = vmul.f32 %v274, %v283
  %287 = vrot.lane.b32.xlu0 %v285, 16
  %v288 = vpop.permute.xlu0 %287
  %v290 = vadd.f32 %v280, %v288
  %v291 = vtanh.pop %v290
  %293 = vrot.lane.b32.xlu0 %v291, 32
  %v294 = vpop.permute.xlu0 %293
  %v296 = vmul.f32 %v274, %v294
  %298 = vrot.lane.b32.xlu0 %v296, 80
  %v299 = vpop.permute.xlu0 %298
  %301 = vst.msk [vmem:[#allocation2] sm:$0x3] %vm20, %v299
  %303 = vrot.lane.b32.xlu0 %v290, 112
  %v304 = vpop.permute.xlu0 %303
  %306 = vst.msk [vmem:[#allocation3] sm:$0x3] %vm20, %v304
  %s307 = scalar_lea.vmem %s4, 2
  %308 = vst.msk [vmem:[%s307] sm:$0x3] %vm20, %v299
  %s309 = scalar_lea.vmem %s1, 12
  %v310 = vld [vmem:[%s309] sm:$0x3]
  %v311 = vld [vmem:[%s125] sm:$0x3]
  %v312 = vld [vmem:[%s127] sm:$0x3]
  %v313 = vpack.c.bf16 %v311, %v311
  %v315 = vsel %vm39, %v313, 0
  %317 = vmatprep.subr.bf16.mxu0 0
  %318 = vmatpush1.bf16.msra.mxu0 0
  %319 = vmatprep.subr.bf16.mxu0 0
  %320 = vmatpush1.bf16.msra.mxu0 0
  %321 = vmatprep.subr.bf16.mxu0 0
  %322 = vmatpush1.bf16.msra.mxu0 0
  %323 = vmatprep.subr.bf16.mxu0 0
  %324 = vmatpush1.bf16.msra.mxu0 0
  %325 = vmatprep.subr.bf16.mxu0 0
  %326 = vmatpush1.bf16.msra.mxu0 0
  %327 = vmatprep.subr.bf16.mxu0 0
  %328 = vmatpush1.bf16.msra.mxu0 0
  %329 = vmatprep.subr.bf16.mxu0 0
  %330 = vmatpush1.bf16.msra.mxu0 0
  %331 = vmatprep.subr.bf16.mxu0 0
  %332 = vmatpush1.bf16.msra.mxu0 %v134
  %333 = vmatprep.subr.bf16.mxu0 0
  %334 = vmatpush2.bf16.msra.mxu0 0
  %335 = vmatprep.subr.bf16.mxu0 0
  %336 = vmatpush2.bf16.msra.mxu0 0
  %337 = vmatprep.subr.bf16.mxu0 0
  %338 = vmatpush2.bf16.msra.mxu0 0
  %339 = vmatprep.subr.bf16.mxu0 0
  %340 = vmatpush2.bf16.msra.mxu0 0
  %341 = vmatprep.subr.bf16.mxu0 0
  %342 = vmatpush2.bf16.msra.mxu0 0
  %343 = vmatprep.subr.bf16.mxu0 0
  %344 = vmatpush2.bf16.msra.mxu0 0
  %345 = vmatprep.subr.bf16.mxu0 0
  %346 = vmatpush2.bf16.msra.mxu0 0
  %347 = vmatprep.subr.bf16.mxu0 0
  %348 = vmatpush2.bf16.msra.mxu0 0
  %349 = vmatprep.mubr.bf16.mxu0 0
  %350 = vmatmul.mubr.bf16.gmra.mxu0 %v315
  %v351 = vpop.f32.mrf.mxu0
  %v352 = vadd.f32 0.0, %v351
  %v353 = vpop.f32.mrf.mxu0
  %v354 = vpop.f32.mrf.mxu0
  %v355 = vpop.f32.mrf.mxu0
  %356 = vdwg.mxu0
  %v357 = vadd.f32 %v310, %v352
  %v358 = vsub.f32 0.0, %v357
  %v359 = vmul.f32 %v358, 1.442695
  %v360 = vpow.pop %v359
  %v361 = vadd.f32 %v360, 1.0
  %v362 = vrcp.pop %v361
  %v363 = vmul.f32 1.0, %v362
  %v364 = vtanh.pop %v357
  %366 = vrot.lane.b32.xlu0 %v312, 16
  %v367 = vpop.permute.xlu0 %366
  %v369 = vmul.f32 %v363, %v367
  %371 = vrot.lane.b32.xlu0 %v364, 96
  %v372 = vpop.permute.xlu0 %371
  %v374 = vmul.f32 %v363, %v372
  %376 = vrot.lane.b32.xlu0 %v374, 16
  %v377 = vpop.permute.xlu0 %376
  %v379 = vadd.f32 %v369, %v377
  %v380 = vtanh.pop %v379
  %382 = vrot.lane.b32.xlu0 %v380, 32
  %v383 = vpop.permute.xlu0 %382
  %v385 = vmul.f32 %v363, %v383
  %387 = vrot.lane.b32.xlu0 %v385, 80
  %v388 = vpop.permute.xlu0 %387
  %390 = vst.msk [vmem:[%s125] sm:$0x3] %vm20, %v388
  %392 = vrot.lane.b32.xlu0 %v379, 112
  %v393 = vpop.permute.xlu0 %392
  %395 = vst.msk [vmem:[%s127] sm:$0x3] %vm20, %v393
  %s396 = scalar_lea.vmem %s5, 12
  %397 = vst.msk [vmem:[%s396] sm:$0x3] %vm20, %v388
  %s398 = scalar_lea.vmem %s0, 4
  %v399 = vld [vmem:[%s398] sm:$0x3]
  %v400 = vld [vmem:[#allocation2] sm:$0x3]
  %v401 = vld [vmem:[#allocation3] sm:$0x3]
  %v402 = vpack.c.bf16 %v400, %v400
  %v404 = vsel %vm39, %v402, 0
  %406 = vmatprep.subr.bf16.mxu0 0
  %407 = vmatpush1.bf16.msra.mxu0 0
  %408 = vmatprep.subr.bf16.mxu0 0
  %409 = vmatpush1.bf16.msra.mxu0 0
  %410 = vmatprep.subr.bf16.mxu0 0
  %411 = vmatpush1.bf16.msra.mxu0 0
  %412 = vmatprep.subr.bf16.mxu0 0
  %413 = vmatpush1.bf16.msra.mxu0 0
  %414 = vmatprep.subr.bf16.mxu0 0
  %415 = vmatpush1.bf16.msra.mxu0 0
  %416 = vmatprep.subr.bf16.mxu0 0
  %417 = vmatpush1.bf16.msra.mxu0 0
  %418 = vmatprep.subr.bf16.mxu0 0
  %419 = vmatpush1.bf16.msra.mxu0 0
  %420 = vmatprep.subr.bf16.mxu0 0
  %421 = vmatpush1.bf16.msra.mxu0 %v37
  %422 = vmatprep.subr.bf16.mxu0 0
  %423 = vmatpush2.bf16.msra.mxu0 0
  %424 = vmatprep.subr.bf16.mxu0 0
  %425 = vmatpush2.bf16.msra.mxu0 0
  %426 = vmatprep.subr.bf16.mxu0 0
  %427 = vmatpush2.bf16.msra.mxu0 0
  %428 = vmatprep.subr.bf16.mxu0 0
  %429 = vmatpush2.bf16.msra.mxu0 0
  %430 = vmatprep.subr.bf16.mxu0 0
  %431 = vmatpush2.bf16.msra.mxu0 0
  %432 = vmatprep.subr.bf16.mxu0 0
  %433 = vmatpush2.bf16.msra.mxu0 0
  %434 = vmatprep.subr.bf16.mxu0 0
  %435 = vmatpush2.bf16.msra.mxu0 0
  %436 = vmatprep.subr.bf16.mxu0 0
  %437 = vmatpush2.bf16.msra.mxu0 0
  %438 = vmatprep.mubr.bf16.mxu0 0
  %439 = vmatmul.mubr.bf16.gmra.mxu0 %v404
  %v440 = vpop.f32.mrf.mxu0
  %v441 = vadd.f32 0.0, %v440
  %v442 = vpop.f32.mrf.mxu0
  %v443 = vpop.f32.mrf.mxu0
  %v444 = vpop.f32.mrf.mxu0
  %445 = vdwg.mxu0
  %v446 = vadd.f32 %v399, %v441
  %v447 = vsub.f32 0.0, %v446
  %v448 = vmul.f32 %v447, 1.442695
  %v449 = vpow.pop %v448
  %v450 = vadd.f32 %v449, 1.0
  %v451 = vrcp.pop %v450
  %v452 = vmul.f32 1.0, %v451
  %v453 = vtanh.pop %v446
  %455 = vrot.lane.b32.xlu0 %v401, 16
  %v456 = vpop.permute.xlu0 %455
  %v458 = vmul.f32 %v452, %v456
  %460 = vrot.lane.b32.xlu0 %v453, 96
  %v461 = vpop.permute.xlu0 %460
  %v463 = vmul.f32 %v452, %v461
  %465 = vrot.lane.b32.xlu0 %v463, 16
  %v466 = vpop.permute.xlu0 %465
  %v468 = vadd.f32 %v458, %v466
  %v469 = vtanh.pop %v468
  %471 = vrot.lane.b32.xlu0 %v469, 32
  %v472 = vpop.permute.xlu0 %471
  %v474 = vmul.f32 %v452, %v472
  %476 = vrot.lane.b32.xlu0 %v474, 80
  %v477 = vpop.permute.xlu0 %476
  %479 = vst.msk [vmem:[#allocation2] sm:$0x3] %vm20, %v477
  %481 = vrot.lane.b32.xlu0 %v468, 112
  %v482 = vpop.permute.xlu0 %481
  %484 = vst.msk [vmem:[#allocation3] sm:$0x3] %vm20, %v482
  %s485 = scalar_lea.vmem %s4, 4
  %486 = vst.msk [vmem:[%s485] sm:$0x3] %vm20, %v477
  %s487 = scalar_lea.vmem %s1, 10
  %v488 = vld [vmem:[%s487] sm:$0x3]
  %v489 = vld [vmem:[%s125] sm:$0x3]
  %v490 = vld [vmem:[%s127] sm:$0x3]
  %v491 = vpack.c.bf16 %v489, %v489
  %v493 = vsel %vm39, %v491, 0
  %495 = vmatprep.subr.bf16.mxu0 0
  %496 = vmatpush1.bf16.msra.mxu0 0
  %497 = vmatprep.subr.bf16.mxu0 0
  %498 = vmatpush1.bf16.msra.mxu0 0
  %499 = vmatprep.subr.bf16.mxu0 0
  %500 = vmatpush1.bf16.msra.mxu0 0
  %501 = vmatprep.subr.bf16.mxu0 0
  %502 = vmatpush1.bf16.msra.mxu0 0
  %503 = vmatprep.subr.bf16.mxu0 0
  %504 = vmatpush1.bf16.msra.mxu0 0
  %505 = vmatprep.subr.bf16.mxu0 0
  %506 = vmatpush1.bf16.msra.mxu0 0
  %507 = vmatprep.subr.bf16.mxu0 0
  %508 = vmatpush1.bf16.msra.mxu0 0
  %509 = vmatprep.subr.bf16.mxu0 0
  %510 = vmatpush1.bf16.msra.mxu0 %v134
  %511 = vmatprep.subr.bf16.mxu0 0
  %512 = vmatpush2.bf16.msra.mxu0 0
  %513 = vmatprep.subr.bf16.mxu0 0
  %514 = vmatpush2.bf16.msra.mxu0 0
  %515 = vmatprep.subr.bf16.mxu0 0
  %516 = vmatpush2.bf16.msra.mxu0 0
  %517 = vmatprep.subr.bf16.mxu0 0
  %518 = vmatpush2.bf16.msra.mxu0 0
  %519 = vmatprep.subr.bf16.mxu0 0
  %520 = vmatpush2.bf16.msra.mxu0 0
  %521 = vmatprep.subr.bf16.mxu0 0
  %522 = vmatpush2.bf16.msra.mxu0 0
  %523 = vmatprep.subr.bf16.mxu0 0
  %524 = vmatpush2.bf16.msra.mxu0 0
  %525 = vmatprep.subr.bf16.mxu0 0
  %526 = vmatpush2.bf16.msra.mxu0 0
  %527 = vmatprep.mubr.bf16.mxu0 0
  %528 = vmatmul.mubr.bf16.gmra.mxu0 %v493
  %v529 = vpop.f32.mrf.mxu0
  %v530 = vadd.f32 0.0, %v529
  %v531 = vpop.f32.mrf.mxu0
  %v532 = vpop.f32.mrf.mxu0
  %v533 = vpop.f32.mrf.mxu0
  %534 = vdwg.mxu0
  %v535 = vadd.f32 %v488, %v530
  %v536 = vsub.f32 0.0, %v535
  %v537 = vmul.f32 %v536, 1.442695
  %v538 = vpow.pop %v537
  %v539 = vadd.f32 %v538, 1.0
  %v540 = vrcp.pop %v539
  %v541 = vmul.f32 1.0, %v540
  %v542 = vtanh.pop %v535
  %544 = vrot.lane.b32.xlu0 %v490, 16
  %v545 = vpop.permute.xlu0 %544
  %v547 = vmul.f32 %v541, %v545
  %549 = vrot.lane.b32.xlu0 %v542, 96
  %v550 = vpop.permute.xlu0 %549
  %v552 = vmul.f32 %v541, %v550
  %554 = vrot.lane.b32.xlu0 %v552, 16
  %v555 = vpop.permute.xlu0 %554
  %v557 = vadd.f32 %v547, %v555
  %v558 = vtanh.pop %v557
  %560 = vrot.lane.b32.xlu0 %v558, 32
  %v561 = vpop.permute.xlu0 %560
  %v563 = vmul.f32 %v541, %v561
  %565 = vrot.lane.b32.xlu0 %v563, 80
  %v566 = vpop.permute.xlu0 %565
  %568 = vst.msk [vmem:[%s125] sm:$0x3] %vm20, %v566
  %570 = vrot.lane.b32.xlu0 %v557, 112
  %v571 = vpop.permute.xlu0 %570
  %573 = vst.msk [vmem:[%s127] sm:$0x3] %vm20, %v571
  %s574 = scalar_lea.vmem %s5, 10
  %575 = vst.msk [vmem:[%s574] sm:$0x3] %vm20, %v566
  %s576 = scalar_lea.vmem %s0, 6
  %v577 = vld [vmem:[%s576] sm:$0x3]
  %v578 = vld [vmem:[#allocation2] sm:$0x3]
  %v579 = vld [vmem:[#allocation3] sm:$0x3]
  %v580 = vpack.c.bf16 %v578, %v578
  %v582 = vsel %vm39, %v580, 0
  %584 = vmatprep.subr.bf16.mxu0 0
  %585 = vmatpush1.bf16.msra.mxu0 0
  %586 = vmatprep.subr.bf16.mxu0 0
  %587 = vmatpush1.bf16.msra.mxu0 0
  %588 = vmatprep.subr.bf16.mxu0 0
  %589 = vmatpush1.bf16.msra.mxu0 0
  %590 = vmatprep.subr.bf16.mxu0 0
  %591 = vmatpush1.bf16.msra.mxu0 0
  %592 = vmatprep.subr.bf16.mxu0 0
  %593 = vmatpush1.bf16.msra.mxu0 0
  %594 = vmatprep.subr.bf16.mxu0 0
  %595 = vmatpush1.bf16.msra.mxu0 0
  %596 = vmatprep.subr.bf16.mxu0 0
  %597 = vmatpush1.bf16.msra.mxu0 0
  %598 = vmatprep.subr.bf16.mxu0 0
  %599 = vmatpush1.bf16.msra.mxu0 %v37
  %600 = vmatprep.subr.bf16.mxu0 0
  %601 = vmatpush2.bf16.msra.mxu0 0
  %602 = vmatprep.subr.bf16.mxu0 0
  %603 = vmatpush2.bf16.msra.mxu0 0
  %604 = vmatprep.subr.bf16.mxu0 0
  %605 = vmatpush2.bf16.msra.mxu0 0
  %606 = vmatprep.subr.bf16.mxu0 0
  %607 = vmatpush2.bf16.msra.mxu0 0
  %608 = vmatprep.subr.bf16.mxu0 0
  %609 = vmatpush2.bf16.msra.mxu0 0
  %610 = vmatprep.subr.bf16.mxu0 0
  %611 = vmatpush2.bf16.msra.mxu0 0
  %612 = vmatprep.subr.bf16.mxu0 0
  %613 = vmatpush2.bf16.msra.mxu0 0
  %614 = vmatprep.subr.bf16.mxu0 0
  %615 = vmatpush2.bf16.msra.mxu0 0
  %616 = vmatprep.mubr.bf16.mxu0 0
  %617 = vmatmul.mubr.bf16.gmra.mxu0 %v582
  %v618 = vpop.f32.mrf.mxu0
  %v619 = vadd.f32 0.0, %v618
  %v620 = vpop.f32.mrf.mxu0
  %v621 = vpop.f32.mrf.mxu0
  %v622 = vpop.f32.mrf.mxu0
  %623 = vdwg.mxu0
  %v624 = vadd.f32 %v577, %v619
  %v625 = vsub.f32 0.0, %v624
  %v626 = vmul.f32 %v625, 1.442695
  %v627 = vpow.pop %v626
  %v628 = vadd.f32 %v627, 1.0
  %v629 = vrcp.pop %v628
  %v630 = vmul.f32 1.0, %v629
  %v631 = vtanh.pop %v624
  %633 = vrot.lane.b32.xlu0 %v579, 16
  %v634 = vpop.permute.xlu0 %633
  %v636 = vmul.f32 %v630, %v634
  %638 = vrot.lane.b32.xlu0 %v631, 96
  %v639 = vpop.permute.xlu0 %638
  %v641 = vmul.f32 %v630, %v639
  %643 = vrot.lane.b32.xlu0 %v641, 16
  %v644 = vpop.permute.xlu0 %643
  %v646 = vadd.f32 %v636, %v644
  %v647 = vtanh.pop %v646
  %649 = vrot.lane.b32.xlu0 %v647, 32
  %v650 = vpop.permute.xlu0 %649
  %v652 = vmul.f32 %v630, %v650
  %654 = vrot.lane.b32.xlu0 %v652, 80
  %v655 = vpop.permute.xlu0 %654
  %657 = vst.msk [vmem:[#allocation2] sm:$0x3] %vm20, %v655
  %659 = vrot.lane.b32.xlu0 %v646, 112
  %v660 = vpop.permute.xlu0 %659
  %662 = vst.msk [vmem:[#allocation3] sm:$0x3] %vm20, %v660
  %s663 = scalar_lea.vmem %s4, 6
  %664 = vst.msk [vmem:[%s663] sm:$0x3] %vm20, %v655
  %s665 = scalar_lea.vmem %s1, 8
  %v666 = vld [vmem:[%s665] sm:$0x3]
  %v667 = vld [vmem:[%s125] sm:$0x3]
  %v668 = vld [vmem:[%s127] sm:$0x3]
  %v669 = vpack.c.bf16 %v667, %v667
  %v671 = vsel %vm39, %v669, 0
  %673 = vmatprep.subr.bf16.mxu0 0
  %674 = vmatpush1.bf16.msra.mxu0 0
  %675 = vmatprep.subr.bf16.mxu0 0
  %676 = vmatpush1.bf16.msra.mxu0 0
  %677 = vmatprep.subr.bf16.mxu0 0
  %678 = vmatpush1.bf16.msra.mxu0 0
  %679 = vmatprep.subr.bf16.mxu0 0
  %680 = vmatpush1.bf16.msra.mxu0 0
  %681 = vmatprep.subr.bf16.mxu0 0
  %682 = vmatpush1.bf16.msra.mxu0 0
  %683 = vmatprep.subr.bf16.mxu0 0
  %684 = vmatpush1.bf16.msra.mxu0 0
  %685 = vmatprep.subr.bf16.mxu0 0
  %686 = vmatpush1.bf16.msra.mxu0 0
  %687 = vmatprep.subr.bf16.mxu0 0
  %688 = vmatpush1.bf16.msra.mxu0 %v134
  %689 = vmatprep.subr.bf16.mxu0 0
  %690 = vmatpush2.bf16.msra.mxu0 0
  %691 = vmatprep.subr.bf16.mxu0 0
  %692 = vmatpush2.bf16.msra.mxu0 0
  %693 = vmatprep.subr.bf16.mxu0 0
  %694 = vmatpush2.bf16.msra.mxu0 0
  %695 = vmatprep.subr.bf16.mxu0 0
  %696 = vmatpush2.bf16.msra.mxu0 0
  %697 = vmatprep.subr.bf16.mxu0 0
  %698 = vmatpush2.bf16.msra.mxu0 0
  %699 = vmatprep.subr.bf16.mxu0 0
  %700 = vmatpush2.bf16.msra.mxu0 0
  %701 = vmatprep.subr.bf16.mxu0 0
  %702 = vmatpush2.bf16.msra.mxu0 0
  %703 = vmatprep.subr.bf16.mxu0 0
  %704 = vmatpush2.bf16.msra.mxu0 0
  %705 = vmatprep.mubr.bf16.mxu0 0
  %706 = vmatmul.mubr.bf16.gmra.mxu0 %v671
  %v707 = vpop.f32.mrf.mxu0
  %v708 = vadd.f32 0.0, %v707
  %v709 = vpop.f32.mrf.mxu0
  %v710 = vpop.f32.mrf.mxu0
  %v711 = vpop.f32.mrf.mxu0
  %712 = vdwg.mxu0
  %v713 = vadd.f32 %v666, %v708
  %v714 = vsub.f32 0.0, %v713
  %v715 = vmul.f32 %v714, 1.442695
  %v716 = vpow.pop %v715
  %v717 = vadd.f32 %v716, 1.0
  %v718 = vrcp.pop %v717
  %v719 = vmul.f32 1.0, %v718
  %v720 = vtanh.pop %v713
  %722 = vrot.lane.b32.xlu0 %v668, 16
  %v723 = vpop.permute.xlu0 %722
  %v725 = vmul.f32 %v719, %v723
  %727 = vrot.lane.b32.xlu0 %v720, 96
  %v728 = vpop.permute.xlu0 %727
  %v730 = vmul.f32 %v719, %v728
  %732 = vrot.lane.b32.xlu0 %v730, 16
  %v733 = vpop.permute.xlu0 %732
  %v735 = vadd.f32 %v725, %v733
  %v736 = vtanh.pop %v735
  %738 = vrot.lane.b32.xlu0 %v736, 32
  %v739 = vpop.permute.xlu0 %738
  %v741 = vmul.f32 %v719, %v739
  %743 = vrot.lane.b32.xlu0 %v741, 80
  %v744 = vpop.permute.xlu0 %743
  %746 = vst.msk [vmem:[%s125] sm:$0x3] %vm20, %v744
  %748 = vrot.lane.b32.xlu0 %v735, 112
  %v749 = vpop.permute.xlu0 %748
  %751 = vst.msk [vmem:[%s127] sm:$0x3] %vm20, %v749
  %s752 = scalar_lea.vmem %s5, 8
  %753 = vst.msk [vmem:[%s752] sm:$0x3] %vm20, %v744
  %s754 = scalar_lea.vmem %s0, 8
  %v755 = vld [vmem:[%s754] sm:$0x3]
  %v756 = vld [vmem:[#allocation2] sm:$0x3]
  %v757 = vld [vmem:[#allocation3] sm:$0x3]
  %v758 = vpack.c.bf16 %v756, %v756
  %v760 = vsel %vm39, %v758, 0
  %762 = vmatprep.subr.bf16.mxu0 0
  %763 = vmatpush1.bf16.msra.mxu0 0
  %764 = vmatprep.subr.bf16.mxu0 0
  %765 = vmatpush1.bf16.msra.mxu0 0
  %766 = vmatprep.subr.bf16.mxu0 0
  %767 = vmatpush1.bf16.msra.mxu0 0
  %768 = vmatprep.subr.bf16.mxu0 0
  %769 = vmatpush1.bf16.msra.mxu0 0
  %770 = vmatprep.subr.bf16.mxu0 0
  %771 = vmatpush1.bf16.msra.mxu0 0
  %772 = vmatprep.subr.bf16.mxu0 0
  %773 = vmatpush1.bf16.msra.mxu0 0
  %774 = vmatprep.subr.bf16.mxu0 0
  %775 = vmatpush1.bf16.msra.mxu0 0
  %776 = vmatprep.subr.bf16.mxu0 0
  %777 = vmatpush1.bf16.msra.mxu0 %v37
  %778 = vmatprep.subr.bf16.mxu0 0
  %779 = vmatpush2.bf16.msra.mxu0 0
  %780 = vmatprep.subr.bf16.mxu0 0
  %781 = vmatpush2.bf16.msra.mxu0 0
  %782 = vmatprep.subr.bf16.mxu0 0
  %783 = vmatpush2.bf16.msra.mxu0 0
  %784 = vmatprep.subr.bf16.mxu0 0
  %785 = vmatpush2.bf16.msra.mxu0 0
  %786 = vmatprep.subr.bf16.mxu0 0
  %787 = vmatpush2.bf16.msra.mxu0 0
  %788 = vmatprep.subr.bf16.mxu0 0
  %789 = vmatpush2.bf16.msra.mxu0 0
  %790 = vmatprep.subr.bf16.mxu0 0
  %791 = vmatpush2.bf16.msra.mxu0 0
  %792 = vmatprep.subr.bf16.mxu0 0
  %793 = vmatpush2.bf16.msra.mxu0 0
  %794 = vmatprep.mubr.bf16.mxu0 0
  %795 = vmatmul.mubr.bf16.gmra.mxu0 %v760
  %v796 = vpop.f32.mrf.mxu0
  %v797 = vadd.f32 0.0, %v796
  %v798 = vpop.f32.mrf.mxu0
  %v799 = vpop.f32.mrf.mxu0
  %v800 = vpop.f32.mrf.mxu0
  %801 = vdwg.mxu0
  %v802 = vadd.f32 %v755, %v797
  %v803 = vsub.f32 0.0, %v802
  %v804 = vmul.f32 %v803, 1.442695
  %v805 = vpow.pop %v804
  %v806 = vadd.f32 %v805, 1.0
  %v807 = vrcp.pop %v806
  %v808 = vmul.f32 1.0, %v807
  %v809 = vtanh.pop %v802
  %811 = vrot.lane.b32.xlu0 %v757, 16
  %v812 = vpop.permute.xlu0 %811
  %v814 = vmul.f32 %v808, %v812
  %816 = vrot.lane.b32.xlu0 %v809, 96
  %v817 = vpop.permute.xlu0 %816
  %v819 = vmul.f32 %v808, %v817
  %821 = vrot.lane.b32.xlu0 %v819, 16
  %v822 = vpop.permute.xlu0 %821
  %v824 = vadd.f32 %v814, %v822
  %v825 = vtanh.pop %v824
  %827 = vrot.lane.b32.xlu0 %v825, 32
  %v828 = vpop.permute.xlu0 %827
  %v830 = vmul.f32 %v808, %v828
  %832 = vrot.lane.b32.xlu0 %v830, 80
  %v833 = vpop.permute.xlu0 %832
  %835 = vst.msk [vmem:[#allocation2] sm:$0x3] %vm20, %v833
  %837 = vrot.lane.b32.xlu0 %v824, 112
  %v838 = vpop.permute.xlu0 %837
  %840 = vst.msk [vmem:[#allocation3] sm:$0x3] %vm20, %v838
  %s841 = scalar_lea.vmem %s4, 8
  %842 = vst.msk [vmem:[%s841] sm:$0x3] %vm20, %v833
  %s843 = scalar_lea.vmem %s1, 6
  %v844 = vld [vmem:[%s843] sm:$0x3]
  %v845 = vld [vmem:[%s125] sm:$0x3]
  %v846 = vld [vmem:[%s127] sm:$0x3]
  %v847 = vpack.c.bf16 %v845, %v845
  %v849 = vsel %vm39, %v847, 0
  %851 = vmatprep.subr.bf16.mxu0 0
  %852 = vmatpush1.bf16.msra.mxu0 0
  %853 = vmatprep.subr.bf16.mxu0 0
  %854 = vmatpush1.bf16.msra.mxu0 0
  %855 = vmatprep.subr.bf16.mxu0 0
  %856 = vmatpush1.bf16.msra.mxu0 0
  %857 = vmatprep.subr.bf16.mxu0 0
  %858 = vmatpush1.bf16.msra.mxu0 0
  %859 = vmatprep.subr.bf16.mxu0 0
  %860 = vmatpush1.bf16.msra.mxu0 0
  %861 = vmatprep.subr.bf16.mxu0 0
  %862 = vmatpush1.bf16.msra.mxu0 0
  %863 = vmatprep.subr.bf16.mxu0 0
  %864 = vmatpush1.bf16.msra.mxu0 0
  %865 = vmatprep.subr.bf16.mxu0 0
  %866 = vmatpush1.bf16.msra.mxu0 %v134
  %867 = vmatprep.subr.bf16.mxu0 0
  %868 = vmatpush2.bf16.msra.mxu0 0
  %869 = vmatprep.subr.bf16.mxu0 0
  %870 = vmatpush2.bf16.msra.mxu0 0
  %871 = vmatprep.subr.bf16.mxu0 0
  %872 = vmatpush2.bf16.msra.mxu0 0
  %873 = vmatprep.subr.bf16.mxu0 0
  %874 = vmatpush2.bf16.msra.mxu0 0
  %875 = vmatprep.subr.bf16.mxu0 0
  %876 = vmatpush2.bf16.msra.mxu0 0
  %877 = vmatprep.subr.bf16.mxu0 0
  %878 = vmatpush2.bf16.msra.mxu0 0
  %879 = vmatprep.subr.bf16.mxu0 0
  %880 = vmatpush2.bf16.msra.mxu0 0
  %881 = vmatprep.subr.bf16.mxu0 0
  %882 = vmatpush2.bf16.msra.mxu0 0
  %883 = vmatprep.mubr.bf16.mxu0 0
  %884 = vmatmul.mubr.bf16.gmra.mxu0 %v849
  %v885 = vpop.f32.mrf.mxu0
  %v886 = vadd.f32 0.0, %v885
  %v887 = vpop.f32.mrf.mxu0
  %v888 = vpop.f32.mrf.mxu0
  %v889 = vpop.f32.mrf.mxu0
  %890 = vdwg.mxu0
  %v891 = vadd.f32 %v844, %v886
  %v892 = vsub.f32 0.0, %v891
  %v893 = vmul.f32 %v892, 1.442695
  %v894 = vpow.pop %v893
  %v895 = vadd.f32 %v894, 1.0
  %v896 = vrcp.pop %v895
  %v897 = vmul.f32 1.0, %v896
  %v898 = vtanh.pop %v891
  %900 = vrot.lane.b32.xlu0 %v846, 16
  %v901 = vpop.permute.xlu0 %900
  %v903 = vmul.f32 %v897, %v901
  %905 = vrot.lane.b32.xlu0 %v898, 96
  %v906 = vpop.permute.xlu0 %905
  %v908 = vmul.f32 %v897, %v906
  %910 = vrot.lane.b32.xlu0 %v908, 16
  %v911 = vpop.permute.xlu0 %910
  %v913 = vadd.f32 %v903, %v911
  %v914 = vtanh.pop %v913
  %916 = vrot.lane.b32.xlu0 %v914, 32
  %v917 = vpop.permute.xlu0 %916
  %v919 = vmul.f32 %v897, %v917
  %921 = vrot.lane.b32.xlu0 %v919, 80
  %v922 = vpop.permute.xlu0 %921
  %924 = vst.msk [vmem:[%s125] sm:$0x3] %vm20, %v922
  %926 = vrot.lane.b32.xlu0 %v913, 112
  %v927 = vpop.permute.xlu0 %926
  %929 = vst.msk [vmem:[%s127] sm:$0x3] %vm20, %v927
  %s930 = scalar_lea.vmem %s5, 6
  %931 = vst.msk [vmem:[%s930] sm:$0x3] %vm20, %v922
  %s932 = scalar_lea.vmem %s0, 10
  %v933 = vld [vmem:[%s932] sm:$0x3]
  %v934 = vld [vmem:[#allocation2] sm:$0x3]
  %v935 = vld [vmem:[#allocation3] sm:$0x3]
  %v936 = vpack.c.bf16 %v934, %v934
  %v938 = vsel %vm39, %v936, 0
  %940 = vmatprep.subr.bf16.mxu0 0
  %941 = vmatpush1.bf16.msra.mxu0 0
  %942 = vmatprep.subr.bf16.mxu0 0
  %943 = vmatpush1.bf16.msra.mxu0 0
  %944 = vmatprep.subr.bf16.mxu0 0
  %945 = vmatpush1.bf16.msra.mxu0 0
  %946 = vmatprep.subr.bf16.mxu0 0
  %947 = vmatpush1.bf16.msra.mxu0 0
  %948 = vmatprep.subr.bf16.mxu0 0
  %949 = vmatpush1.bf16.msra.mxu0 0
  %950 = vmatprep.subr.bf16.mxu0 0
  %951 = vmatpush1.bf16.msra.mxu0 0
  %952 = vmatprep.subr.bf16.mxu0 0
  %953 = vmatpush1.bf16.msra.mxu0 0
  %954 = vmatprep.subr.bf16.mxu0 0
  %955 = vmatpush1.bf16.msra.mxu0 %v37
  %956 = vmatprep.subr.bf16.mxu0 0
  %957 = vmatpush2.bf16.msra.mxu0 0
  %958 = vmatprep.subr.bf16.mxu0 0
  %959 = vmatpush2.bf16.msra.mxu0 0
  %960 = vmatprep.subr.bf16.mxu0 0
  %961 = vmatpush2.bf16.msra.mxu0 0
  %962 = vmatprep.subr.bf16.mxu0 0
  %963 = vmatpush2.bf16.msra.mxu0 0
  %964 = vmatprep.subr.bf16.mxu0 0
  %965 = vmatpush2.bf16.msra.mxu0 0
  %966 = vmatprep.subr.bf16.mxu0 0
  %967 = vmatpush2.bf16.msra.mxu0 0
  %968 = vmatprep.subr.bf16.mxu0 0
  %969 = vmatpush2.bf16.msra.mxu0 0
  %970 = vmatprep.subr.bf16.mxu0 0
  %971 = vmatpush2.bf16.msra.mxu0 0
  %972 = vmatprep.mubr.bf16.mxu0 0
  %973 = vmatmul.mubr.bf16.gmra.mxu0 %v938
  %v974 = vpop.f32.mrf.mxu0
  %v975 = vadd.f32 0.0, %v974
  %v976 = vpop.f32.mrf.mxu0
  %v977 = vpop.f32.mrf.mxu0
  %v978 = vpop.f32.mrf.mxu0
  %979 = vdwg.mxu0
  %v980 = vadd.f32 %v933, %v975
  %v981 = vsub.f32 0.0, %v980
  %v982 = vmul.f32 %v981, 1.442695
  %v983 = vpow.pop %v982
  %v984 = vadd.f32 %v983, 1.0
  %v985 = vrcp.pop %v984
  %v986 = vmul.f32 1.0, %v985
  %v987 = vtanh.pop %v980
  %989 = vrot.lane.b32.xlu0 %v935, 16
  %v990 = vpop.permute.xlu0 %989
  %v992 = vmul.f32 %v986, %v990
  %994 = vrot.lane.b32.xlu0 %v987, 96
  %v995 = vpop.permute.xlu0 %994
  %v997 = vmul.f32 %v986, %v995
  %999 = vrot.lane.b32.xlu0 %v997, 16
  %v1000 = vpop.permute.xlu0 %999
  %v1002 = vadd.f32 %v992, %v1000
  %v1003 = vtanh.pop %v1002
  %1005 = vrot.lane.b32.xlu0 %v1003, 32
  %v1006 = vpop.permute.xlu0 %1005
  %v1008 = vmul.f32 %v986, %v1006
  %1010 = vrot.lane.b32.xlu0 %v1008, 80
  %v1011 = vpop.permute.xlu0 %1010
  %1013 = vst.msk [vmem:[#allocation2] sm:$0x3] %vm20, %v1011
  %1015 = vrot.lane.b32.xlu0 %v1002, 112
  %v1016 = vpop.permute.xlu0 %1015
  %1018 = vst.msk [vmem:[#allocation3] sm:$0x3] %vm20, %v1016
  %s1019 = scalar_lea.vmem %s4, 10
  %1020 = vst.msk [vmem:[%s1019] sm:$0x3] %vm20, %v1011
  %s1021 = scalar_lea.vmem %s1, 4
  %v1022 = vld [vmem:[%s1021] sm:$0x3]
  %v1023 = vld [vmem:[%s125] sm:$0x3]
  %v1024 = vld [vmem:[%s127] sm:$0x3]
  %v1025 = vpack.c.bf16 %v1023, %v1023
  %v1027 = vsel %vm39, %v1025, 0
  %1029 = vmatprep.subr.bf16.mxu0 0
  %1030 = vmatpush1.bf16.msra.mxu0 0
  %1031 = vmatprep.subr.bf16.mxu0 0
  %1032 = vmatpush1.bf16.msra.mxu0 0
  %1033 = vmatprep.subr.bf16.mxu0 0
  %1034 = vmatpush1.bf16.msra.mxu0 0
  %1035 = vmatprep.subr.bf16.mxu0 0
  %1036 = vmatpush1.bf16.msra.mxu0 0
  %1037 = vmatprep.subr.bf16.mxu0 0
  %1038 = vmatpush1.bf16.msra.mxu0 0
  %1039 = vmatprep.subr.bf16.mxu0 0
  %1040 = vmatpush1.bf16.msra.mxu0 0
  %1041 = vmatprep.subr.bf16.mxu0 0
  %1042 = vmatpush1.bf16.msra.mxu0 0
  %1043 = vmatprep.subr.bf16.mxu0 0
  %1044 = vmatpush1.bf16.msra.mxu0 %v134
  %1045 = vmatprep.subr.bf16.mxu0 0
  %1046 = vmatpush2.bf16.msra.mxu0 0
  %1047 = vmatprep.subr.bf16.mxu0 0
  %1048 = vmatpush2.bf16.msra.mxu0 0
  %1049 = vmatprep.subr.bf16.mxu0 0
  %1050 = vmatpush2.bf16.msra.mxu0 0
  %1051 = vmatprep.subr.bf16.mxu0 0
  %1052 = vmatpush2.bf16.msra.mxu0 0
  %1053 = vmatprep.subr.bf16.mxu0 0
  %1054 = vmatpush2.bf16.msra.mxu0 0
  %1055 = vmatprep.subr.bf16.mxu0 0
  %1056 = vmatpush2.bf16.msra.mxu0 0
  %1057 = vmatprep.subr.bf16.mxu0 0
  %1058 = vmatpush2.bf16.msra.mxu0 0
  %1059 = vmatprep.subr.bf16.mxu0 0
  %1060 = vmatpush2.bf16.msra.mxu0 0
  %1061 = vmatprep.mubr.bf16.mxu0 0
  %1062 = vmatmul.mubr.bf16.gmra.mxu0 %v1027
  %v1063 = vpop.f32.mrf.mxu0
  %v1064 = vadd.f32 0.0, %v1063
  %v1065 = vpop.f32.mrf.mxu0
  %v1066 = vpop.f32.mrf.mxu0
  %v1067 = vpop.f32.mrf.mxu0
  %1068 = vdwg.mxu0
  %v1069 = vadd.f32 %v1022, %v1064
  %v1070 = vsub.f32 0.0, %v1069
  %v1071 = vmul.f32 %v1070, 1.442695
  %v1072 = vpow.pop %v1071
  %v1073 = vadd.f32 %v1072, 1.0
  %v1074 = vrcp.pop %v1073
  %v1075 = vmul.f32 1.0, %v1074
  %v1076 = vtanh.pop %v1069
  %1078 = vrot.lane.b32.xlu0 %v1024, 16
  %v1079 = vpop.permute.xlu0 %1078
  %v1081 = vmul.f32 %v1075, %v1079
  %1083 = vrot.lane.b32.xlu0 %v1076, 96
  %v1084 = vpop.permute.xlu0 %1083
  %v1086 = vmul.f32 %v1075, %v1084
  %1088 = vrot.lane.b32.xlu0 %v1086, 16
  %v1089 = vpop.permute.xlu0 %1088
  %v1091 = vadd.f32 %v1081, %v1089
  %v1092 = vtanh.pop %v1091
  %1094 = vrot.lane.b32.xlu0 %v1092, 32
  %v1095 = vpop.permute.xlu0 %1094
  %v1097 = vmul.f32 %v1075, %v1095
  %1099 = vrot.lane.b32.xlu0 %v1097, 80
  %v1100 = vpop.permute.xlu0 %1099
  %1102 = vst.msk [vmem:[%s125] sm:$0x3] %vm20, %v1100
  %1104 = vrot.lane.b32.xlu0 %v1091, 112
  %v1105 = vpop.permute.xlu0 %1104
  %1107 = vst.msk [vmem:[%s127] sm:$0x3] %vm20, %v1105
  %s1108 = scalar_lea.vmem %s5, 4
  %1109 = vst.msk [vmem:[%s1108] sm:$0x3] %vm20, %v1100
  %s1110 = scalar_lea.vmem %s0, 12
  %v1111 = vld [vmem:[%s1110] sm:$0x3]
  %v1112 = vld [vmem:[#allocation2] sm:$0x3]
  %v1113 = vld [vmem:[#allocation3] sm:$0x3]
  %v1114 = vpack.c.bf16 %v1112, %v1112
  %v1116 = vsel %vm39, %v1114, 0
  %1118 = vmatprep.subr.bf16.mxu0 0
  %1119 = vmatpush1.bf16.msra.mxu0 0
  %1120 = vmatprep.subr.bf16.mxu0 0
  %1121 = vmatpush1.bf16.msra.mxu0 0
  %1122 = vmatprep.subr.bf16.mxu0 0
  %1123 = vmatpush1.bf16.msra.mxu0 0
  %1124 = vmatprep.subr.bf16.mxu0 0
  %1125 = vmatpush1.bf16.msra.mxu0 0
  %1126 = vmatprep.subr.bf16.mxu0 0
  %1127 = vmatpush1.bf16.msra.mxu0 0
  %1128 = vmatprep.subr.bf16.mxu0 0
  %1129 = vmatpush1.bf16.msra.mxu0 0
  %1130 = vmatprep.subr.bf16.mxu0 0
  %1131 = vmatpush1.bf16.msra.mxu0 0
  %1132 = vmatprep.subr.bf16.mxu0 0
  %1133 = vmatpush1.bf16.msra.mxu0 %v37
  %1134 = vmatprep.subr.bf16.mxu0 0
  %1135 = vmatpush2.bf16.msra.mxu0 0
  %1136 = vmatprep.subr.bf16.mxu0 0
  %1137 = vmatpush2.bf16.msra.mxu0 0
  %1138 = vmatprep.subr.bf16.mxu0 0
  %1139 = vmatpush2.bf16.msra.mxu0 0
  %1140 = vmatprep.subr.bf16.mxu0 0
  %1141 = vmatpush2.bf16.msra.mxu0 0
  %1142 = vmatprep.subr.bf16.mxu0 0
  %1143 = vmatpush2.bf16.msra.mxu0 0
  %1144 = vmatprep.subr.bf16.mxu0 0
  %1145 = vmatpush2.bf16.msra.mxu0 0
  %1146 = vmatprep.subr.bf16.mxu0 0
  %1147 = vmatpush2.bf16.msra.mxu0 0
  %1148 = vmatprep.subr.bf16.mxu0 0
  %1149 = vmatpush2.bf16.msra.mxu0 0
  %1150 = vmatprep.mubr.bf16.mxu0 0
  %1151 = vmatmul.mubr.bf16.gmra.mxu0 %v1116
  %v1152 = vpop.f32.mrf.mxu0
  %v1153 = vadd.f32 0.0, %v1152
  %v1154 = vpop.f32.mrf.mxu0
  %v1155 = vpop.f32.mrf.mxu0
  %v1156 = vpop.f32.mrf.mxu0
  %1157 = vdwg.mxu0
  %v1158 = vadd.f32 %v1111, %v1153
  %v1159 = vsub.f32 0.0, %v1158
  %v1160 = vmul.f32 %v1159, 1.442695
  %v1161 = vpow.pop %v1160
  %v1162 = vadd.f32 %v1161, 1.0
  %v1163 = vrcp.pop %v1162
  %v1164 = vmul.f32 1.0, %v1163
  %v1165 = vtanh.pop %v1158
  %1167 = vrot.lane.b32.xlu0 %v1113, 16
  %v1168 = vpop.permute.xlu0 %1167
  %v1170 = vmul.f32 %v1164, %v1168
  %1172 = vrot.lane.b32.xlu0 %v1165, 96
  %v1173 = vpop.permute.xlu0 %1172
  %v1175 = vmul.f32 %v1164, %v1173
  %1177 = vrot.lane.b32.xlu0 %v1175, 16
  %v1178 = vpop.permute.xlu0 %1177
  %v1180 = vadd.f32 %v1170, %v1178
  %v1181 = vtanh.pop %v1180
  %1183 = vrot.lane.b32.xlu0 %v1181, 32
  %v1184 = vpop.permute.xlu0 %1183
  %v1186 = vmul.f32 %v1164, %v1184
  %1188 = vrot.lane.b32.xlu0 %v1186, 80
  %v1189 = vpop.permute.xlu0 %1188
  %1191 = vst.msk [vmem:[#allocation2] sm:$0x3] %vm20, %v1189
  %1193 = vrot.lane.b32.xlu0 %v1180, 112
  %v1194 = vpop.permute.xlu0 %1193
  %1196 = vst.msk [vmem:[#allocation3] sm:$0x3] %vm20, %v1194
  %s1197 = scalar_lea.vmem %s4, 12
  %1198 = vst.msk [vmem:[%s1197] sm:$0x3] %vm20, %v1189
  %s1199 = scalar_lea.vmem %s1, 2
  %v1200 = vld [vmem:[%s1199] sm:$0x3]
  %v1201 = vld [vmem:[%s125] sm:$0x3]
  %v1202 = vld [vmem:[%s127] sm:$0x3]
  %v1203 = vpack.c.bf16 %v1201, %v1201
  %v1205 = vsel %vm39, %v1203, 0
  %1207 = vmatprep.subr.bf16.mxu0 0
  %1208 = vmatpush1.bf16.msra.mxu0 0
  %1209 = vmatprep.subr.bf16.mxu0 0
  %1210 = vmatpush1.bf16.msra.mxu0 0
  %1211 = vmatprep.subr.bf16.mxu0 0
  %1212 = vmatpush1.bf16.msra.mxu0 0
  %1213 = vmatprep.subr.bf16.mxu0 0
  %1214 = vmatpush1.bf16.msra.mxu0 0
  %1215 = vmatprep.subr.bf16.mxu0 0
  %1216 = vmatpush1.bf16.msra.mxu0 0
  %1217 = vmatprep.subr.bf16.mxu0 0
  %1218 = vmatpush1.bf16.msra.mxu0 0
  %1219 = vmatprep.subr.bf16.mxu0 0
  %1220 = vmatpush1.bf16.msra.mxu0 0
  %1221 = vmatprep.subr.bf16.mxu0 0
  %1222 = vmatpush1.bf16.msra.mxu0 %v134
  %1223 = vmatprep.subr.bf16.mxu0 0
  %1224 = vmatpush2.bf16.msra.mxu0 0
  %1225 = vmatprep.subr.bf16.mxu0 0
  %1226 = vmatpush2.bf16.msra.mxu0 0
  %1227 = vmatprep.subr.bf16.mxu0 0
  %1228 = vmatpush2.bf16.msra.mxu0 0
  %1229 = vmatprep.subr.bf16.mxu0 0
  %1230 = vmatpush2.bf16.msra.mxu0 0
  %1231 = vmatprep.subr.bf16.mxu0 0
  %1232 = vmatpush2.bf16.msra.mxu0 0
  %1233 = vmatprep.subr.bf16.mxu0 0
  %1234 = vmatpush2.bf16.msra.mxu0 0
  %1235 = vmatprep.subr.bf16.mxu0 0
  %1236 = vmatpush2.bf16.msra.mxu0 0
  %1237 = vmatprep.subr.bf16.mxu0 0
  %1238 = vmatpush2.bf16.msra.mxu0 0
  %1239 = vmatprep.mubr.bf16.mxu0 0
  %1240 = vmatmul.mubr.bf16.gmra.mxu0 %v1205
  %v1241 = vpop.f32.mrf.mxu0
  %v1242 = vadd.f32 0.0, %v1241
  %v1243 = vpop.f32.mrf.mxu0
  %v1244 = vpop.f32.mrf.mxu0
  %v1245 = vpop.f32.mrf.mxu0
  %1246 = vdwg.mxu0
  %v1247 = vadd.f32 %v1200, %v1242
  %v1248 = vsub.f32 0.0, %v1247
  %v1249 = vmul.f32 %v1248, 1.442695
  %v1250 = vpow.pop %v1249
  %v1251 = vadd.f32 %v1250, 1.0
  %v1252 = vrcp.pop %v1251
  %v1253 = vmul.f32 1.0, %v1252
  %v1254 = vtanh.pop %v1247
  %1256 = vrot.lane.b32.xlu0 %v1202, 16
  %v1257 = vpop.permute.xlu0 %1256
  %v1259 = vmul.f32 %v1253, %v1257
  %1261 = vrot.lane.b32.xlu0 %v1254, 96
  %v1262 = vpop.permute.xlu0 %1261
  %v1264 = vmul.f32 %v1253, %v1262
  %1266 = vrot.lane.b32.xlu0 %v1264, 16
  %v1267 = vpop.permute.xlu0 %1266
  %v1269 = vadd.f32 %v1259, %v1267
  %v1270 = vtanh.pop %v1269
  %1272 = vrot.lane.b32.xlu0 %v1270, 32
  %v1273 = vpop.permute.xlu0 %1272
  %v1275 = vmul.f32 %v1253, %v1273
  %1277 = vrot.lane.b32.xlu0 %v1275, 80
  %v1278 = vpop.permute.xlu0 %1277
  %1280 = vst.msk [vmem:[%s125] sm:$0x3] %vm20, %v1278
  %1282 = vrot.lane.b32.xlu0 %v1269, 112
  %v1283 = vpop.permute.xlu0 %1282
  %1285 = vst.msk [vmem:[%s127] sm:$0x3] %vm20, %v1283
  %s1286 = scalar_lea.vmem %s5, 2
  %1287 = vst.msk [vmem:[%s1286] sm:$0x3] %vm20, %v1278
  %s1288 = scalar_lea.vmem %s0, 14
  %v1289 = vld [vmem:[%s1288] sm:$0x3]
  %v1290 = vld [vmem:[#allocation2] sm:$0x3]
  %v1291 = vld [vmem:[#allocation3] sm:$0x3]
  %v1292 = vpack.c.bf16 %v1290, %v1290
  %v1294 = vsel %vm39, %v1292, 0
  %1296 = vmatprep.subr.bf16.mxu0 0
  %1297 = vmatpush1.bf16.msra.mxu0 0
  %1298 = vmatprep.subr.bf16.mxu0 0
  %1299 = vmatpush1.bf16.msra.mxu0 0
  %1300 = vmatprep.subr.bf16.mxu0 0
  %1301 = vmatpush1.bf16.msra.mxu0 0
  %1302 = vmatprep.subr.bf16.mxu0 0
  %1303 = vmatpush1.bf16.msra.mxu0 0
  %1304 = vmatprep.subr.bf16.mxu0 0
  %1305 = vmatpush1.bf16.msra.mxu0 0
  %1306 = vmatprep.subr.bf16.mxu0 0
  %1307 = vmatpush1.bf16.msra.mxu0 0
  %1308 = vmatprep.subr.bf16.mxu0 0
  %1309 = vmatpush1.bf16.msra.mxu0 0
  %1310 = vmatprep.subr.bf16.mxu0 0
  %1311 = vmatpush1.bf16.msra.mxu0 %v37
  %1312 = vmatprep.subr.bf16.mxu0 0
  %1313 = vmatpush2.bf16.msra.mxu0 0
  %1314 = vmatprep.subr.bf16.mxu0 0
  %1315 = vmatpush2.bf16.msra.mxu0 0
  %1316 = vmatprep.subr.bf16.mxu0 0
  %1317 = vmatpush2.bf16.msra.mxu0 0
  %1318 = vmatprep.subr.bf16.mxu0 0
  %1319 = vmatpush2.bf16.msra.mxu0 0
  %1320 = vmatprep.subr.bf16.mxu0 0
  %1321 = vmatpush2.bf16.msra.mxu0 0
  %1322 = vmatprep.subr.bf16.mxu0 0
  %1323 = vmatpush2.bf16.msra.mxu0 0
  %1324 = vmatprep.subr.bf16.mxu0 0
  %1325 = vmatpush2.bf16.msra.mxu0 0
  %1326 = vmatprep.subr.bf16.mxu0 0
  %1327 = vmatpush2.bf16.msra.mxu0 0
  %1328 = vmatprep.mubr.bf16.mxu0 0
  %1329 = vmatmul.mubr.bf16.gmra.mxu0 %v1294
  %v1330 = vpop.f32.mrf.mxu0
  %v1331 = vadd.f32 0.0, %v1330
  %v1332 = vpop.f32.mrf.mxu0
  %v1333 = vpop.f32.mrf.mxu0
  %v1334 = vpop.f32.mrf.mxu0
  %1335 = vdwg.mxu0
  %v1336 = vadd.f32 %v1289, %v1331
  %v1337 = vsub.f32 0.0, %v1336
  %v1338 = vmul.f32 %v1337, 1.442695
  %v1339 = vpow.pop %v1338
  %v1340 = vadd.f32 %v1339, 1.0
  %v1341 = vrcp.pop %v1340
  %v1342 = vmul.f32 1.0, %v1341
  %v1343 = vtanh.pop %v1336
  %1345 = vrot.lane.b32.xlu0 %v1291, 16
  %v1346 = vpop.permute.xlu0 %1345
  %v1348 = vmul.f32 %v1342, %v1346
  %1350 = vrot.lane.b32.xlu0 %v1343, 96
  %v1351 = vpop.permute.xlu0 %1350
  %v1353 = vmul.f32 %v1342, %v1351
  %1355 = vrot.lane.b32.xlu0 %v1353, 16
  %v1356 = vpop.permute.xlu0 %1355
  %v1358 = vadd.f32 %v1348, %v1356
  %v1359 = vtanh.pop %v1358
  %1361 = vrot.lane.b32.xlu0 %v1359, 32
  %v1362 = vpop.permute.xlu0 %1361
  %v1364 = vmul.f32 %v1342, %v1362
  %1366 = vrot.lane.b32.xlu0 %v1364, 80
  %v1367 = vpop.permute.xlu0 %1366
  %1369 = vst.msk [vmem:[#allocation2] sm:$0x3] %vm20, %v1367
  %1371 = vrot.lane.b32.xlu0 %v1358, 112
  %v1372 = vpop.permute.xlu0 %1371
  %1374 = vst.msk [vmem:[#allocation3] sm:$0x3] %vm20, %v1372
  %s1375 = scalar_lea.vmem %s4, 14
  %1376 = vst.msk [vmem:[%s1375] sm:$0x3] %vm20, %v1367
  %v1377 = vld [vmem:[%s1] sm:$0x3]
  %v1378 = vld [vmem:[%s125] sm:$0x3]
  %v1379 = vld [vmem:[%s127] sm:$0x3]
  %v1380 = vpack.c.bf16 %v1378, %v1378
  %v1382 = vsel %vm39, %v1380, 0
  %1384 = vmatprep.subr.bf16.mxu0 0
  %1385 = vmatpush1.bf16.msra.mxu0 0
  %1386 = vmatprep.subr.bf16.mxu0 0
  %1387 = vmatpush1.bf16.msra.mxu0 0
  %1388 = vmatprep.subr.bf16.mxu0 0
  %1389 = vmatpush1.bf16.msra.mxu0 0
  %1390 = vmatprep.subr.bf16.mxu0 0
  %1391 = vmatpush1.bf16.msra.mxu0 0
  %1392 = vmatprep.subr.bf16.mxu0 0
  %1393 = vmatpush1.bf16.msra.mxu0 0
  %1394 = vmatprep.subr.bf16.mxu0 0
  %1395 = vmatpush1.bf16.msra.mxu0 0
  %1396 = vmatprep.subr.bf16.mxu0 0
  %1397 = vmatpush1.bf16.msra.mxu0 0
  %1398 = vmatprep.subr.bf16.mxu0 0
  %1399 = vmatpush1.bf16.msra.mxu0 %v134
  %1400 = vmatprep.subr.bf16.mxu0 0
  %1401 = vmatpush2.bf16.msra.mxu0 0
  %1402 = vmatprep.subr.bf16.mxu0 0
  %1403 = vmatpush2.bf16.msra.mxu0 0
  %1404 = vmatprep.subr.bf16.mxu0 0
  %1405 = vmatpush2.bf16.msra.mxu0 0
  %1406 = vmatprep.subr.bf16.mxu0 0
  %1407 = vmatpush2.bf16.msra.mxu0 0
  %1408 = vmatprep.subr.bf16.mxu0 0
  %1409 = vmatpush2.bf16.msra.mxu0 0
  %1410 = vmatprep.subr.bf16.mxu0 0
  %1411 = vmatpush2.bf16.msra.mxu0 0
  %1412 = vmatprep.subr.bf16.mxu0 0
  %1413 = vmatpush2.bf16.msra.mxu0 0
  %1414 = vmatprep.subr.bf16.mxu0 0
  %1415 = vmatpush2.bf16.msra.mxu0 0
  %1416 = vmatprep.mubr.bf16.mxu0 0
  %1417 = vmatmul.mubr.bf16.gmra.mxu0 %v1382
  %v1418 = vpop.f32.mrf.mxu0
  %v1419 = vadd.f32 0.0, %v1418
  %v1420 = vpop.f32.mrf.mxu0
  %v1421 = vpop.f32.mrf.mxu0
  %v1422 = vpop.f32.mrf.mxu0
  %1423 = vdwg.mxu0
  %v1424 = vadd.f32 %v1377, %v1419
  %v1425 = vsub.f32 0.0, %v1424
  %v1426 = vmul.f32 %v1425, 1.442695
  %v1427 = vpow.pop %v1426
  %v1428 = vadd.f32 %v1427, 1.0
  %v1429 = vrcp.pop %v1428
  %v1430 = vmul.f32 1.0, %v1429
  %v1431 = vtanh.pop %v1424
  %1433 = vrot.lane.b32.xlu0 %v1379, 16
  %v1434 = vpop.permute.xlu0 %1433
  %v1436 = vmul.f32 %v1430, %v1434
  %1438 = vrot.lane.b32.xlu0 %v1431, 96
  %v1439 = vpop.permute.xlu0 %1438
  %v1441 = vmul.f32 %v1430, %v1439
  %1443 = vrot.lane.b32.xlu0 %v1441, 16
  %v1444 = vpop.permute.xlu0 %1443
  %v1446 = vadd.f32 %v1436, %v1444
  %v1447 = vtanh.pop %v1446
  %1449 = vrot.lane.b32.xlu0 %v1447, 32
  %v1450 = vpop.permute.xlu0 %1449
  %v1452 = vmul.f32 %v1430, %v1450
  %1454 = vrot.lane.b32.xlu0 %v1452, 80
  %v1455 = vpop.permute.xlu0 %1454
  %1457 = vst.msk [vmem:[%s125] sm:$0x3] %vm20, %v1455
  %1459 = vrot.lane.b32.xlu0 %v1446, 112
  %v1460 = vpop.permute.xlu0 %1459
  %1462 = vst.msk [vmem:[%s127] sm:$0x3] %vm20, %v1460
  %1463 = vst.msk [vmem:[%s5] sm:$0x3] %vm20, %v1455
  // Predicated region
  $region18: #{forward.22} parent=0 // pred_check
    _
  $region19: #{forward.22} parent=0 // pred_check_branch
    %1465 = sbr.rel (0) target = $region21
  $region20: #{forward.22} parent=0 // pred_region
    _
  $region21: #{forward.22} parent=0 // pred_fallthru
    _
  // Predicated region
  $region22: #{forward.22} parent=0 // pred_check
    _
  $region23: #{forward.22} parent=0 // pred_check_branch
    %1467 = sbr.rel (0) target = $region25
  $region24: #{forward.22} parent=0 // pred_region
    _
  $region25: #{forward.22} parent=0 // pred_fallthru
    _
  // Predicated region
  $region26: #{forward.22} parent=0 // pred_check
    _
  $region27: #{forward.22} parent=0 // pred_check_branch
    %1469 = sbr.rel (0) target = $region29
  $region28: #{forward.22} parent=0 // pred_region
    _
  $region29: #{forward.22} parent=0 // pred_fallthru
    _
  // Predicated region
  $region30: #{forward.22} parent=0 // pred_check
    _
  $region31: #{forward.22} parent=0 // pred_check_branch
    %1471 = sbr.rel (0) target = $region33
  $region32: #{forward.22} parent=0 // pred_region
    _
  $region33: #{forward.22} parent=0 // pred_fallthru
    _

</llo_original>
